<compile_context>
chip_gen: v7x
topology: tpu7x:2x2x1
jax: 0.10.0
libtpu: 0.0.40
codegen_flags: <defaults>
</compile_context>

<pallas_src>
import math
import jax
import jax.numpy as jnp
from jax.experimental import pallas as pl
from jax.experimental.pallas import tpu as pltpu

EPS = 1e-6


def _gelu_exact(x):
    # PyTorch nn.GELU default (erf-based, exact).
    return 0.5 * x * (1.0 + jax.lax.erf(x * 0.7071067811865475))


# --------------------------- fused forward kernel ----------------------------

def make_fused_kernel(inv_w, inv_h, B, Lb, C1, C, E):
    two_pi = 2.0 * math.pi
    L = B * Lb

    def kernel(cl_ref, gauss_ref, table_ref, x_ref, w1_ref, w2_ref, w3_ref,
               vp_ref, sparse_ref, dense_ref):
        # ----------------- sparse branch (points + box corners) --------------
        cl = cl_ref[...]                                  # (Mp, 3): x, y, label
        cx = cl[:, 0:1] * (2.0 * inv_w) - 1.0             # (Mp, 1)
        cy = cl[:, 1:2] * (2.0 * inv_h) - 1.0             # (Mp, 1)
        lab = cl[:, 2:3]                                  # (Mp, 1) float labels
        g = gauss_ref[...]                                # (2, E//2)
        pe = (cx * g[0:1, :] + cy * g[1:2, :]) * two_pi   # (Mp, E//2) (VPU)
        emb = jnp.concatenate([jnp.sin(pe), jnp.cos(pe)], axis=-1)   # (Mp, E)
        emb = jnp.where(lab == -1.0, 0.0, emb)            # zero PE for not-a-point
        add = jnp.where(lab == -1.0, table_ref[0:1, :], 0.0)
        for i in range(4):                                # 5 VPU selects, no MXU
            add = add + jnp.where(lab == float(i), table_ref[i + 1:i + 2, :], 0.0)
        sparse_ref[...] = emb + add

        # ----------------- dense branch (mask downscaling) -------------------
        # packed per-channel vectors: columns of vp_ref
        b1c = vp_ref[0:C1, 0:1]
        g1c = vp_ref[0:C1, 1:2]
        be1c = vp_ref[0:C1, 2:3]
        b2c = vp_ref[0:C, 3:4]
        g2c = vp_ref[0:C, 4:5]
        be2c = vp_ref[0:C, 5:6]
        b3c = vp_ref[0:E, 6:7]

        w1 = w1_ref[...]                                  # (C1, 4) taps
        y2 = jnp.zeros((C, L), jnp.float32)
        for p in range(4):                                # conv2 phase (kh2, kw2)
            xp = x_ref[p]                                 # (4 taps, L)
            # conv1 on the VPU: 4 broadcast multiply-adds (outer products)
            y1 = xp[0:1, :] * w1[:, 0:1]
            for t in range(1, 4):
                y1 = y1 + xp[t:t + 1, :] * w1[:, t:t + 1]
            y1 = y1 + b1c                                 # (C1, L)
            # LayerNorm2d over the C1 channels (per spatial position)
            u = jnp.mean(y1, axis=0, keepdims=True)
            d = y1 - u
            v = jnp.mean(d * d, axis=0, keepdims=True)
            y1 = d * jax.lax.rsqrt(v + EPS) * g1c + be1c
            y1 = _gelu_exact(y1)
            # conv2: partial matmul for this phase, accumulated in VMEM/vregs
            y2 = y2 + jnp.dot(w2_ref[p], y1, preferred_element_type=jnp.float32)
        y2 = y2 + b2c                                     # (C, L)
        # LayerNorm2d over the C channels + GELU
        u = jnp.mean(y2, axis=0, keepdims=True)
        d = y2 - u
        v = jnp.mean(d * d, axis=0, keepdims=True)
        y2 = d * jax.lax.rsqrt(v + EPS) * g2c + be2c
        y2 = _gelu_exact(y2)
        # conv3 (1x1): (E, C) @ (C, L)
        out = jnp.dot(w3_ref[...], y2, preferred_element_type=jnp.float32) + b3c
        # lane-dense NCHW-flattened stores, one aligned 256-lane slab per batch
        for b in range(B):
            dense_ref[b] = out[:, b * Lb:(b + 1) * Lb]

    return kernel


# ------------------------------- forward -------------------------------------

def prompt_encoder_forward(p, points, boxes, masks, input_image_size):
    # points is (coords, labels); boxes and masks are not None here, so the
    # point branch uses pad=False (matches the PyTorch forward logic).
    coords, labels = points
    B, Np, _ = coords.shape
    E = p['table'].shape[1]
    C1 = p['w1m'].shape[0]
    C = p['w2s'].shape[1]
    H, W = masks.shape[2], masks.shape[3]
    H2, W2 = H // 4, W // 4
    Lb = H2 * W2

    # ---- sparse inputs: coords+labels of points and box corners, padded ----
    pts = coords + 0.5
    box_c = (boxes + 0.5).reshape(B, 2, 2)
    box_l = jnp.broadcast_to(jnp.array([2.0, 3.0], jnp.float32)[None, :], (B, 2))
    all_c = jnp.concatenate([pts, box_c], axis=1).astype(jnp.float32)      # (B, Np+2, 2)
    all_l = jnp.concatenate([labels.astype(jnp.float32), box_l], axis=1)   # (B, Np+2)
    M = B * (Np + 2)
    Mp = ((M + 7) // 8) * 8
    cl = jnp.concatenate([all_c.reshape(M, 2), all_l.reshape(M, 1)], axis=1)
    cl = jnp.pad(cl, ((0, Mp - M), (0, 0)), constant_values=-1.0)          # (Mp, 3)

    # ---- dense input: one space-to-depth covering both 2x2/stride-2 convs ----
    # x_in[(p,q), (kh,kw), b*Lb + i2*W2 + j2] = mask[b, 4*i2+2p+kh, 4*j2+2q+kw]
    x = masks.reshape(B, H2, 2, 2, W2, 2, 2)          # (B, i2, p, kh, j2, q, kw)
    x = x.transpose(2, 5, 3, 6, 0, 1, 4)              # (p, q, kh, kw, B, i2, j2)
    x = x.reshape(4, 4, B * Lb).astype(jnp.float32)

    kernel = make_fused_kernel(1.0 / input_image_size[1], 1.0 / input_image_size[0],
                               B, Lb, C1, C, E)
    sparse_pad, dense = pl.pallas_call(
        kernel,
        out_shape=(jax.ShapeDtypeStruct((Mp, E), jnp.float32),
                   jax.ShapeDtypeStruct((B, E, Lb), jnp.float32)),
        in_specs=[pl.BlockSpec(memory_space=pltpu.MemorySpace.VMEM)] * 8,
        out_specs=(pl.BlockSpec(memory_space=pltpu.MemorySpace.VMEM),
                   pl.BlockSpec(memory_space=pltpu.MemorySpace.VMEM)),
    )(cl, p['gauss'], p['table'], x, p['w1m'], p['w2s'], p['w3m'], p['vparams'])

    sparse = sparse_pad[:M].reshape(B, Np + 2, E)
    dense = dense.reshape(B, E, H2, W2)               # NCHW, no transpose needed
    return sparse, dense
    # TODO(synk): masks=None branch (broadcast no_mask_embed) and the empty
    # torch.empty((bs, 0, E)) concat are Python-level glue, not kernel work.


def prep_params(raw):
    C1 = raw['w1'].shape[0]
    C = raw['w2'].shape[0]
    E = raw['w3'].shape[0]
    p = {}
    p['gauss'] = raw['gauss']                                                  # (2, E//2)
    p['table'] = jnp.concatenate([raw['not_a_point'][None, :], raw['point_emb']], axis=0)  # (5, E)
    # conv1: (C1,1,2,2) -> (C1, 4) taps, tap order (kh, kw)
    p['w1m'] = raw['w1'].reshape(C1, 4)
    # conv2: (C,C1,2,2) -> (4, C, C1), leading dim = phase (kh2, kw2)
    p['w2s'] = raw['w2'].transpose(2, 3, 0, 1).reshape(4, C, C1)
    # conv3 (1x1): (E,C,1,1) -> (E, C)
    p['w3m'] = raw['w3'].reshape(E, C)
    # packed per-channel column vectors
    vp = jnp.zeros((E, 7), jnp.float32)
    vp = vp.at[:C1, 0].set(raw['b1'])
    vp = vp.at[:C1, 1].set(raw['ln1_w'])
    vp = vp.at[:C1, 2].set(raw['ln1_b'])
    vp = vp.at[:C, 3].set(raw['b2'])
    vp = vp.at[:C, 4].set(raw['ln2_w'])
    vp = vp.at[:C, 5].set(raw['ln2_b'])
    vp = vp.at[:E, 6].set(raw['b3'])
    p['vparams'] = vp
    return p


# --------------------------- pure-JAX reference ------------------------------

def reference_forward(raw, points, boxes, masks, input_image_size):
    coords, labels = points
    gauss = raw['gauss']
    H_img, W_img = input_image_size

    def pe_encode(c):
        cx = c[..., 0] / W_img
        cy = c[..., 1] / H_img
        cc = jnp.stack([2 * cx - 1, 2 * cy - 1], axis=-1)
        pr = (cc @ gauss) * (2 * jnp.pi)
        return jnp.concatenate([jnp.sin(pr), jnp.cos(pr)], axis=-1)

    pe = pe_encode(coords + 0.5)
    lab = labels
    pe = jnp.where((lab == -1)[..., None], 0.0, pe)
    pe = pe + jnp.where((lab == -1)[..., None], raw['not_a_point'][None, None, :], 0.0)
    for i in range(4):
        pe = pe + jnp.where((lab == i)[..., None], raw['point_emb'][i][None, None, :], 0.0)
    ce = pe_encode((boxes + 0.5).reshape(-1, 2, 2))
    ce = ce.at[:, 0, :].add(raw['point_emb'][2])
    ce = ce.at[:, 1, :].add(raw['point_emb'][3])
    sparse = jnp.concatenate([pe, ce], axis=1)

    def conv(x, w, b, s):
        y = jax.lax.conv_general_dilated(x, w, (s, s), 'VALID',
                                         dimension_numbers=('NCHW', 'OIHW', 'NCHW'))
        return y + b[None, :, None, None]

    def ln2d(x, g, be):
        u = x.mean(1, keepdims=True)
        v = ((x - u) ** 2).mean(1, keepdims=True)
        return g[None, :, None, None] * ((x - u) / jnp.sqrt(v + EPS)) + be[None, :, None, None]

    y = conv(masks, raw['w1'], raw['b1'], 2)
    y = _gelu_exact(ln2d(y, raw['ln1_w'], raw['ln1_b']))
    y = conv(y, raw['w2'], raw['b2'], 2)
    y = _gelu_exact(ln2d(y, raw['ln2_w'], raw['ln2_b']))
    y = conv(y, raw['w3'], raw['b3'], 1)
    return sparse, y


# --------------------------------- main ---------------------------------------

if __name__ == "__main__":
    embed_dim = 32
    image_embedding_size = (16, 16)
    input_image_size = (64, 64)
    mask_in_chans = 16
    half = embed_dim // 2
    C1 = mask_in_chans // 4

    key = jax.random.PRNGKey(0)
    ks = jax.random.split(key, 16)
    raw = {
        'gauss': jax.random.normal(ks[0], (2, half), jnp.float32),            # pe_layer
        'point_emb': jax.random.normal(ks[1], (4, embed_dim), jnp.float32),   # 4 x nn.Embedding(1, E)
        'not_a_point': jax.random.normal(ks[2], (embed_dim,), jnp.float32),
        'no_mask': jax.random.normal(ks[3], (embed_dim,), jnp.float32),       # unused (masks given)
        'w1': jax.random.normal(ks[4], (C1, 1, 2, 2), jnp.float32) * 0.5,
        'b1': jax.random.normal(ks[5], (C1,), jnp.float32) * 0.1,
        'ln1_w': jnp.ones((C1,), jnp.float32),
        'ln1_b': jnp.zeros((C1,), jnp.float32),
        'w2': jax.random.normal(ks[6], (mask_in_chans, C1, 2, 2), jnp.float32) * 0.25,
        'b2': jax.random.normal(ks[7], (mask_in_chans,), jnp.float32) * 0.1,
        'ln2_w': jnp.ones((mask_in_chans,), jnp.float32),
        'ln2_b': jnp.zeros((mask_in_chans,), jnp.float32),
        'w3': jax.random.normal(ks[8], (embed_dim, mask_in_chans, 1, 1), jnp.float32) * 0.25,
        'b3': jax.random.normal(ks[9], (embed_dim,), jnp.float32) * 0.1,
    }
    p = prep_params(raw)

    B, Np = 2, 3
    coords = jax.random.uniform(ks[10], (B, Np, 2), jnp.float32) * 63.0
    labels = jnp.array([[1, 0, -1], [0, 1, 1]], dtype=jnp.int32)
    boxes = jax.random.uniform(ks[11], (B, 4), jnp.float32) * 63.0
    mask_h, mask_w = 4 * image_embedding_size[0], 4 * image_embedding_size[1]
    masks = jax.random.normal(ks[12], (B, 1, mask_h, mask_w), jnp.float32)

    sparse, dense = prompt_encoder_forward(p, (coords, labels), boxes, masks, input_image_size)
    jax.block_until_ready((sparse, dense))

    sparse_ref, dense_ref = reference_forward(raw, (coords, labels), boxes, masks, input_image_size)
    assert sparse.shape == (B, Np + 2, embed_dim)
    assert dense.shape == (B, embed_dim, image_embedding_size[0], image_embedding_size[1])
    err_s = float(jnp.max(jnp.abs(sparse - sparse_ref)))
    err_d = float(jnp.max(jnp.abs(dense - dense_ref)))
    assert err_s < 2e-3 and err_d < 2e-3, (err_s, err_d)
    print("KERNEL_OK")
</pallas_src>

<mosaic_0001>
module attributes {stable_mosaic.version = 11 : i64} {
  func.func @kernel(%arg0: memref<16x3xf32, #tpu.memory_space<vmem>>, %arg1: memref<2x16xf32, #tpu.memory_space<vmem>>, %arg2: memref<5x32xf32, #tpu.memory_space<vmem>>, %arg3: memref<4x4x512xf32, #tpu.memory_space<vmem>>, %arg4: memref<4x4xf32, #tpu.memory_space<vmem>>, %arg5: memref<4x16x4xf32, #tpu.memory_space<vmem>>, %arg6: memref<32x16xf32, #tpu.memory_space<vmem>>, %arg7: memref<32x7xf32, #tpu.memory_space<vmem>>, %arg8: memref<16x32xf32, #tpu.memory_space<vmem>>, %arg9: memref<2x32x256xf32, #tpu.memory_space<vmem>>) attributes {dimension_semantics = [], scalar_prefetch = 0 : i64, scratch_operands = 0 : i64, tpu.core_type = #tpu.core_type<tc>} {
    %c0 = arith.constant 0 : index
    %c0_0 = arith.constant 0 : index
    %0 = vector.load %arg0[%c0, %c0_0] : memref<16x3xf32, #tpu.memory_space<vmem>>, vector<16x3xf32>
    %1 = vector.extract_strided_slice %0 {offsets = [0, 0], sizes = [16, 1], strides = [1, 1]} : vector<16x3xf32> to vector<16x1xf32>
    %cst = arith.constant 3.125000e-02 : f32
    %2 = vector.broadcast %cst : f32 to vector<16x1xf32>
    %3 = arith.mulf %1, %2 : vector<16x1xf32>
    %cst_1 = arith.constant 1.000000e+00 : f32
    %4 = vector.broadcast %cst_1 : f32 to vector<16x1xf32>
    %5 = arith.subf %3, %4 : vector<16x1xf32>
    %6 = vector.extract_strided_slice %0 {offsets = [0, 1], sizes = [16, 1], strides = [1, 1]} : vector<16x3xf32> to vector<16x1xf32>
    %cst_2 = arith.constant 3.125000e-02 : f32
    %7 = vector.broadcast %cst_2 : f32 to vector<16x1xf32>
    %8 = arith.mulf %6, %7 : vector<16x1xf32>
    %cst_3 = arith.constant 1.000000e+00 : f32
    %9 = vector.broadcast %cst_3 : f32 to vector<16x1xf32>
    %10 = arith.subf %8, %9 : vector<16x1xf32>
    %11 = vector.extract_strided_slice %0 {offsets = [0, 2], sizes = [16, 1], strides = [1, 1]} : vector<16x3xf32> to vector<16x1xf32>
    %c0_4 = arith.constant 0 : index
    %c0_5 = arith.constant 0 : index
    %12 = vector.load %arg1[%c0_4, %c0_5] : memref<2x16xf32, #tpu.memory_space<vmem>>, vector<2x16xf32>
    %13 = vector.extract_strided_slice %12 {offsets = [0, 0], sizes = [1, 16], strides = [1, 1]} : vector<2x16xf32> to vector<1x16xf32>
    %14 = vector.broadcast %5 : vector<16x1xf32> to vector<16x16xf32>
    %15 = vector.broadcast %13 : vector<1x16xf32> to vector<16x16xf32>
    %16 = arith.mulf %14, %15 : vector<16x16xf32>
    %17 = vector.extract_strided_slice %12 {offsets = [1, 0], sizes = [1, 16], strides = [1, 1]} : vector<2x16xf32> to vector<1x16xf32>
    %18 = vector.broadcast %10 : vector<16x1xf32> to vector<16x16xf32>
    %19 = vector.broadcast %17 : vector<1x16xf32> to vector<16x16xf32>
    %20 = arith.mulf %18, %19 : vector<16x16xf32>
    %21 = arith.addf %16, %20 : vector<16x16xf32>
    %cst_6 = arith.constant 6.28318548 : f32
    %22 = vector.broadcast %cst_6 : f32 to vector<16x16xf32>
    %23 = arith.mulf %21, %22 : vector<16x16xf32>
    %24 = math.sin %23 : vector<16x16xf32>
    %25 = math.cos %23 : vector<16x16xf32>
    %26 = tpu.concatenate %24, %25 in 1 : vector<16x16xf32>, vector<16x16xf32> -> vector<16x32xf32>
    %cst_7 = arith.constant -1.000000e+00 : f32
    %27 = vector.broadcast %cst_7 : f32 to vector<16x1xf32>
    %28 = arith.cmpf oeq, %11, %27 : vector<16x1xf32>
    %cst_8 = arith.constant 0.000000e+00 : f32
    %29 = vector.shape_cast %28 : vector<16x1xi1> to vector<16x1xi1>
    %30 = vector.broadcast %29 : vector<16x1xi1> to vector<16x32xi1>
    %31 = vector.broadcast %cst_8 : f32 to vector<16x32xf32>
    %32 = arith.select %30, %31, %26 : vector<16x32xi1>, vector<16x32xf32>
    %cst_9 = arith.constant -1.000000e+00 : f32
    %33 = vector.broadcast %cst_9 : f32 to vector<16x1xf32>
    %34 = arith.cmpf oeq, %11, %33 : vector<16x1xf32>
    %c0_10 = arith.constant 0 : index
    %c0_11 = arith.constant 0 : index
    %35 = vector.load %arg2[%c0_10, %c0_11] : memref<5x32xf32, #tpu.memory_space<vmem>>, vector<1x32xf32>
    %cst_12 = arith.constant 0.000000e+00 : f32
    %36 = vector.shape_cast %34 : vector<16x1xi1> to vector<16x1xi1>
    %37 = vector.broadcast %36 : vector<16x1xi1> to vector<16x32xi1>
    %38 = vector.shape_cast %35 : vector<1x32xf32> to vector<1x32xf32>
    %39 = vector.broadcast %38 : vector<1x32xf32> to vector<16x32xf32>
    %40 = vector.broadcast %cst_12 : f32 to vector<16x32xf32>
    %41 = arith.select %37, %39, %40 : vector<16x32xi1>, vector<16x32xf32>
    %cst_13 = arith.constant 0.000000e+00 : f32
    %42 = vector.broadcast %cst_13 : f32 to vector<16x1xf32>
    %43 = arith.cmpf oeq, %11, %42 : vector<16x1xf32>
    %c1 = arith.constant 1 : index
    %c0_14 = arith.constant 0 : index
    %44 = vector.load %arg2[%c1, %c0_14] : memref<5x32xf32, #tpu.memory_space<vmem>>, vector<1x32xf32>
    %cst_15 = arith.constant 0.000000e+00 : f32
    %45 = vector.shape_cast %43 : vector<16x1xi1> to vector<16x1xi1>
    %46 = vector.broadcast %45 : vector<16x1xi1> to vector<16x32xi1>
    %47 = vector.shape_cast %44 : vector<1x32xf32> to vector<1x32xf32>
    %48 = vector.broadcast %47 : vector<1x32xf32> to vector<16x32xf32>
    %49 = vector.broadcast %cst_15 : f32 to vector<16x32xf32>
    %50 = arith.select %46, %48, %49 : vector<16x32xi1>, vector<16x32xf32>
    %51 = arith.addf %41, %50 : vector<16x32xf32>
    %cst_16 = arith.constant 1.000000e+00 : f32
    %52 = vector.broadcast %cst_16 : f32 to vector<16x1xf32>
    %53 = arith.cmpf oeq, %11, %52 : vector<16x1xf32>
    %c2 = arith.constant 2 : index
    %c0_17 = arith.constant 0 : index
    %54 = vector.load %arg2[%c2, %c0_17] : memref<5x32xf32, #tpu.memory_space<vmem>>, vector<1x32xf32>
    %cst_18 = arith.constant 0.000000e+00 : f32
    %55 = vector.shape_cast %53 : vector<16x1xi1> to vector<16x1xi1>
    %56 = vector.broadcast %55 : vector<16x1xi1> to vector<16x32xi1>
    %57 = vector.shape_cast %54 : vector<1x32xf32> to vector<1x32xf32>
    %58 = vector.broadcast %57 : vector<1x32xf32> to vector<16x32xf32>
    %59 = vector.broadcast %cst_18 : f32 to vector<16x32xf32>
    %60 = arith.select %56, %58, %59 : vector<16x32xi1>, vector<16x32xf32>
    %61 = arith.addf %51, %60 : vector<16x32xf32>
    %cst_19 = arith.constant 2.000000e+00 : f32
    %62 = vector.broadcast %cst_19 : f32 to vector<16x1xf32>
    %63 = arith.cmpf oeq, %11, %62 : vector<16x1xf32>
    %c3 = arith.constant 3 : index
    %c0_20 = arith.constant 0 : index
    %64 = vector.load %arg2[%c3, %c0_20] : memref<5x32xf32, #tpu.memory_space<vmem>>, vector<1x32xf32>
    %cst_21 = arith.constant 0.000000e+00 : f32
    %65 = vector.shape_cast %63 : vector<16x1xi1> to vector<16x1xi1>
    %66 = vector.broadcast %65 : vector<16x1xi1> to vector<16x32xi1>
    %67 = vector.shape_cast %64 : vector<1x32xf32> to vector<1x32xf32>
    %68 = vector.broadcast %67 : vector<1x32xf32> to vector<16x32xf32>
    %69 = vector.broadcast %cst_21 : f32 to vector<16x32xf32>
    %70 = arith.select %66, %68, %69 : vector<16x32xi1>, vector<16x32xf32>
    %71 = arith.addf %61, %70 : vector<16x32xf32>
    %cst_22 = arith.constant 3.000000e+00 : f32
    %72 = vector.broadcast %cst_22 : f32 to vector<16x1xf32>
    %73 = arith.cmpf oeq, %11, %72 : vector<16x1xf32>
    %c4 = arith.constant 4 : index
    %c0_23 = arith.constant 0 : index
    %74 = vector.load %arg2[%c4, %c0_23] : memref<5x32xf32, #tpu.memory_space<vmem>>, vector<1x32xf32>
    %cst_24 = arith.constant 0.000000e+00 : f32
    %75 = vector.shape_cast %73 : vector<16x1xi1> to vector<16x1xi1>
    %76 = vector.broadcast %75 : vector<16x1xi1> to vector<16x32xi1>
    %77 = vector.shape_cast %74 : vector<1x32xf32> to vector<1x32xf32>
    %78 = vector.broadcast %77 : vector<1x32xf32> to vector<16x32xf32>
    %79 = vector.broadcast %cst_24 : f32 to vector<16x32xf32>
    %80 = arith.select %76, %78, %79 : vector<16x32xi1>, vector<16x32xf32>
    %81 = arith.addf %71, %80 : vector<16x32xf32>
    %82 = arith.addf %32, %81 : vector<16x32xf32>
    %c0_25 = arith.constant 0 : index
    %c0_26 = arith.constant 0 : index
    %83 = vector.load %arg8[%c0_25, %c0_26] : memref<16x32xf32, #tpu.memory_space<vmem>>, vector<16x32xf32>
    tpu.vector_store %arg8[%c0_25, %c0_26], %82 {strides = array<i32>} : memref<16x32xf32, #tpu.memory_space<vmem>>, vector<16x32xf32>,
    %c0_27 = arith.constant 0 : index
    %c0_28 = arith.constant 0 : index
    %84 = vector.load %arg7[%c0_27, %c0_28] : memref<32x7xf32, #tpu.memory_space<vmem>>, vector<4x1xf32>
    %c0_29 = arith.constant 0 : index
    %c1_30 = arith.constant 1 : index
    %85 = vector.load %arg7[%c0_29, %c1_30] : memref<32x7xf32, #tpu.memory_space<vmem>>, vector<4x1xf32>
    %c0_31 = arith.constant 0 : index
    %c2_32 = arith.constant 2 : index
    %86 = vector.load %arg7[%c0_31, %c2_32] : memref<32x7xf32, #tpu.memory_space<vmem>>, vector<4x1xf32>
    %c0_33 = arith.constant 0 : index
    %c3_34 = arith.constant 3 : index
    %87 = vector.load %arg7[%c0_33, %c3_34] : memref<32x7xf32, #tpu.memory_space<vmem>>, vector<16x1xf32>
    %c0_35 = arith.constant 0 : index
    %c4_36 = arith.constant 4 : index
    %88 = vector.load %arg7[%c0_35, %c4_36] : memref<32x7xf32, #tpu.memory_space<vmem>>, vector<16x1xf32>
    %c0_37 = arith.constant 0 : index
    %c5 = arith.constant 5 : index
    %89 = vector.load %arg7[%c0_37, %c5] : memref<32x7xf32, #tpu.memory_space<vmem>>, vector<16x1xf32>
    %c0_38 = arith.constant 0 : index
    %c6 = arith.constant 6 : index
    %90 = vector.load %arg7[%c0_38, %c6] : memref<32x7xf32, #tpu.memory_space<vmem>>, vector<32x1xf32>
    %c0_39 = arith.constant 0 : index
    %c0_40 = arith.constant 0 : index
    %91 = vector.load %arg4[%c0_39, %c0_40] : memref<4x4xf32, #tpu.memory_space<vmem>>, vector<4x4xf32>
    %cst_41 = arith.constant 0.000000e+00 : f32
    %92 = vector.broadcast %cst_41 : f32 to vector<16x512xf32>
    %c0_42 = arith.constant 0 : index
    %c0_43 = arith.constant 0 : index
    %c0_44 = arith.constant 0 : index
    %93 = vector.load %arg3[%c0_42, %c0_43, %c0_44] : memref<4x4x512xf32, #tpu.memory_space<vmem>>, vector<1x4x512xf32>
    %94 = vector.shape_cast %93 : vector<1x4x512xf32> to vector<4x512xf32>
    %95 = vector.extract_strided_slice %94 {offsets = [0, 0], sizes = [1, 512], strides = [1, 1]} : vector<4x512xf32> to vector<1x512xf32>
    %96 = vector.extract_strided_slice %91 {offsets = [0, 0], sizes = [4, 1], strides = [1, 1]} : vector<4x4xf32> to vector<4x1xf32>
    %97 = vector.broadcast %95 : vector<1x512xf32> to vector<4x512xf32>
    %98 = vector.broadcast %96 : vector<4x1xf32> to vector<4x512xf32>
    %99 = arith.mulf %97, %98 : vector<4x512xf32>
    %100 = vector.extract_strided_slice %94 {offsets = [1, 0], sizes = [1, 512], strides = [1, 1]} : vector<4x512xf32> to vector<1x512xf32>
    %101 = vector.extract_strided_slice %91 {offsets = [0, 1], sizes = [4, 1], strides = [1, 1]} : vector<4x4xf32> to vector<4x1xf32>
    %102 = vector.broadcast %100 : vector<1x512xf32> to vector<4x512xf32>
    %103 = vector.broadcast %101 : vector<4x1xf32> to vector<4x512xf32>
    %104 = arith.mulf %102, %103 : vector<4x512xf32>
    %105 = arith.addf %99, %104 : vector<4x512xf32>
    %106 = vector.extract_strided_slice %94 {offsets = [2, 0], sizes = [1, 512], strides = [1, 1]} : vector<4x512xf32> to vector<1x512xf32>
    %107 = vector.extract_strided_slice %91 {offsets = [0, 2], sizes = [4, 1], strides = [1, 1]} : vector<4x4xf32> to vector<4x1xf32>
    %108 = vector.broadcast %106 : vector<1x512xf32> to vector<4x512xf32>
    %109 = vector.broadcast %107 : vector<4x1xf32> to vector<4x512xf32>
    %110 = arith.mulf %108, %109 : vector<4x512xf32>
    %111 = arith.addf %105, %110 : vector<4x512xf32>
    %112 = vector.extract_strided_slice %94 {offsets = [3, 0], sizes = [1, 512], strides = [1, 1]} : vector<4x512xf32> to vector<1x512xf32>
    %113 = vector.extract_strided_slice %91 {offsets = [0, 3], sizes = [4, 1], strides = [1, 1]} : vector<4x4xf32> to vector<4x1xf32>
    %114 = vector.broadcast %112 : vector<1x512xf32> to vector<4x512xf32>
    %115 = vector.broadcast %113 : vector<4x1xf32> to vector<4x512xf32>
    %116 = arith.mulf %114, %115 : vector<4x512xf32>
    %117 = arith.addf %111, %116 : vector<4x512xf32>
    %118 = vector.broadcast %84 : vector<4x1xf32> to vector<4x512xf32>
    %119 = arith.addf %117, %118 : vector<4x512xf32>
    %cst_45 = arith.constant dense<0.000000e+00> : vector<512xf32>
    %120 = vector.multi_reduction <add>, %119, %cst_45 [0] : vector<4x512xf32> to vector<512xf32>
    %121 = vector.shape_cast %120 : vector<512xf32> to vector<1x512xf32>
    %cst_46 = arith.constant 4.000000e+00 : f32
    %122 = vector.broadcast %cst_46 : f32 to vector<1x512xf32>
    %123 = arith.divf %121, %122 : vector<1x512xf32>
    %124 = vector.broadcast %123 : vector<1x512xf32> to vector<4x512xf32>
    %125 = arith.subf %119, %124 : vector<4x512xf32>
    %126 = arith.mulf %125, %125 : vector<4x512xf32>
    %cst_47 = arith.constant dense<0.000000e+00> : vector<512xf32>
    %127 = vector.multi_reduction <add>, %126, %cst_47 [0] : vector<4x512xf32> to vector<512xf32>
    %128 = vector.shape_cast %127 : vector<512xf32> to vector<1x512xf32>
    %cst_48 = arith.constant 4.000000e+00 : f32
    %129 = vector.broadcast %cst_48 : f32 to vector<1x512xf32>
    %130 = arith.divf %128, %129 : vector<1x512xf32>
    %cst_49 = arith.constant 9.99999997E-7 : f32
    %131 = vector.broadcast %cst_49 : f32 to vector<1x512xf32>
    %132 = arith.addf %130, %131 : vector<1x512xf32>
    %133 = math.rsqrt %132 : vector<1x512xf32>
    %134 = vector.broadcast %133 : vector<1x512xf32> to vector<4x512xf32>
    %135 = arith.mulf %125, %134 : vector<4x512xf32>
    %136 = vector.broadcast %85 : vector<4x1xf32> to vector<4x512xf32>
    %137 = arith.mulf %135, %136 : vector<4x512xf32>
    %138 = vector.broadcast %86 : vector<4x1xf32> to vector<4x512xf32>
    %139 = arith.addf %137, %138 : vector<4x512xf32>
    %cst_50 = arith.constant 5.000000e-01 : f32
    %140 = vector.broadcast %cst_50 : f32 to vector<4x512xf32>
    %141 = arith.mulf %140, %139 : vector<4x512xf32>
    %cst_51 = arith.constant 0.707106769 : f32
    %142 = vector.broadcast %cst_51 : f32 to vector<4x512xf32>
    %143 = arith.mulf %139, %142 : vector<4x512xf32>
    %144 = math.erf %143 : vector<4x512xf32>
    %cst_52 = arith.constant 1.000000e+00 : f32
    %145 = vector.broadcast %cst_52 : f32 to vector<4x512xf32>
    %146 = arith.addf %145, %144 : vector<4x512xf32>
    %147 = arith.mulf %141, %146 : vector<4x512xf32>
    %c0_53 = arith.constant 0 : index
    %c0_54 = arith.constant 0 : index
    %c0_55 = arith.constant 0 : index
    %148 = vector.load %arg5[%c0_53, %c0_54, %c0_55] : memref<4x16x4xf32, #tpu.memory_space<vmem>>, vector<1x16x4xf32>
    %149 = vector.shape_cast %148 : vector<1x16x4xf32> to vector<16x4xf32>
    %cst_56 = arith.constant dense<0.000000e+00> : vector<16x512xf32>
    %150 = tpu.matmul %149, %147, %cst_56 {dimension_numbers = #tpu.dot_dimension_numbers<[1], [0], [0], [1], [0, 0, 1, 1], [], []>} : vector<16x4xf32>, vector<4x512xf32>, vector<16x512xf32> -> vector<16x512xf32>
    %151 = arith.addf %92, %150 : vector<16x512xf32>
    %c1_57 = arith.constant 1 : index
    %c0_58 = arith.constant 0 : index
    %c0_59 = arith.constant 0 : index
    %152 = vector.load %arg3[%c1_57, %c0_58, %c0_59] : memref<4x4x512xf32, #tpu.memory_space<vmem>>, vector<1x4x512xf32>
    %153 = vector.shape_cast %152 : vector<1x4x512xf32> to vector<4x512xf32>
    %154 = vector.extract_strided_slice %153 {offsets = [0, 0], sizes = [1, 512], strides = [1, 1]} : vector<4x512xf32> to vector<1x512xf32>
    %155 = vector.extract_strided_slice %91 {offsets = [0, 0], sizes = [4, 1], strides = [1, 1]} : vector<4x4xf32> to vector<4x1xf32>
    %156 = vector.broadcast %154 : vector<1x512xf32> to vector<4x512xf32>
    %157 = vector.broadcast %155 : vector<4x1xf32> to vector<4x512xf32>
    %158 = arith.mulf %156, %157 : vector<4x512xf32>
    %159 = vector.extract_strided_slice %153 {offsets = [1, 0], sizes = [1, 512], strides = [1, 1]} : vector<4x512xf32> to vector<1x512xf32>
    %160 = vector.extract_strided_slice %91 {offsets = [0, 1], sizes = [4, 1], strides = [1, 1]} : vector<4x4xf32> to vector<4x1xf32>
    %161 = vector.broadcast %159 : vector<1x512xf32> to vector<4x512xf32>
    %162 = vector.broadcast %160 : vector<4x1xf32> to vector<4x512xf32>
    %163 = arith.mulf %161, %162 : vector<4x512xf32>
    %164 = arith.addf %158, %163 : vector<4x512xf32>
    %165 = vector.extract_strided_slice %153 {offsets = [2, 0], sizes = [1, 512], strides = [1, 1]} : vector<4x512xf32> to vector<1x512xf32>
    %166 = vector.extract_strided_slice %91 {offsets = [0, 2], sizes = [4, 1], strides = [1, 1]} : vector<4x4xf32> to vector<4x1xf32>
    %167 = vector.broadcast %165 : vector<1x512xf32> to vector<4x512xf32>
    %168 = vector.broadcast %166 : vector<4x1xf32> to vector<4x512xf32>
    %169 = arith.mulf %167, %168 : vector<4x512xf32>
    %170 = arith.addf %164, %169 : vector<4x512xf32>
    %171 = vector.extract_strided_slice %153 {offsets = [3, 0], sizes = [1, 512], strides = [1, 1]} : vector<4x512xf32> to vector<1x512xf32>
    %172 = vector.extract_strided_slice %91 {offsets = [0, 3], sizes = [4, 1], strides = [1, 1]} : vector<4x4xf32> to vector<4x1xf32>
    %173 = vector.broadcast %171 : vector<1x512xf32> to vector<4x512xf32>
    %174 = vector.broadcast %172 : vector<4x1xf32> to vector<4x512xf32>
    %175 = arith.mulf %173, %174 : vector<4x512xf32>
    %176 = arith.addf %170, %175 : vector<4x512xf32>
    %177 = vector.broadcast %84 : vector<4x1xf32> to vector<4x512xf32>
    %178 = arith.addf %176, %177 : vector<4x512xf32>
    %cst_60 = arith.constant dense<0.000000e+00> : vector<512xf32>
    %179 = vector.multi_reduction <add>, %178, %cst_60 [0] : vector<4x512xf32> to vector<512xf32>
    %180 = vector.shape_cast %179 : vector<512xf32> to vector<1x512xf32>
    %cst_61 = arith.constant 4.000000e+00 : f32
    %181 = vector.broadcast %cst_61 : f32 to vector<1x512xf32>
    %182 = arith.divf %180, %181 : vector<1x512xf32>
    %183 = vector.broadcast %182 : vector<1x512xf32> to vector<4x512xf32>
    %184 = arith.subf %178, %183 : vector<4x512xf32>
    %185 = arith.mulf %184, %184 : vector<4x512xf32>
    %cst_62 = arith.constant dense<0.000000e+00> : vector<512xf32>
    %186 = vector.multi_reduction <add>, %185, %cst_62 [0] : vector<4x512xf32> to vector<512xf32>
    %187 = vector.shape_cast %186 : vector<512xf32> to vector<1x512xf32>
    %cst_63 = arith.constant 4.000000e+00 : f32
    %188 = vector.broadcast %cst_63 : f32 to vector<1x512xf32>
    %189 = arith.divf %187, %188 : vector<1x512xf32>
    %cst_64 = arith.constant 9.99999997E-7 : f32
    %190 = vector.broadcast %cst_64 : f32 to vector<1x512xf32>
    %191 = arith.addf %189, %190 : vector<1x512xf32>
    %192 = math.rsqrt %191 : vector<1x512xf32>
    %193 = vector.broadcast %192 : vector<1x512xf32> to vector<4x512xf32>
    %194 = arith.mulf %184, %193 : vector<4x512xf32>
    %195 = vector.broadcast %85 : vector<4x1xf32> to vector<4x512xf32>
    %196 = arith.mulf %194, %195 : vector<4x512xf32>
    %197 = vector.broadcast %86 : vector<4x1xf32> to vector<4x512xf32>
    %198 = arith.addf %196, %197 : vector<4x512xf32>
    %cst_65 = arith.constant 5.000000e-01 : f32
    %199 = vector.broadcast %cst_65 : f32 to vector<4x512xf32>
    %200 = arith.mulf %199, %198 : vector<4x512xf32>
    %cst_66 = arith.constant 0.707106769 : f32
    %201 = vector.broadcast %cst_66 : f32 to vector<4x512xf32>
    %202 = arith.mulf %198, %201 : vector<4x512xf32>
    %203 = math.erf %202 : vector<4x512xf32>
    %cst_67 = arith.constant 1.000000e+00 : f32
    %204 = vector.broadcast %cst_67 : f32 to vector<4x512xf32>
    %205 = arith.addf %204, %203 : vector<4x512xf32>
    %206 = arith.mulf %200, %205 : vector<4x512xf32>
    %c1_68 = arith.constant 1 : index
    %c0_69 = arith.constant 0 : index
    %c0_70 = arith.constant 0 : index
    %207 = vector.load %arg5[%c1_68, %c0_69, %c0_70] : memref<4x16x4xf32, #tpu.memory_space<vmem>>, vector<1x16x4xf32>
    %208 = vector.shape_cast %207 : vector<1x16x4xf32> to vector<16x4xf32>
    %cst_71 = arith.constant dense<0.000000e+00> : vector<16x512xf32>
    %209 = tpu.matmul %208, %206, %cst_71 {dimension_numbers = #tpu.dot_dimension_numbers<[1], [0], [0], [1], [0, 0, 1, 1], [], []>} : vector<16x4xf32>, vector<4x512xf32>, vector<16x512xf32> -> vector<16x512xf32>
    %210 = arith.addf %151, %209 : vector<16x512xf32>
    %c2_72 = arith.constant 2 : index
    %c0_73 = arith.constant 0 : index
    %c0_74 = arith.constant 0 : index
    %211 = vector.load %arg3[%c2_72, %c0_73, %c0_74] : memref<4x4x512xf32, #tpu.memory_space<vmem>>, vector<1x4x512xf32>
    %212 = vector.shape_cast %211 : vector<1x4x512xf32> to vector<4x512xf32>
    %213 = vector.extract_strided_slice %212 {offsets = [0, 0], sizes = [1, 512], strides = [1, 1]} : vector<4x512xf32> to vector<1x512xf32>
    %214 = vector.extract_strided_slice %91 {offsets = [0, 0], sizes = [4, 1], strides = [1, 1]} : vector<4x4xf32> to vector<4x1xf32>
    %215 = vector.broadcast %213 : vector<1x512xf32> to vector<4x512xf32>
    %216 = vector.broadcast %214 : vector<4x1xf32> to vector<4x512xf32>
    %217 = arith.mulf %215, %216 : vector<4x512xf32>
    %218 = vector.extract_strided_slice %212 {offsets = [1, 0], sizes = [1, 512], strides = [1, 1]} : vector<4x512xf32> to vector<1x512xf32>
    %219 = vector.extract_strided_slice %91 {offsets = [0, 1], sizes = [4, 1], strides = [1, 1]} : vector<4x4xf32> to vector<4x1xf32>
    %220 = vector.broadcast %218 : vector<1x512xf32> to vector<4x512xf32>
    %221 = vector.broadcast %219 : vector<4x1xf32> to vector<4x512xf32>
    %222 = arith.mulf %220, %221 : vector<4x512xf32>
    %223 = arith.addf %217, %222 : vector<4x512xf32>
    %224 = vector.extract_strided_slice %212 {offsets = [2, 0], sizes = [1, 512], strides = [1, 1]} : vector<4x512xf32> to vector<1x512xf32>
    %225 = vector.extract_strided_slice %91 {offsets = [0, 2], sizes = [4, 1], strides = [1, 1]} : vector<4x4xf32> to vector<4x1xf32>
    %226 = vector.broadcast %224 : vector<1x512xf32> to vector<4x512xf32>
    %227 = vector.broadcast %225 : vector<4x1xf32> to vector<4x512xf32>
    %228 = arith.mulf %226, %227 : vector<4x512xf32>
    %229 = arith.addf %223, %228 : vector<4x512xf32>
    %230 = vector.extract_strided_slice %212 {offsets = [3, 0], sizes = [1, 512], strides = [1, 1]} : vector<4x512xf32> to vector<1x512xf32>
    %231 = vector.extract_strided_slice %91 {offsets = [0, 3], sizes = [4, 1], strides = [1, 1]} : vector<4x4xf32> to vector<4x1xf32>
    %232 = vector.broadcast %230 : vector<1x512xf32> to vector<4x512xf32>
    %233 = vector.broadcast %231 : vector<4x1xf32> to vector<4x512xf32>
    %234 = arith.mulf %232, %233 : vector<4x512xf32>
    %235 = arith.addf %229, %234 : vector<4x512xf32>
    %236 = vector.broadcast %84 : vector<4x1xf32> to vector<4x512xf32>
    %237 = arith.addf %235, %236 : vector<4x512xf32>
    %cst_75 = arith.constant dense<0.000000e+00> : vector<512xf32>
    %238 = vector.multi_reduction <add>, %237, %cst_75 [0] : vector<4x512xf32> to vector<512xf32>
    %239 = vector.shape_cast %238 : vector<512xf32> to vector<1x512xf32>
    %cst_76 = arith.constant 4.000000e+00 : f32
    %240 = vector.broadcast %cst_76 : f32 to vector<1x512xf32>
    %241 = arith.divf %239, %240 : vector<1x512xf32>
    %242 = vector.broadcast %241 : vector<1x512xf32> to vector<4x512xf32>
    %243 = arith.subf %237, %242 : vector<4x512xf32>
    %244 = arith.mulf %243, %243 : vector<4x512xf32>
    %cst_77 = arith.constant dense<0.000000e+00> : vector<512xf32>
    %245 = vector.multi_reduction <add>, %244, %cst_77 [0] : vector<4x512xf32> to vector<512xf32>
    %246 = vector.shape_cast %245 : vector<512xf32> to vector<1x512xf32>
    %cst_78 = arith.constant 4.000000e+00 : f32
    %247 = vector.broadcast %cst_78 : f32 to vector<1x512xf32>
    %248 = arith.divf %246, %247 : vector<1x512xf32>
    %cst_79 = arith.constant 9.99999997E-7 : f32
    %249 = vector.broadcast %cst_79 : f32 to vector<1x512xf32>
    %250 = arith.addf %248, %249 : vector<1x512xf32>
    %251 = math.rsqrt %250 : vector<1x512xf32>
    %252 = vector.broadcast %251 : vector<1x512xf32> to vector<4x512xf32>
    %253 = arith.mulf %243, %252 : vector<4x512xf32>
    %254 = vector.broadcast %85 : vector<4x1xf32> to vector<4x512xf32>
    %255 = arith.mulf %253, %254 : vector<4x512xf32>
    %256 = vector.broadcast %86 : vector<4x1xf32> to vector<4x512xf32>
    %257 = arith.addf %255, %256 : vector<4x512xf32>
    %cst_80 = arith.constant 5.000000e-01 : f32
    %258 = vector.broadcast %cst_80 : f32 to vector<4x512xf32>
    %259 = arith.mulf %258, %257 : vector<4x512xf32>
    %cst_81 = arith.constant 0.707106769 : f32
    %260 = vector.broadcast %cst_81 : f32 to vector<4x512xf32>
    %261 = arith.mulf %257, %260 : vector<4x512xf32>
    %262 = math.erf %261 : vector<4x512xf32>
    %cst_82 = arith.constant 1.000000e+00 : f32
    %263 = vector.broadcast %cst_82 : f32 to vector<4x512xf32>
    %264 = arith.addf %263, %262 : vector<4x512xf32>
    %265 = arith.mulf %259, %264 : vector<4x512xf32>
    %c2_83 = arith.constant 2 : index
    %c0_84 = arith.constant 0 : index
    %c0_85 = arith.constant 0 : index
    %266 = vector.load %arg5[%c2_83, %c0_84, %c0_85] : memref<4x16x4xf32, #tpu.memory_space<vmem>>, vector<1x16x4xf32>
    %267 = vector.shape_cast %266 : vector<1x16x4xf32> to vector<16x4xf32>
    %cst_86 = arith.constant dense<0.000000e+00> : vector<16x512xf32>
    %268 = tpu.matmul %267, %265, %cst_86 {dimension_numbers = #tpu.dot_dimension_numbers<[1], [0], [0], [1], [0, 0, 1, 1], [], []>} : vector<16x4xf32>, vector<4x512xf32>, vector<16x512xf32> -> vector<16x512xf32>
    %269 = arith.addf %210, %268 : vector<16x512xf32>
    %c3_87 = arith.constant 3 : index
    %c0_88 = arith.constant 0 : index
    %c0_89 = arith.constant 0 : index
    %270 = vector.load %arg3[%c3_87, %c0_88, %c0_89] : memref<4x4x512xf32, #tpu.memory_space<vmem>>, vector<1x4x512xf32>
    %271 = vector.shape_cast %270 : vector<1x4x512xf32> to vector<4x512xf32>
    %272 = vector.extract_strided_slice %271 {offsets = [0, 0], sizes = [1, 512], strides = [1, 1]} : vector<4x512xf32> to vector<1x512xf32>
    %273 = vector.extract_strided_slice %91 {offsets = [0, 0], sizes = [4, 1], strides = [1, 1]} : vector<4x4xf32> to vector<4x1xf32>
    %274 = vector.broadcast %272 : vector<1x512xf32> to vector<4x512xf32>
    %275 = vector.broadcast %273 : vector<4x1xf32> to vector<4x512xf32>
    %276 = arith.mulf %274, %275 : vector<4x512xf32>
    %277 = vector.extract_strided_slice %271 {offsets = [1, 0], sizes = [1, 512], strides = [1, 1]} : vector<4x512xf32> to vector<1x512xf32>
    %278 = vector.extract_strided_slice %91 {offsets = [0, 1], sizes = [4, 1], strides = [1, 1]} : vector<4x4xf32> to vector<4x1xf32>
    %279 = vector.broadcast %277 : vector<1x512xf32> to vector<4x512xf32>
    %280 = vector.broadcast %278 : vector<4x1xf32> to vector<4x512xf32>
    %281 = arith.mulf %279, %280 : vector<4x512xf32>
    %282 = arith.addf %276, %281 : vector<4x512xf32>
    %283 = vector.extract_strided_slice %271 {offsets = [2, 0], sizes = [1, 512], strides = [1, 1]} : vector<4x512xf32> to vector<1x512xf32>
    %284 = vector.extract_strided_slice %91 {offsets = [0, 2], sizes = [4, 1], strides = [1, 1]} : vector<4x4xf32> to vector<4x1xf32>
    %285 = vector.broadcast %283 : vector<1x512xf32> to vector<4x512xf32>
    %286 = vector.broadcast %284 : vector<4x1xf32> to vector<4x512xf32>
    %287 = arith.mulf %285, %286 : vector<4x512xf32>
    %288 = arith.addf %282, %287 : vector<4x512xf32>
    %289 = vector.extract_strided_slice %271 {offsets = [3, 0], sizes = [1, 512], strides = [1, 1]} : vector<4x512xf32> to vector<1x512xf32>
    %290 = vector.extract_strided_slice %91 {offsets = [0, 3], sizes = [4, 1], strides = [1, 1]} : vector<4x4xf32> to vector<4x1xf32>
    %291 = vector.broadcast %289 : vector<1x512xf32> to vector<4x512xf32>
    %292 = vector.broadcast %290 : vector<4x1xf32> to vector<4x512xf32>
    %293 = arith.mulf %291, %292 : vector<4x512xf32>
    %294 = arith.addf %288, %293 : vector<4x512xf32>
    %295 = vector.broadcast %84 : vector<4x1xf32> to vector<4x512xf32>
    %296 = arith.addf %294, %295 : vector<4x512xf32>
    %cst_90 = arith.constant dense<0.000000e+00> : vector<512xf32>
    %297 = vector.multi_reduction <add>, %296, %cst_90 [0] : vector<4x512xf32> to vector<512xf32>
    %298 = vector.shape_cast %297 : vector<512xf32> to vector<1x512xf32>
    %cst_91 = arith.constant 4.000000e+00 : f32
    %299 = vector.broadcast %cst_91 : f32 to vector<1x512xf32>
    %300 = arith.divf %298, %299 : vector<1x512xf32>
    %301 = vector.broadcast %300 : vector<1x512xf32> to vector<4x512xf32>
    %302 = arith.subf %296, %301 : vector<4x512xf32>
    %303 = arith.mulf %302, %302 : vector<4x512xf32>
    %cst_92 = arith.constant dense<0.000000e+00> : vector<512xf32>
    %304 = vector.multi_reduction <add>, %303, %cst_92 [0] : vector<4x512xf32> to vector<512xf32>
    %305 = vector.shape_cast %304 : vector<512xf32> to vector<1x512xf32>
    %cst_93 = arith.constant 4.000000e+00 : f32
    %306 = vector.broadcast %cst_93 : f32 to vector<1x512xf32>
    %307 = arith.divf %305, %306 : vector<1x512xf32>
    %cst_94 = arith.constant 9.99999997E-7 : f32
    %308 = vector.broadcast %cst_94 : f32 to vector<1x512xf32>
    %309 = arith.addf %307, %308 : vector<1x512xf32>
    %310 = math.rsqrt %309 : vector<1x512xf32>
    %311 = vector.broadcast %310 : vector<1x512xf32> to vector<4x512xf32>
    %312 = arith.mulf %302, %311 : vector<4x512xf32>
    %313 = vector.broadcast %85 : vector<4x1xf32> to vector<4x512xf32>
    %314 = arith.mulf %312, %313 : vector<4x512xf32>
    %315 = vector.broadcast %86 : vector<4x1xf32> to vector<4x512xf32>
    %316 = arith.addf %314, %315 : vector<4x512xf32>
    %cst_95 = arith.constant 5.000000e-01 : f32
    %317 = vector.broadcast %cst_95 : f32 to vector<4x512xf32>
    %318 = arith.mulf %317, %316 : vector<4x512xf32>
    %cst_96 = arith.constant 0.707106769 : f32
    %319 = vector.broadcast %cst_96 : f32 to vector<4x512xf32>
    %320 = arith.mulf %316, %319 : vector<4x512xf32>
    %321 = math.erf %320 : vector<4x512xf32>
    %cst_97 = arith.constant 1.000000e+00 : f32
    %322 = vector.broadcast %cst_97 : f32 to vector<4x512xf32>
    %323 = arith.addf %322, %321 : vector<4x512xf32>
    %324 = arith.mulf %318, %323 : vector<4x512xf32>
    %c3_98 = arith.constant 3 : index
    %c0_99 = arith.constant 0 : index
    %c0_100 = arith.constant 0 : index
    %325 = vector.load %arg5[%c3_98, %c0_99, %c0_100] : memref<4x16x4xf32, #tpu.memory_space<vmem>>, vector<1x16x4xf32>
    %326 = vector.shape_cast %325 : vector<1x16x4xf32> to vector<16x4xf32>
    %cst_101 = arith.constant dense<0.000000e+00> : vector<16x512xf32>
    %327 = tpu.matmul %326, %324, %cst_101 {dimension_numbers = #tpu.dot_dimension_numbers<[1], [0], [0], [1], [0, 0, 1, 1], [], []>} : vector<16x4xf32>, vector<4x512xf32>, vector<16x512xf32> -> vector<16x512xf32>
    %328 = arith.addf %269, %327 : vector<16x512xf32>
    %329 = vector.broadcast %87 : vector<16x1xf32> to vector<16x512xf32>
    %330 = arith.addf %328, %329 : vector<16x512xf32>
    %cst_102 = arith.constant dense<0.000000e+00> : vector<512xf32>
    %331 = vector.multi_reduction <add>, %330, %cst_102 [0] : vector<16x512xf32> to vector<512xf32>
    %332 = vector.shape_cast %331 : vector<512xf32> to vector<1x512xf32>
    %cst_103 = arith.constant 1.600000e+01 : f32
    %333 = vector.broadcast %cst_103 : f32 to vector<1x512xf32>
    %334 = arith.divf %332, %333 : vector<1x512xf32>
    %335 = vector.broadcast %334 : vector<1x512xf32> to vector<16x512xf32>
    %336 = arith.subf %330, %335 : vector<16x512xf32>
    %337 = arith.mulf %336, %336 : vector<16x512xf32>
    %cst_104 = arith.constant dense<0.000000e+00> : vector<512xf32>
    %338 = vector.multi_reduction <add>, %337, %cst_104 [0] : vector<16x512xf32> to vector<512xf32>
    %339 = vector.shape_cast %338 : vector<512xf32> to vector<1x512xf32>
    %cst_105 = arith.constant 1.600000e+01 : f32
    %340 = vector.broadcast %cst_105 : f32 to vector<1x512xf32>
    %341 = arith.divf %339, %340 : vector<1x512xf32>
    %cst_106 = arith.constant 9.99999997E-7 : f32
    %342 = vector.broadcast %cst_106 : f32 to vector<1x512xf32>
    %343 = arith.addf %341, %342 : vector<1x512xf32>
    %344 = math.rsqrt %343 : vector<1x512xf32>
    %345 = vector.broadcast %344 : vector<1x512xf32> to vector<16x512xf32>
    %346 = arith.mulf %336, %345 : vector<16x512xf32>
    %347 = vector.broadcast %88 : vector<16x1xf32> to vector<16x512xf32>
    %348 = arith.mulf %346, %347 : vector<16x512xf32>
    %349 = vector.broadcast %89 : vector<16x1xf32> to vector<16x512xf32>
    %350 = arith.addf %348, %349 : vector<16x512xf32>
    %cst_107 = arith.constant 5.000000e-01 : f32
    %351 = vector.broadcast %cst_107 : f32 to vector<16x512xf32>
    %352 = arith.mulf %351, %350 : vector<16x512xf32>
    %cst_108 = arith.constant 0.707106769 : f32
    %353 = vector.broadcast %cst_108 : f32 to vector<16x512xf32>
    %354 = arith.mulf %350, %353 : vector<16x512xf32>
    %355 = math.erf %354 : vector<16x512xf32>
    %cst_109 = arith.constant 1.000000e+00 : f32
    %356 = vector.broadcast %cst_109 : f32 to vector<16x512xf32>
    %357 = arith.addf %356, %355 : vector<16x512xf32>
    %358 = arith.mulf %352, %357 : vector<16x512xf32>
    %c0_110 = arith.constant 0 : index
    %c0_111 = arith.constant 0 : index
    %359 = vector.load %arg6[%c0_110, %c0_111] : memref<32x16xf32, #tpu.memory_space<vmem>>, vector<32x16xf32>
    %cst_112 = arith.constant dense<0.000000e+00> : vector<32x512xf32>
    %360 = tpu.matmul %359, %358, %cst_112 {dimension_numbers = #tpu.dot_dimension_numbers<[1], [0], [0], [1], [0, 0, 1, 1], [], []>} : vector<32x16xf32>, vector<16x512xf32>, vector<32x512xf32> -> vector<32x512xf32>
    %361 = vector.broadcast %90 : vector<32x1xf32> to vector<32x512xf32>
    %362 = arith.addf %360, %361 : vector<32x512xf32>
    %363 = vector.extract_strided_slice %362 {offsets = [0, 0], sizes = [32, 256], strides = [1, 1]} : vector<32x512xf32> to vector<32x256xf32>
    %c0_113 = arith.constant 0 : index
    %c0_114 = arith.constant 0 : index
    %c0_115 = arith.constant 0 : index
    %364 = vector.load %arg9[%c0_113, %c0_114, %c0_115] : memref<2x32x256xf32, #tpu.memory_space<vmem>>, vector<1x32x256xf32>
    %365 = vector.shape_cast %364 : vector<1x32x256xf32> to vector<32x256xf32>
    %366 = vector.shape_cast %363 : vector<32x256xf32> to vector<1x32x256xf32>
    tpu.vector_store %arg9[%c0_113, %c0_114, %c0_115], %366 {strides = array<i32>} : memref<2x32x256xf32, #tpu.memory_space<vmem>>, vector<1x32x256xf32>,
    %367 = vector.extract_strided_slice %362 {offsets = [0, 256], sizes = [32, 256], strides = [1, 1]} : vector<32x512xf32> to vector<32x256xf32>
    %c1_116 = arith.constant 1 : index
    %c0_117 = arith.constant 0 : index
    %c0_118 = arith.constant 0 : index
    %368 = vector.load %arg9[%c1_116, %c0_117, %c0_118] : memref<2x32x256xf32, #tpu.memory_space<vmem>>, vector<1x32x256xf32>
    %369 = vector.shape_cast %368 : vector<1x32x256xf32> to vector<32x256xf32>
    %370 = vector.shape_cast %367 : vector<32x256xf32> to vector<1x32x256xf32>
    tpu.vector_store %arg9[%c1_116, %c0_117, %c0_118], %370 {strides = array<i32>} : memref<2x32x256xf32, #tpu.memory_space<vmem>>, vector<1x32x256xf32>,
    return
  }
}

</mosaic_0001>

<llo_original>
// kernel: tpu_custom_call.1
$region0: #{tpu_custom_call.1}
  #allocation0 [shape = 'u32[]', space=smem, size = 0x4, offset = 0x4, fixed_abs, tag = 'smem constant byte address 0x4 - core index']
  #allocation1 [shape = 'u32[144,128]{1,0:T(1,128)}', space=vmem, size = 0x12000, scoped, tag = 'internal scratch']
  %s0 = inlined_call_operand.vmem [shape: f32[16,3], index: 0, kind: input, shape index: {}]
  %s1 = inlined_call_operand.vmem [shape: f32[2,16], index: 1, kind: input, shape index: {}]
  %s2 = inlined_call_operand.vmem [shape: f32[5,32], index: 2, kind: input, shape index: {}]
  %s3 = inlined_call_operand.vmem [shape: f32[4,4,512], index: 3, kind: input, shape index: {}]
  %s4 = inlined_call_operand.vmem [shape: f32[4,4], index: 4, kind: input, shape index: {}]
  %s5 = inlined_call_operand.vmem [shape: f32[4,16,4], index: 5, kind: input, shape index: {}]
  %s6 = inlined_call_operand.vmem [shape: f32[32,16], index: 6, kind: input, shape index: {}]
  %s7 = inlined_call_operand.vmem [shape: f32[32,7], index: 7, kind: input, shape index: {}]
  %s8 = inlined_call_operand.hbm [shape: f32[16,32], index: 8, kind: output, shape index: {0}]
  %s9 = inlined_call_operand.hbm [shape: f32[2,32,256], index: 9, kind: output, shape index: {1}]
  %10 = xla_tuple %s8, %s9
  %s11 = sld [smem:[#allocation0]]
  $region50: #{tpu_custom_call.1} parent=0
    _
  %s13 = ssub.s32 1, %s11
  %s14 = scalar_select 0, %s13, %s11
  $region1: #{tpu_custom_call.1} parent=0
    #allocation2 [shape = 'u8[8192]{0}', space=vmem, size = 0x2000, scoped, tag = 'output window, operand 0, single buffered']
    #allocation3 [shape = 's32[1]{0}', space=sflag, size = 0x4, scoped, tag = 'scoped memory for tpu_custom_call.1']
    #allocation4 [shape = 'u8[65536]{0}', space=vmem, size = 0x10000, scoped, tag = 'output window, operand 1, single buffered']
    #allocation5 [shape = 's32[1]{0}', space=sflag, size = 0x4, scoped, tag = 'scoped memory for tpu_custom_call.1']
    %15 = vsyncpa [#allocation3], 0
    %16 = vsyncpa [#allocation5], 0
    // Predicated region
    $region2: #{tpu_custom_call.1} parent=1 // pred_check
      _
    $region3: #{tpu_custom_call.1} parent=1 // pred_check_branch
      %18 = sbr.rel (0) target = $region5
    $region4: #{tpu_custom_call.1} parent=1 // pred_region
      _
    $region5: #{tpu_custom_call.1} parent=1 // pred_fallthru
      _
    // Predicated region
    $region6: #{tpu_custom_call.1} parent=1 // pred_check
      _
    $region7: #{tpu_custom_call.1} parent=1 // pred_check_branch
      %20 = sbr.rel (0) target = $region9
    $region8: #{tpu_custom_call.1} parent=1 // pred_region
      _
    $region9: #{tpu_custom_call.1} parent=1 // pred_fallthru
      _
    // Predicated region
    $region10: #{tpu_custom_call.1} parent=1 // pred_check
      _
    $region11: #{tpu_custom_call.1} parent=1 // pred_check_branch
      %22 = sbr.rel (0) target = $region13
    $region12: #{tpu_custom_call.1} parent=1 // pred_region
      _
    $region13: #{tpu_custom_call.1} parent=1 // pred_fallthru
      _
    // Predicated region
    $region14: #{tpu_custom_call.1} parent=1 // pred_check
      _
    $region15: #{tpu_custom_call.1} parent=1 // pred_check_branch
      %24 = sbr.rel (0) target = $region17
    $region16: #{tpu_custom_call.1} parent=1 // pred_region
      _
    $region17: #{tpu_custom_call.1} parent=1 // pred_fallthru
      _
    // Predicated region
    $region18: #{tpu_custom_call.1} parent=1 // pred_check
      _
    $region19: #{tpu_custom_call.1} parent=1 // pred_check_branch
      %26 = sbr.rel (0) target = $region21
    $region20: #{tpu_custom_call.1} parent=1 // pred_region
      _
    $region21: #{tpu_custom_call.1} parent=1 // pred_fallthru
      _
    // Predicated region
    $region22: #{tpu_custom_call.1} parent=1 // pred_check
      _
    $region23: #{tpu_custom_call.1} parent=1 // pred_check_branch
      %28 = sbr.rel (0) target = $region25
    $region24: #{tpu_custom_call.1} parent=1 // pred_region
      _
    $region25: #{tpu_custom_call.1} parent=1 // pred_fallthru
      _
    // Predicated region
    $region26: #{tpu_custom_call.1} parent=1 // pred_check
      _
    $region27: #{tpu_custom_call.1} parent=1 // pred_check_branch
      %30 = sbr.rel (0) target = $region29
    $region28: #{tpu_custom_call.1} parent=1 // pred_region
      _
    $region29: #{tpu_custom_call.1} parent=1 // pred_fallthru
      _
    // Predicated region
    $region30: #{tpu_custom_call.1} parent=1 // pred_check
      _
    $region31: #{tpu_custom_call.1} parent=1 // pred_check_branch
      %32 = sbr.rel (0) target = $region33
    $region32: #{tpu_custom_call.1} parent=1 // pred_region
      _
    $region33: #{tpu_custom_call.1} parent=1 // pred_fallthru
      _
    %v33 = vld [vmem:[%s0] sm:$0xff]
    %v34 = vld [vmem:[%s0 + $0x8] sm:$0xff]
    %v35 = vmul.f32 %v33, 0.03125
    %v36 = vmul.f32 %v34, 0.03125
    %v37 = vsub.f32 %v35, 1.0
    %v38 = vsub.f32 %v36, 1.0
    %v39 = vld [vmem:[%s1] sm:$0x3]
    %41 = vset.pattern.permute.xlu0 0
    %42 = vperm.xlu0 %41, %v37
    %v43 = vpop.permute.xlu0 %42
    %46 = vset.pattern.permute.xlu0 0
    %47 = vperm.xlu0 %46, %v38
    %v48 = vpop.permute.xlu0 %47
    %v50 = vlaneseq
    %v51 = vshrl.u32 %v50, 7
    %v52 = vsub.s32 0, %v51
    %v53 = vrot.slane %v39, %v52
    %v54 = vmul.f32 %v43, %v53
    %v55 = vmul.f32 %v48, %v53
    %56 = vset.pattern.permute.xlu0 1
    %57 = vperm.xlu0 %56, %v37
    %v58 = vpop.permute.xlu0 %57
    %60 = vset.pattern.permute.xlu0 1
    %61 = vperm.xlu0 %60, %v38
    %v62 = vpop.permute.xlu0 %61
    %v64 = vlaneseq
    %v65 = vshrl.u32 %v64, 7
    %v66 = vsub.s32 1, %v65
    %v67 = vrot.slane %v39, %v66
    %v68 = vmul.f32 %v58, %v67
    %v69 = vmul.f32 %v62, %v67
    %v70 = vadd.f32 %v54, %v68
    %v71 = vadd.f32 %v55, %v69
    %v72 = vmul.f32 %v70, 6.2831855
    %v73 = vmul.f32 %v71, 6.2831855
    %v74 = vand.u32 2147483647, %v72
    %vm75 = vcmp.le.f32.partialorder %v74, 0.7853982
    %vm76 = vcmp.lt.s32.totalorder %v72, 0
    %v77 = vand.u32 %v72, 2139095040
    %v78 = vshrl.u32 %v77, 23
    %v79 = vsub.s32 %v78, 127
    %v80 = vand.u32 2147483647, %v72
    %v81 = vand.u32 %v80, 8388607
    %v82 = vor.u32 %v81, 8388608
    %v83 = vsub.s32 0, %v82
    %v84 = vadd.s32 %v79, 1
    %vm85 = vcmp.gt.s32.totalorder %v84, 0
    %v86 = vsel %vm85, %v84, 0
    %v87 = vshrl.u32 %v86, 5
    %v88 = vand.u32 %v86, 31
    %v89 = vsub.s32 32, %v88
    %v90 = vshrl.u32 683565275, %v89
    %v91 = vshll.u32 683565275, %v88
    %v92 = vshrl.u32 2475754826, %v89
    %v93 = vor.u32 %v91, %v92
    %v94 = vshll.u32 2475754826, %v88
    %v95 = vshrl.u32 2131351028, %v89
    %v96 = vor.u32 %v94, %v95
    %v97 = vshll.u32 2131351028, %v88
    %v98 = vshrl.u32 2102212464, %v89
    %v99 = vor.u32 %v97, %v98
    %v100 = vshll.u32 2102212464, %v88
    %v101 = vshrl.u32 920167782, %v89
    %v102 = vor.u32 %v100, %v101
    %v103 = vshll.u32 920167782, %v88
    %v104 = vshrl.u32 1326507024, %v89
    %v105 = vor.u32 %v103, %v104
    %vm106 = vcmp.lt.s32.totalorder %v87, 1
    %vm107 = vcmp.lt.s32.totalorder %v87, 2
    %vm108 = vcmp.lt.s32.totalorder %v87, 3
    %vm109 = vcmp.lt.s32.totalorder %v87, 4
    %v110 = vsel %vm106, %v90, %v93
    %v111 = vsel %vm109, %v99, 2102212464
    %v112 = vsel %vm108, %v96, %v111
    %v113 = vsel %vm107, %v110, %v112
    %v114 = vsel %vm106, %v93, %v96
    %v115 = vsel %vm109, %v102, 920167782
    %v116 = vsel %vm108, %v99, %v115
    %v117 = vsel %vm107, %v114, %v116
    %v118 = vsel %vm106, %v96, %v99
    %v119 = vsel %vm109, %v105, 1326507024
    %v120 = vsel %vm108, %v102, %v119
    %v121 = vsel %vm107, %v118, %v120
    %v122 = vshll.u32 %v82, 8
    %v123 = vmul.u32.u64.compose %v122, %v121
    %v124 = vextract.low.u32 %v123
    %v125 = vextract.high.u32 %v123
    %v126 = vmul.u32.u64.compose %v122, %v117
    %v127 = vextract.low.u32 %v126
    %v128 = vextract.high.u32 %v126
    %v129 = vmul.u32 %v122, %v113
    %v130 = vadd.s32 %v125, %v127
    %vm131 = vc.u32 %v125, %v127
    %v132 = vadd.s32 %v128, 1
    %v133 = vsel %vm131, %v132, %v128
    %v134 = vadd.s32 %v129, %v133
    %v135 = vadd.s32 %v134, 536870912
    %v136 = vshrl.u32 %v135, 30
    %v137 = vshll.u32 %v136, 30
    %v138 = vsub.s32 %v134, %v137
    %vm139 = vcmp.lt.s32.totalorder %v138, 0
    %v140 = vsub.s32 0, %v138
    %v141 = vsel %vm139, %v140, %v138
    %v142 = vclz %v141
    %v143 = vsub.s32 %v142, 2
    %vm144 = vcmp.gt.s32.totalorder 0, %v143
    %v145 = vsel %vm144, 0, %v143
    %v146 = vsub.s32 32, %v145
    %v147 = vshll.u32 %v138, %v145
    %v148 = vshrl.u32 %v130, %v146
    %v149 = vor.u32 %v147, %v148
    %v150 = vsub.s32 4294967266, %v145
    %v151 = vadd.s32 %v150, 127
    %v152 = vshll.u32 %v151, 23
    %v153 = vor.u32 4788187, %v152
    %v154 = vand.u32 2147483647, %v153
    %v156 = vcvt.s32.f32 %v149
    %v157 = vmul.f32 %v156, %v154
    %v158 = vxor.u32 %v157, 2147483648
    %v159 = vsel %vm76, %v158, %v157
    %v160 = vsub.s32 4, %v136
    %v161 = vsel %vm76, %v160, %v136
    %v162 = vsel %vm75, %v72, %v159
    %v163 = vsel %vm75, 0, %v161
    %v164 = vcosq.f32.pop %v162
    %v165 = vsinq.f32.pop %v162
    %vm166 = vweird.f32 %v72
    %v167 = vadd.s32 %v163, 3
    %v168 = vand.u32 %v167, 3
    %vm169 = vcmp.lt.s32.totalorder %v168, 2
    %vm170 = vcmp.eq.s32.totalorder %v168, 0
    %v171 = vxor.u32 %v165, 2147483648
    %v172 = vsel %vm170, %v164, %v171
    %vm173 = vcmp.eq.s32.totalorder %v168, 2
    %v174 = vxor.u32 %v164, 2147483648
    %v175 = vsel %vm173, %v174, %v165
    %v176 = vsel %vm169, %v172, %v175
    %v177 = vsel %vm166, nan, %v176
    %v178 = vand.u32 2147483647, %v73
    %vm179 = vcmp.le.f32.partialorder %v178, 0.7853982
    %vm180 = vcmp.lt.s32.totalorder %v73, 0
    %v181 = vand.u32 %v73, 2139095040
    %v182 = vshrl.u32 %v181, 23
    %v183 = vsub.s32 %v182, 127
    %v184 = vand.u32 2147483647, %v73
    %v185 = vand.u32 %v184, 8388607
    %v186 = vor.u32 %v185, 8388608
    %v187 = vsub.s32 0, %v186
    %v188 = vadd.s32 %v183, 1
    %vm189 = vcmp.gt.s32.totalorder %v188, 0
    %v190 = vsel %vm189, %v188, 0
    %v191 = vshrl.u32 %v190, 5
    %v192 = vand.u32 %v190, 31
    %v193 = vsub.s32 32, %v192
    %v194 = vshrl.u32 683565275, %v193
    %v195 = vshll.u32 683565275, %v192
    %v196 = vshrl.u32 2475754826, %v193
    %v197 = vor.u32 %v195, %v196
    %v198 = vshll.u32 2475754826, %v192
    %v199 = vshrl.u32 2131351028, %v193
    %v200 = vor.u32 %v198, %v199
    %v201 = vshll.u32 2131351028, %v192
    %v202 = vshrl.u32 2102212464, %v193
    %v203 = vor.u32 %v201, %v202
    %v204 = vshll.u32 2102212464, %v192
    %v205 = vshrl.u32 920167782, %v193
    %v206 = vor.u32 %v204, %v205
    %v207 = vshll.u32 920167782, %v192
    %v208 = vshrl.u32 1326507024, %v193
    %v209 = vor.u32 %v207, %v208
    %vm210 = vcmp.lt.s32.totalorder %v191, 1
    %vm211 = vcmp.lt.s32.totalorder %v191, 2
    %vm212 = vcmp.lt.s32.totalorder %v191, 3
    %vm213 = vcmp.lt.s32.totalorder %v191, 4
    %v214 = vsel %vm210, %v194, %v197
    %v215 = vsel %vm213, %v203, 2102212464
    %v216 = vsel %vm212, %v200, %v215
    %v217 = vsel %vm211, %v214, %v216
    %v218 = vsel %vm210, %v197, %v200
    %v219 = vsel %vm213, %v206, 920167782
    %v220 = vsel %vm212, %v203, %v219
    %v221 = vsel %vm211, %v218, %v220
    %v222 = vsel %vm210, %v200, %v203
    %v223 = vsel %vm213, %v209, 1326507024
    %v224 = vsel %vm212, %v206, %v223
    %v225 = vsel %vm211, %v222, %v224
    %v226 = vshll.u32 %v186, 8
    %v227 = vmul.u32.u64.compose %v226, %v225
    %v228 = vextract.low.u32 %v227
    %v229 = vextract.high.u32 %v227
    %v230 = vmul.u32.u64.compose %v226, %v221
    %v231 = vextract.low.u32 %v230
    %v232 = vextract.high.u32 %v230
    %v233 = vmul.u32 %v226, %v217
    %v234 = vadd.s32 %v229, %v231
    %vm235 = vc.u32 %v229, %v231
    %v236 = vadd.s32 %v232, 1
    %v237 = vsel %vm235, %v236, %v232
    %v238 = vadd.s32 %v233, %v237
    %v239 = vadd.s32 %v238, 536870912
    %v240 = vshrl.u32 %v239, 30
    %v241 = vshll.u32 %v240, 30
    %v242 = vsub.s32 %v238, %v241
    %vm243 = vcmp.lt.s32.totalorder %v242, 0
    %v244 = vsub.s32 0, %v242
    %v245 = vsel %vm243, %v244, %v242
    %v246 = vclz %v245
    %v247 = vsub.s32 %v246, 2
    %vm248 = vcmp.gt.s32.totalorder 0, %v247
    %v249 = vsel %vm248, 0, %v247
    %v250 = vsub.s32 32, %v249
    %v251 = vshll.u32 %v242, %v249
    %v252 = vshrl.u32 %v234, %v250
    %v253 = vor.u32 %v251, %v252
    %v254 = vsub.s32 4294967266, %v249
    %v255 = vadd.s32 %v254, 127
    %v256 = vshll.u32 %v255, 23
    %v257 = vor.u32 4788187, %v256
    %v258 = vand.u32 2147483647, %v257
    %v260 = vcvt.s32.f32 %v253
    %v261 = vmul.f32 %v260, %v258
    %v262 = vxor.u32 %v261, 2147483648
    %v263 = vsel %vm180, %v262, %v261
    %v264 = vsub.s32 4, %v240
    %v265 = vsel %vm180, %v264, %v240
    %v266 = vsel %vm179, %v73, %v263
    %v267 = vsel %vm179, 0, %v265
    %v268 = vcosq.f32.pop %v266
    %v269 = vsinq.f32.pop %v266
    %vm270 = vweird.f32 %v73
    %v271 = vadd.s32 %v267, 3
    %v272 = vand.u32 %v271, 3
    %vm273 = vcmp.lt.s32.totalorder %v272, 2
    %vm274 = vcmp.eq.s32.totalorder %v272, 0
    %v275 = vxor.u32 %v269, 2147483648
    %v276 = vsel %vm274, %v268, %v275
    %vm277 = vcmp.eq.s32.totalorder %v272, 2
    %v278 = vxor.u32 %v268, 2147483648
    %v279 = vsel %vm277, %v278, %v269
    %v280 = vsel %vm273, %v276, %v279
    %v281 = vsel %vm270, nan, %v280
    %v282 = vand.u32 2147483647, %v72
    %vm283 = vcmp.le.f32.partialorder %v282, 0.7853982
    %vm284 = vcmp.lt.s32.totalorder %v72, 0
    %v285 = vand.u32 %v72, 2139095040
    %v286 = vshrl.u32 %v285, 23
    %v287 = vsub.s32 %v286, 127
    %v288 = vand.u32 2147483647, %v72
    %v289 = vand.u32 %v288, 8388607
    %v290 = vor.u32 %v289, 8388608
    %v291 = vsub.s32 0, %v290
    %v292 = vadd.s32 %v287, 1
    %vm293 = vcmp.gt.s32.totalorder %v292, 0
    %v294 = vsel %vm293, %v292, 0
    %v295 = vshrl.u32 %v294, 5
    %v296 = vand.u32 %v294, 31
    %v297 = vsub.s32 32, %v296
    %v298 = vshrl.u32 683565275, %v297
    %v299 = vshll.u32 683565275, %v296
    %v300 = vshrl.u32 2475754826, %v297
    %v301 = vor.u32 %v299, %v300
    %v302 = vshll.u32 2475754826, %v296
    %v303 = vshrl.u32 2131351028, %v297
    %v304 = vor.u32 %v302, %v303
    %v305 = vshll.u32 2131351028, %v296
    %v306 = vshrl.u32 2102212464, %v297
    %v307 = vor.u32 %v305, %v306
    %v308 = vshll.u32 2102212464, %v296
    %v309 = vshrl.u32 920167782, %v297
    %v310 = vor.u32 %v308, %v309
    %v311 = vshll.u32 920167782, %v296
    %v312 = vshrl.u32 1326507024, %v297
    %v313 = vor.u32 %v311, %v312
    %vm314 = vcmp.lt.s32.totalorder %v295, 1
    %vm315 = vcmp.lt.s32.totalorder %v295, 2
    %vm316 = vcmp.lt.s32.totalorder %v295, 3
    %vm317 = vcmp.lt.s32.totalorder %v295, 4
    %v318 = vsel %vm314, %v298, %v301
    %v319 = vsel %vm317, %v307, 2102212464
    %v320 = vsel %vm316, %v304, %v319
    %v321 = vsel %vm315, %v318, %v320
    %v322 = vsel %vm314, %v301, %v304
    %v323 = vsel %vm317, %v310, 920167782
    %v324 = vsel %vm316, %v307, %v323
    %v325 = vsel %vm315, %v322, %v324
    %v326 = vsel %vm314, %v304, %v307
    %v327 = vsel %vm317, %v313, 1326507024
    %v328 = vsel %vm316, %v310, %v327
    %v329 = vsel %vm315, %v326, %v328
    %v330 = vshll.u32 %v290, 8
    %v331 = vmul.u32.u64.compose %v330, %v329
    %v332 = vextract.low.u32 %v331
    %v333 = vextract.high.u32 %v331
    %v334 = vmul.u32.u64.compose %v330, %v325
    %v335 = vextract.low.u32 %v334
    %v336 = vextract.high.u32 %v334
    %v337 = vmul.u32 %v330, %v321
    %v338 = vadd.s32 %v333, %v335
    %vm339 = vc.u32 %v333, %v335
    %v340 = vadd.s32 %v336, 1
    %v341 = vsel %vm339, %v340, %v336
    %v342 = vadd.s32 %v337, %v341
    %v343 = vadd.s32 %v342, 536870912
    %v344 = vshrl.u32 %v343, 30
    %v345 = vshll.u32 %v344, 30
    %v346 = vsub.s32 %v342, %v345
    %vm347 = vcmp.lt.s32.totalorder %v346, 0
    %v348 = vsub.s32 0, %v346
    %v349 = vsel %vm347, %v348, %v346
    %v350 = vclz %v349
    %v351 = vsub.s32 %v350, 2
    %vm352 = vcmp.gt.s32.totalorder 0, %v351
    %v353 = vsel %vm352, 0, %v351
    %v354 = vsub.s32 32, %v353
    %v355 = vshll.u32 %v346, %v353
    %v356 = vshrl.u32 %v338, %v354
    %v357 = vor.u32 %v355, %v356
    %v358 = vsub.s32 4294967266, %v353
    %v359 = vadd.s32 %v358, 127
    %v360 = vshll.u32 %v359, 23
    %v361 = vor.u32 4788187, %v360
    %v362 = vand.u32 2147483647, %v361
    %v364 = vcvt.s32.f32 %v357
    %v365 = vmul.f32 %v364, %v362
    %v366 = vxor.u32 %v365, 2147483648
    %v367 = vsel %vm284, %v366, %v365
    %v368 = vsub.s32 4, %v344
    %v369 = vsel %vm284, %v368, %v344
    %v370 = vsel %vm283, %v72, %v367
    %v371 = vsel %vm283, 0, %v369
    %v372 = vcosq.f32.pop %v370
    %v373 = vsinq.f32.pop %v370
    %vm374 = vweird.f32 %v72
    %v375 = vand.u32 %v371, 3
    %vm376 = vcmp.lt.s32.totalorder %v375, 2
    %vm377 = vcmp.eq.s32.totalorder %v375, 0
    %v378 = vxor.u32 %v373, 2147483648
    %v379 = vsel %vm377, %v372, %v378
    %vm380 = vcmp.eq.s32.totalorder %v375, 2
    %v381 = vxor.u32 %v372, 2147483648
    %v382 = vsel %vm380, %v381, %v373
    %v383 = vsel %vm376, %v379, %v382
    %v384 = vsel %vm374, nan, %v383
    %v385 = vand.u32 2147483647, %v73
    %vm386 = vcmp.le.f32.partialorder %v385, 0.7853982
    %vm387 = vcmp.lt.s32.totalorder %v73, 0
    %v388 = vand.u32 %v73, 2139095040
    %v389 = vshrl.u32 %v388, 23
    %v390 = vsub.s32 %v389, 127
    %v391 = vand.u32 2147483647, %v73
    %v392 = vand.u32 %v391, 8388607
    %v393 = vor.u32 %v392, 8388608
    %v394 = vsub.s32 0, %v393
    %v395 = vadd.s32 %v390, 1
    %vm396 = vcmp.gt.s32.totalorder %v395, 0
    %v397 = vsel %vm396, %v395, 0
    %v398 = vshrl.u32 %v397, 5
    %v399 = vand.u32 %v397, 31
    %v400 = vsub.s32 32, %v399
    %v401 = vshrl.u32 683565275, %v400
    %v402 = vshll.u32 683565275, %v399
    %v403 = vshrl.u32 2475754826, %v400
    %v404 = vor.u32 %v402, %v403
    %v405 = vshll.u32 2475754826, %v399
    %v406 = vshrl.u32 2131351028, %v400
    %v407 = vor.u32 %v405, %v406
    %v408 = vshll.u32 2131351028, %v399
    %v409 = vshrl.u32 2102212464, %v400
    %v410 = vor.u32 %v408, %v409
    %v411 = vshll.u32 2102212464, %v399
    %v412 = vshrl.u32 920167782, %v400
    %v413 = vor.u32 %v411, %v412
    %v414 = vshll.u32 920167782, %v399
    %v415 = vshrl.u32 1326507024, %v400
    %v416 = vor.u32 %v414, %v415
    %vm417 = vcmp.lt.s32.totalorder %v398, 1
    %vm418 = vcmp.lt.s32.totalorder %v398, 2
    %vm419 = vcmp.lt.s32.totalorder %v398, 3
    %vm420 = vcmp.lt.s32.totalorder %v398, 4
    %v421 = vsel %vm417, %v401, %v404
    %v422 = vsel %vm420, %v410, 2102212464
    %v423 = vsel %vm419, %v407, %v422
    %v424 = vsel %vm418, %v421, %v423
    %v425 = vsel %vm417, %v404, %v407
    %v426 = vsel %vm420, %v413, 920167782
    %v427 = vsel %vm419, %v410, %v426
    %v428 = vsel %vm418, %v425, %v427
    %v429 = vsel %vm417, %v407, %v410
    %v430 = vsel %vm420, %v416, 1326507024
    %v431 = vsel %vm419, %v413, %v430
    %v432 = vsel %vm418, %v429, %v431
    %v433 = vshll.u32 %v393, 8
    %v434 = vmul.u32.u64.compose %v433, %v432
    %v435 = vextract.low.u32 %v434
    %v436 = vextract.high.u32 %v434
    %v437 = vmul.u32.u64.compose %v433, %v428
    %v438 = vextract.low.u32 %v437
    %v439 = vextract.high.u32 %v437
    %v440 = vmul.u32 %v433, %v424
    %v441 = vadd.s32 %v436, %v438
    %vm442 = vc.u32 %v436, %v438
    %v443 = vadd.s32 %v439, 1
    %v444 = vsel %vm442, %v443, %v439
    %v445 = vadd.s32 %v440, %v444
    %v446 = vadd.s32 %v445, 536870912
    %v447 = vshrl.u32 %v446, 30
    %v448 = vshll.u32 %v447, 30
    %v449 = vsub.s32 %v445, %v448
    %vm450 = vcmp.lt.s32.totalorder %v449, 0
    %v451 = vsub.s32 0, %v449
    %v452 = vsel %vm450, %v451, %v449
    %v453 = vclz %v452
    %v454 = vsub.s32 %v453, 2
    %vm455 = vcmp.gt.s32.totalorder 0, %v454
    %v456 = vsel %vm455, 0, %v454
    %v457 = vsub.s32 32, %v456
    %v458 = vshll.u32 %v449, %v456
    %v459 = vshrl.u32 %v441, %v457
    %v460 = vor.u32 %v458, %v459
    %v461 = vsub.s32 4294967266, %v456
    %v462 = vadd.s32 %v461, 127
    %v463 = vshll.u32 %v462, 23
    %v464 = vor.u32 4788187, %v463
    %v465 = vand.u32 2147483647, %v464
    %v467 = vcvt.s32.f32 %v460
    %v468 = vmul.f32 %v467, %v465
    %v469 = vxor.u32 %v468, 2147483648
    %v470 = vsel %vm387, %v469, %v468
    %v471 = vsub.s32 4, %v447
    %v472 = vsel %vm387, %v471, %v447
    %v473 = vsel %vm386, %v73, %v470
    %v474 = vsel %vm386, 0, %v472
    %v475 = vcosq.f32.pop %v473
    %v476 = vsinq.f32.pop %v473
    %vm477 = vweird.f32 %v73
    %v478 = vand.u32 %v474, 3
    %vm479 = vcmp.lt.s32.totalorder %v478, 2
    %vm480 = vcmp.eq.s32.totalorder %v478, 0
    %v481 = vxor.u32 %v476, 2147483648
    %v482 = vsel %vm480, %v475, %v481
    %vm483 = vcmp.eq.s32.totalorder %v478, 2
    %v484 = vxor.u32 %v475, 2147483648
    %v485 = vsel %vm483, %v484, %v476
    %v486 = vsel %vm479, %v482, %v485
    %v487 = vsel %vm477, nan, %v486
    %490 = vrot.lane.b32.xlu0 %v384, 16
    %v491 = vpop.permute.xlu0 %490
    %492 = vrot.lane.b32.xlu0 %v487, 16
    %v493 = vpop.permute.xlu0 %492
    %vm496 = vcmask 130048
    %v497 = vsel %vm496, %v177, %v491
    %v498 = vsel %vm496, %v281, %v493
    %vm499 = vcmp.eq.f32.partialorder %v33, -1.0
    %vm500 = vcmp.eq.f32.partialorder %v34, -1.0
    %v501 = vsel %vm499, 1, 0
    %v502 = vsel %vm500, 1, 0
    %503 = vset.pattern.permute.xlu0 2
    %504 = vperm.xlu0 %503, %v501
    %v505 = vpop.permute.xlu0 %504
    %506 = vset.pattern.permute.xlu0 2
    %507 = vperm.xlu0 %506, %v502
    %v508 = vpop.permute.xlu0 %507
    %vm509 = vcmp.eq.s32.totalorder %v505, 1
    %vm510 = vcmp.eq.s32.totalorder %v508, 1
    %v511 = vsel %vm509, 0.0, %v497
    %v512 = vsel %vm510, 0.0, %v498
    %v513 = vld [vmem:[%s2] sm:$0x1]
    %v514 = vlaneseq
    %v515 = vshrl.u32 %v514, 7
    %v516 = vsub.s32 0, %v515
    %v517 = vrot.slane %v513, %v516
    %v518 = vsel %vm509, %v517, 0.0
    %v519 = vsel %vm510, %v517, 0.0
    %vm520 = vcmp.eq.f32.partialorder %v33, 0.0
    %vm521 = vcmp.eq.f32.partialorder %v34, 0.0
    %v522 = vld [vmem:[%s2 + $0x1] sm:$0x1]
    %v523 = vsel %vm520, 1, 0
    %v524 = vsel %vm521, 1, 0
    %525 = vset.pattern.permute.xlu0 2
    %526 = vperm.xlu0 %525, %v523
    %v527 = vpop.permute.xlu0 %526
    %528 = vset.pattern.permute.xlu0 2
    %529 = vperm.xlu0 %528, %v524
    %v530 = vpop.permute.xlu0 %529
    %vm531 = vcmp.eq.s32.totalorder %v527, 1
    %vm532 = vcmp.eq.s32.totalorder %v530, 1
    %v533 = vlaneseq
    %v534 = vshrl.u32 %v533, 7
    %v535 = vsub.s32 0, %v534
    %v536 = vrot.slane %v522, %v535
    %v537 = vsel %vm531, %v536, 0.0
    %v538 = vsel %vm532, %v536, 0.0
    %v539 = vadd.f32 %v518, %v537
    %v540 = vadd.f32 %v519, %v538
    %vm541 = vcmp.eq.f32.partialorder %v33, 1.0
    %vm542 = vcmp.eq.f32.partialorder %v34, 1.0
    %v543 = vld [vmem:[%s2 + $0x2] sm:$0x1]
    %v544 = vsel %vm541, 1, 0
    %v545 = vsel %vm542, 1, 0
    %546 = vset.pattern.permute.xlu0 2
    %547 = vperm.xlu0 %546, %v544
    %v548 = vpop.permute.xlu0 %547
    %549 = vset.pattern.permute.xlu0 2
    %550 = vperm.xlu0 %549, %v545
    %v551 = vpop.permute.xlu0 %550
    %vm552 = vcmp.eq.s32.totalorder %v548, 1
    %vm553 = vcmp.eq.s32.totalorder %v551, 1
    %v554 = vlaneseq
    %v555 = vshrl.u32 %v554, 7
    %v556 = vsub.s32 0, %v555
    %v557 = vrot.slane %v543, %v556
    %v558 = vsel %vm552, %v557, 0.0
    %v559 = vsel %vm553, %v557, 0.0
    %v560 = vadd.f32 %v539, %v558
    %v561 = vadd.f32 %v540, %v559
    %vm562 = vcmp.eq.f32.partialorder %v33, 2.0
    %vm563 = vcmp.eq.f32.partialorder %v34, 2.0
    %v564 = vld [vmem:[%s2 + $0x3] sm:$0x1]
    %v565 = vsel %vm562, 1, 0
    %v566 = vsel %vm563, 1, 0
    %567 = vset.pattern.permute.xlu0 2
    %568 = vperm.xlu0 %567, %v565
    %v569 = vpop.permute.xlu0 %568
    %570 = vset.pattern.permute.xlu0 2
    %571 = vperm.xlu0 %570, %v566
    %v572 = vpop.permute.xlu0 %571
    %vm573 = vcmp.eq.s32.totalorder %v569, 1
    %vm574 = vcmp.eq.s32.totalorder %v572, 1
    %v575 = vlaneseq
    %v576 = vshrl.u32 %v575, 7
    %v577 = vsub.s32 0, %v576
    %v578 = vrot.slane %v564, %v577
    %v579 = vsel %vm573, %v578, 0.0
    %v580 = vsel %vm574, %v578, 0.0
    %v581 = vadd.f32 %v560, %v579
    %v582 = vadd.f32 %v561, %v580
    %vm583 = vcmp.eq.f32.partialorder %v33, 3.0
    %vm584 = vcmp.eq.f32.partialorder %v34, 3.0
    %v585 = vld [vmem:[%s2 + $0x4] sm:$0x1]
    %v586 = vsel %vm583, 1, 0
    %v587 = vsel %vm584, 1, 0
    %588 = vset.pattern.permute.xlu0 2
    %589 = vperm.xlu0 %588, %v586
    %v590 = vpop.permute.xlu0 %589
    %591 = vset.pattern.permute.xlu0 2
    %592 = vperm.xlu0 %591, %v587
    %v593 = vpop.permute.xlu0 %592
    %vm594 = vcmp.eq.s32.totalorder %v590, 1
    %vm595 = vcmp.eq.s32.totalorder %v593, 1
    %v596 = vlaneseq
    %v597 = vshrl.u32 %v596, 7
    %v598 = vsub.s32 0, %v597
    %v599 = vrot.slane %v585, %v598
    %v600 = vsel %vm594, %v599, 0.0
    %v601 = vsel %vm595, %v599, 0.0
    %v602 = vadd.f32 %v581, %v600
    %v603 = vadd.f32 %v582, %v601
    %v604 = vadd.f32 %v511, %v602
    %v605 = vadd.f32 %v512, %v603
    %vm606 = vcmask 261120
    %607 = vst.msk [vmem:[#allocation2] sm:$0xff] %vm606, %v604
    %608 = vst.msk [vmem:[#allocation2 + $0x8] sm:$0xff] %vm606, %v605
    %v609 = vld [vmem:[%s7] sm:$0xf]
    %v610 = vld [vmem:[%s7] sm:$0xff]
    %v611 = vld [vmem:[%s7 + $0x8] sm:$0xff]
    %v612 = vld [vmem:[%s7 + $0x10] sm:$0xff]
    %v613 = vld [vmem:[%s7 + $0x18] sm:$0xff]
    %v614 = vld [vmem:[%s4] sm:$0xf]
    %v615 = vld [vmem:[%s3] sm:$0xff]
    %v616 = vld [vmem:[%s3 + $0x8] sm:$0xff]
    %v619 = vlaneseq
    %v620 = vshrl.u32 %v619, 7
    %v621 = vsub.s32 0, %v620
    %v622 = vrot.slane %v615, %v621
    %v623 = vlaneseq
    %v624 = vshrl.u32 %v623, 7
    %v625 = vsub.s32 4, %v624
    %v626 = vrot.slane %v615, %v625
    %v627 = vlaneseq
    %v628 = vshrl.u32 %v627, 7
    %v629 = vsub.s32 0, %v628
    %v630 = vrot.slane %v616, %v629
    %v631 = vlaneseq
    %v632 = vshrl.u32 %v631, 7
    %v633 = vsub.s32 4, %v632
    %v634 = vrot.slane %v616, %v633
    %v639 = vlaneseq
    %v640 = vshrl.u32 %v639, 7
    %v641 = vsub.s32 0, %v640
    %v642 = vrot.slane %v622, %v641
    %v643 = vlaneseq
    %v644 = vshrl.u32 %v643, 7
    %v645 = vsub.s32 0, %v644
    %v646 = vrot.slane %v626, %v645
    %v647 = vlaneseq
    %v648 = vshrl.u32 %v647, 7
    %v649 = vsub.s32 0, %v648
    %v650 = vrot.slane %v630, %v649
    %v651 = vlaneseq
    %v652 = vshrl.u32 %v651, 7
    %v653 = vsub.s32 0, %v652
    %v654 = vrot.slane %v634, %v653
    %656 = vset.pattern.permute.xlu0 0
    %657 = vperm.xlu0 %656, %v614
    %v658 = vpop.permute.xlu0 %657
    %v660 = vmul.f32 %v642, %v658
    %v661 = vmul.f32 %v646, %v658
    %v662 = vmul.f32 %v650, %v658
    %v663 = vmul.f32 %v654, %v658
    %v664 = vlaneseq
    %v665 = vshrl.u32 %v664, 7
    %v666 = vsub.s32 1, %v665
    %v667 = vrot.slane %v615, %v666
    %v668 = vlaneseq
    %v669 = vshrl.u32 %v668, 7
    %v670 = vsub.s32 5, %v669
    %v671 = vrot.slane %v615, %v670
    %v672 = vlaneseq
    %v673 = vshrl.u32 %v672, 7
    %v674 = vsub.s32 1, %v673
    %v675 = vrot.slane %v616, %v674
    %v676 = vlaneseq
    %v677 = vshrl.u32 %v676, 7
    %v678 = vsub.s32 5, %v677
    %v679 = vrot.slane %v616, %v678
    %v684 = vlaneseq
    %v685 = vshrl.u32 %v684, 7
    %v686 = vsub.s32 1, %v685
    %v687 = vrot.slane %v667, %v686
    %v688 = vlaneseq
    %v689 = vshrl.u32 %v688, 7
    %v690 = vsub.s32 1, %v689
    %v691 = vrot.slane %v671, %v690
    %v692 = vlaneseq
    %v693 = vshrl.u32 %v692, 7
    %v694 = vsub.s32 1, %v693
    %v695 = vrot.slane %v675, %v694
    %v696 = vlaneseq
    %v697 = vshrl.u32 %v696, 7
    %v698 = vsub.s32 1, %v697
    %v699 = vrot.slane %v679, %v698
    %700 = vset.pattern.permute.xlu0 1
    %701 = vperm.xlu0 %700, %v614
    %v702 = vpop.permute.xlu0 %701
    %v704 = vmul.f32 %v687, %v702
    %v705 = vmul.f32 %v691, %v702
    %v706 = vmul.f32 %v695, %v702
    %v707 = vmul.f32 %v699, %v702
    %v708 = vadd.f32 %v660, %v704
    %v709 = vadd.f32 %v661, %v705
    %v710 = vadd.f32 %v662, %v706
    %v711 = vadd.f32 %v663, %v707
    %v712 = vlaneseq
    %v713 = vshrl.u32 %v712, 7
    %v714 = vsub.s32 2, %v713
    %v715 = vrot.slane %v615, %v714
    %v716 = vlaneseq
    %v717 = vshrl.u32 %v716, 7
    %v718 = vsub.s32 6, %v717
    %v719 = vrot.slane %v615, %v718
    %v720 = vlaneseq
    %v721 = vshrl.u32 %v720, 7
    %v722 = vsub.s32 2, %v721
    %v723 = vrot.slane %v616, %v722
    %v724 = vlaneseq
    %v725 = vshrl.u32 %v724, 7
    %v726 = vsub.s32 6, %v725
    %v727 = vrot.slane %v616, %v726
    %v732 = vlaneseq
    %v733 = vshrl.u32 %v732, 7
    %v734 = vsub.s32 2, %v733
    %v735 = vrot.slane %v715, %v734
    %v736 = vlaneseq
    %v737 = vshrl.u32 %v736, 7
    %v738 = vsub.s32 2, %v737
    %v739 = vrot.slane %v719, %v738
    %v740 = vlaneseq
    %v741 = vshrl.u32 %v740, 7
    %v742 = vsub.s32 2, %v741
    %v743 = vrot.slane %v723, %v742
    %v744 = vlaneseq
    %v745 = vshrl.u32 %v744, 7
    %v746 = vsub.s32 2, %v745
    %v747 = vrot.slane %v727, %v746
    %748 = vset.pattern.permute.xlu0 2
    %749 = vperm.xlu0 %748, %v614
    %v750 = vpop.permute.xlu0 %749
    %v752 = vmul.f32 %v735, %v750
    %v753 = vmul.f32 %v739, %v750
    %v754 = vmul.f32 %v743, %v750
    %v755 = vmul.f32 %v747, %v750
    %v756 = vadd.f32 %v708, %v752
    %v757 = vadd.f32 %v709, %v753
    %v758 = vadd.f32 %v710, %v754
    %v759 = vadd.f32 %v711, %v755
    %v760 = vlaneseq
    %v761 = vshrl.u32 %v760, 7
    %v762 = vsub.s32 3, %v761
    %v763 = vrot.slane %v615, %v762
    %v764 = vlaneseq
    %v765 = vshrl.u32 %v764, 7
    %v766 = vsub.s32 7, %v765
    %v767 = vrot.slane %v615, %v766
    %v768 = vlaneseq
    %v769 = vshrl.u32 %v768, 7
    %v770 = vsub.s32 3, %v769
    %v771 = vrot.slane %v616, %v770
    %v772 = vlaneseq
    %v773 = vshrl.u32 %v772, 7
    %v774 = vsub.s32 7, %v773
    %v775 = vrot.slane %v616, %v774
    %v780 = vlaneseq
    %v781 = vshrl.u32 %v780, 7
    %v782 = vsub.s32 3, %v781
    %v783 = vrot.slane %v763, %v782
    %v784 = vlaneseq
    %v785 = vshrl.u32 %v784, 7
    %v786 = vsub.s32 3, %v785
    %v787 = vrot.slane %v767, %v786
    %v788 = vlaneseq
    %v789 = vshrl.u32 %v788, 7
    %v790 = vsub.s32 3, %v789
    %v791 = vrot.slane %v771, %v790
    %v792 = vlaneseq
    %v793 = vshrl.u32 %v792, 7
    %v794 = vsub.s32 3, %v793
    %v795 = vrot.slane %v775, %v794
    %796 = vset.pattern.permute.xlu0 3
    %797 = vperm.xlu0 %796, %v614
    %v798 = vpop.permute.xlu0 %797
    %v800 = vmul.f32 %v783, %v798
    %v801 = vmul.f32 %v787, %v798
    %v802 = vmul.f32 %v791, %v798
    %v803 = vmul.f32 %v795, %v798
    %v804 = vadd.f32 %v756, %v800
    %v805 = vadd.f32 %v757, %v801
    %v806 = vadd.f32 %v758, %v802
    %v807 = vadd.f32 %v759, %v803
    %809 = vset.pattern.permute.xlu0 0
    %810 = vperm.xlu0 %809, %v609
    %v811 = vpop.permute.xlu0 %810
    %v813 = vadd.f32 %v804, %v811
    %v814 = vadd.f32 %v805, %v811
    %v815 = vadd.f32 %v806, %v811
    %v816 = vadd.f32 %v807, %v811
    %vm817 = vcmask 1043456
    %v818 = vsel %vm817, %v813, 0.0
    %v819 = vrot.slane %v818, 4
    %v820 = vadd.f32 %v818, %v819
    %v821 = vrot.slane %v820, 2
    %v822 = vadd.f32 %v820, %v821
    %v823 = vrot.slane %v822, 1
    %v824 = vadd.f32 %v822, %v823
    %v825 = vsel %vm817, %v814, 0.0
    %v826 = vrot.slane %v825, 4
    %v827 = vadd.f32 %v825, %v826
    %v828 = vrot.slane %v827, 2
    %v829 = vadd.f32 %v827, %v828
    %v830 = vrot.slane %v829, 1
    %v831 = vadd.f32 %v829, %v830
    %v832 = vsel %vm817, %v815, 0.0
    %v833 = vrot.slane %v832, 4
    %v834 = vadd.f32 %v832, %v833
    %v835 = vrot.slane %v834, 2
    %v836 = vadd.f32 %v834, %v835
    %v837 = vrot.slane %v836, 1
    %v838 = vadd.f32 %v836, %v837
    %v839 = vsel %vm817, %v816, 0.0
    %v840 = vrot.slane %v839, 4
    %v841 = vadd.f32 %v839, %v840
    %v842 = vrot.slane %v841, 2
    %v843 = vadd.f32 %v841, %v842
    %v844 = vrot.slane %v843, 1
    %v845 = vadd.f32 %v843, %v844
    %v846 = vrcp.pop 4.0
    %v847 = vmul.f32 %v824, %v846
    %v848 = vmul.f32 %v831, %v846
    %v849 = vmul.f32 %v838, %v846
    %v850 = vmul.f32 %v845, %v846
    %v851 = vsub.f32 %v813, %v847
    %v852 = vsub.f32 %v814, %v848
    %v853 = vsub.f32 %v815, %v849
    %v854 = vsub.f32 %v816, %v850
    %v855 = vmul.f32 %v851, %v851
    %v856 = vmul.f32 %v852, %v852
    %v857 = vmul.f32 %v853, %v853
    %v858 = vmul.f32 %v854, %v854
    %v859 = vsel %vm817, %v855, 0.0
    %v860 = vrot.slane %v859, 4
    %v861 = vadd.f32 %v859, %v860
    %v862 = vrot.slane %v861, 2
    %v863 = vadd.f32 %v861, %v862
    %v864 = vrot.slane %v863, 1
    %v865 = vadd.f32 %v863, %v864
    %v866 = vsel %vm817, %v856, 0.0
    %v867 = vrot.slane %v866, 4
    %v868 = vadd.f32 %v866, %v867
    %v869 = vrot.slane %v868, 2
    %v870 = vadd.f32 %v868, %v869
    %v871 = vrot.slane %v870, 1
    %v872 = vadd.f32 %v870, %v871
    %v873 = vsel %vm817, %v857, 0.0
    %v874 = vrot.slane %v873, 4
    %v875 = vadd.f32 %v873, %v874
    %v876 = vrot.slane %v875, 2
    %v877 = vadd.f32 %v875, %v876
    %v878 = vrot.slane %v877, 1
    %v879 = vadd.f32 %v877, %v878
    %v880 = vsel %vm817, %v858, 0.0
    %v881 = vrot.slane %v880, 4
    %v882 = vadd.f32 %v880, %v881
    %v883 = vrot.slane %v882, 2
    %v884 = vadd.f32 %v882, %v883
    %v885 = vrot.slane %v884, 1
    %v886 = vadd.f32 %v884, %v885
    %v887 = vmul.f32 %v865, %v846
    %v888 = vmul.f32 %v872, %v846
    %v889 = vmul.f32 %v879, %v846
    %v890 = vmul.f32 %v886, %v846
    %v891 = vadd.f32 %v887, 1e-06
    %v892 = vadd.f32 %v888, 1e-06
    %v893 = vadd.f32 %v889, 1e-06
    %v894 = vadd.f32 %v890, 1e-06
    %v895 = vrsqrt.pop %v891
    %v896 = vrsqrt.pop %v892
    %v897 = vrsqrt.pop %v893
    %v898 = vrsqrt.pop %v894
    %v899 = vmul.f32 %v851, %v895
    %v900 = vmul.f32 %v852, %v896
    %v901 = vmul.f32 %v853, %v897
    %v902 = vmul.f32 %v854, %v898
    %903 = vset.pattern.permute.xlu0 1
    %904 = vperm.xlu0 %903, %v609
    %v905 = vpop.permute.xlu0 %904
    %v907 = vmul.f32 %v899, %v905
    %v908 = vmul.f32 %v900, %v905
    %v909 = vmul.f32 %v901, %v905
    %v910 = vmul.f32 %v902, %v905
    %911 = vset.pattern.permute.xlu0 2
    %912 = vperm.xlu0 %911, %v609
    %v913 = vpop.permute.xlu0 %912
    %v915 = vadd.f32 %v907, %v913
    %v916 = vadd.f32 %v908, %v913
    %v917 = vadd.f32 %v909, %v913
    %v918 = vadd.f32 %v910, %v913
    %v919 = vmul.f32 %v915, 0.5
    %v920 = vmul.f32 %v916, 0.5
    %v921 = vmul.f32 %v917, 0.5
    %v922 = vmul.f32 %v918, 0.5
    %v923 = vmul.f32 %v915, 0.70710677
    %v924 = vmul.f32 %v916, 0.70710677
    %v925 = vmul.f32 %v917, 0.70710677
    %v926 = vmul.f32 %v918, 0.70710677
    %v927 = verf.f32.pop %v923
    %v928 = verf.f32.pop %v924
    %v929 = verf.f32.pop %v925
    %v930 = verf.f32.pop %v926
    %v931 = vadd.f32 %v927, 1.0
    %v932 = vadd.f32 %v928, 1.0
    %v933 = vadd.f32 %v929, 1.0
    %v934 = vadd.f32 %v930, 1.0
    %v935 = vmul.f32 %v919, %v931
    %v936 = vmul.f32 %v920, %v932
    %v937 = vmul.f32 %v921, %v933
    %v938 = vmul.f32 %v922, %v934
    %v939 = vld [vmem:[%s5] sm:$0xff]
    %v940 = vld [vmem:[%s5 + $0x8] sm:$0xff]
    %s941 = scalar_lea.vmem %s3, 16
    %v942 = vld [vmem:[%s941] sm:$0xff]
    %v943 = vld [vmem:[%s941 + $0x8] sm:$0xff]
    %v946 = vlaneseq
    %v947 = vshrl.u32 %v946, 7
    %v948 = vsub.s32 0, %v947
    %v949 = vrot.slane %v942, %v948
    %v950 = vlaneseq
    %v951 = vshrl.u32 %v950, 7
    %v952 = vsub.s32 4, %v951
    %v953 = vrot.slane %v942, %v952
    %v954 = vlaneseq
    %v955 = vshrl.u32 %v954, 7
    %v956 = vsub.s32 0, %v955
    %v957 = vrot.slane %v943, %v956
    %v958 = vlaneseq
    %v959 = vshrl.u32 %v958, 7
    %v960 = vsub.s32 4, %v959
    %v961 = vrot.slane %v943, %v960
    %v966 = vlaneseq
    %v967 = vshrl.u32 %v966, 7
    %v968 = vsub.s32 0, %v967
    %v969 = vrot.slane %v949, %v968
    %v970 = vlaneseq
    %v971 = vshrl.u32 %v970, 7
    %v972 = vsub.s32 0, %v971
    %v973 = vrot.slane %v953, %v972
    %v974 = vlaneseq
    %v975 = vshrl.u32 %v974, 7
    %v976 = vsub.s32 0, %v975
    %v977 = vrot.slane %v957, %v976
    %v978 = vlaneseq
    %v979 = vshrl.u32 %v978, 7
    %v980 = vsub.s32 0, %v979
    %v981 = vrot.slane %v961, %v980
    %v982 = vmul.f32 %v969, %v658
    %v983 = vmul.f32 %v973, %v658
    %v984 = vmul.f32 %v977, %v658
    %v985 = vmul.f32 %v981, %v658
    %v986 = vlaneseq
    %v987 = vshrl.u32 %v986, 7
    %v988 = vsub.s32 1, %v987
    %v989 = vrot.slane %v942, %v988
    %v990 = vlaneseq
    %v991 = vshrl.u32 %v990, 7
    %v992 = vsub.s32 5, %v991
    %v993 = vrot.slane %v942, %v992
    %v994 = vlaneseq
    %v995 = vshrl.u32 %v994, 7
    %v996 = vsub.s32 1, %v995
    %v997 = vrot.slane %v943, %v996
    %v998 = vlaneseq
    %v999 = vshrl.u32 %v998, 7
    %v1000 = vsub.s32 5, %v999
    %v1001 = vrot.slane %v943, %v1000
    %v1006 = vlaneseq
    %v1007 = vshrl.u32 %v1006, 7
    %v1008 = vsub.s32 1, %v1007
    %v1009 = vrot.slane %v989, %v1008
    %v1010 = vlaneseq
    %v1011 = vshrl.u32 %v1010, 7
    %v1012 = vsub.s32 1, %v1011
    %v1013 = vrot.slane %v993, %v1012
    %v1014 = vlaneseq
    %v1015 = vshrl.u32 %v1014, 7
    %v1016 = vsub.s32 1, %v1015
    %v1017 = vrot.slane %v997, %v1016
    %v1018 = vlaneseq
    %v1019 = vshrl.u32 %v1018, 7
    %v1020 = vsub.s32 1, %v1019
    %v1021 = vrot.slane %v1001, %v1020
    %v1022 = vmul.f32 %v1009, %v702
    %v1023 = vmul.f32 %v1013, %v702
    %v1024 = vmul.f32 %v1017, %v702
    %v1025 = vmul.f32 %v1021, %v702
    %v1026 = vadd.f32 %v982, %v1022
    %v1027 = vadd.f32 %v983, %v1023
    %v1028 = vadd.f32 %v984, %v1024
    %v1029 = vadd.f32 %v985, %v1025
    %v1030 = vlaneseq
    %v1031 = vshrl.u32 %v1030, 7
    %v1032 = vsub.s32 2, %v1031
    %v1033 = vrot.slane %v942, %v1032
    %v1034 = vlaneseq
    %v1035 = vshrl.u32 %v1034, 7
    %v1036 = vsub.s32 6, %v1035
    %v1037 = vrot.slane %v942, %v1036
    %v1038 = vlaneseq
    %v1039 = vshrl.u32 %v1038, 7
    %v1040 = vsub.s32 2, %v1039
    %v1041 = vrot.slane %v943, %v1040
    %v1042 = vlaneseq
    %v1043 = vshrl.u32 %v1042, 7
    %v1044 = vsub.s32 6, %v1043
    %v1045 = vrot.slane %v943, %v1044
    %v1050 = vlaneseq
    %v1051 = vshrl.u32 %v1050, 7
    %v1052 = vsub.s32 2, %v1051
    %v1053 = vrot.slane %v1033, %v1052
    %v1054 = vlaneseq
    %v1055 = vshrl.u32 %v1054, 7
    %v1056 = vsub.s32 2, %v1055
    %v1057 = vrot.slane %v1037, %v1056
    %v1058 = vlaneseq
    %v1059 = vshrl.u32 %v1058, 7
    %v1060 = vsub.s32 2, %v1059
    %v1061 = vrot.slane %v1041, %v1060
    %v1062 = vlaneseq
    %v1063 = vshrl.u32 %v1062, 7
    %v1064 = vsub.s32 2, %v1063
    %v1065 = vrot.slane %v1045, %v1064
    %v1066 = vmul.f32 %v1053, %v750
    %v1067 = vmul.f32 %v1057, %v750
    %v1068 = vmul.f32 %v1061, %v750
    %v1069 = vmul.f32 %v1065, %v750
    %v1070 = vadd.f32 %v1026, %v1066
    %v1071 = vadd.f32 %v1027, %v1067
    %v1072 = vadd.f32 %v1028, %v1068
    %v1073 = vadd.f32 %v1029, %v1069
    %v1074 = vlaneseq
    %v1075 = vshrl.u32 %v1074, 7
    %v1076 = vsub.s32 3, %v1075
    %v1077 = vrot.slane %v942, %v1076
    %v1078 = vlaneseq
    %v1079 = vshrl.u32 %v1078, 7
    %v1080 = vsub.s32 7, %v1079
    %v1081 = vrot.slane %v942, %v1080
    %v1082 = vlaneseq
    %v1083 = vshrl.u32 %v1082, 7
    %v1084 = vsub.s32 3, %v1083
    %v1085 = vrot.slane %v943, %v1084
    %v1086 = vlaneseq
    %v1087 = vshrl.u32 %v1086, 7
    %v1088 = vsub.s32 7, %v1087
    %v1089 = vrot.slane %v943, %v1088
    %v1094 = vlaneseq
    %v1095 = vshrl.u32 %v1094, 7
    %v1096 = vsub.s32 3, %v1095
    %v1097 = vrot.slane %v1077, %v1096
    %v1098 = vlaneseq
    %v1099 = vshrl.u32 %v1098, 7
    %v1100 = vsub.s32 3, %v1099
    %v1101 = vrot.slane %v1081, %v1100
    %v1102 = vlaneseq
    %v1103 = vshrl.u32 %v1102, 7
    %v1104 = vsub.s32 3, %v1103
    %v1105 = vrot.slane %v1085, %v1104
    %v1106 = vlaneseq
    %v1107 = vshrl.u32 %v1106, 7
    %v1108 = vsub.s32 3, %v1107
    %v1109 = vrot.slane %v1089, %v1108
    %v1110 = vmul.f32 %v1097, %v798
    %v1111 = vmul.f32 %v1101, %v798
    %v1112 = vmul.f32 %v1105, %v798
    %v1113 = vmul.f32 %v1109, %v798
    %v1114 = vadd.f32 %v1070, %v1110
    %v1115 = vadd.f32 %v1071, %v1111
    %v1116 = vadd.f32 %v1072, %v1112
    %v1117 = vadd.f32 %v1073, %v1113
    %v1118 = vadd.f32 %v1114, %v811
    %v1119 = vadd.f32 %v1115, %v811
    %v1120 = vadd.f32 %v1116, %v811
    %v1121 = vadd.f32 %v1117, %v811
    %v1122 = vsel %vm817, %v1118, 0.0
    %v1123 = vrot.slane %v1122, 4
    %v1124 = vadd.f32 %v1122, %v1123
    %v1125 = vrot.slane %v1124, 2
    %v1126 = vadd.f32 %v1124, %v1125
    %v1127 = vrot.slane %v1126, 1
    %v1128 = vadd.f32 %v1126, %v1127
    %v1129 = vsel %vm817, %v1119, 0.0
    %v1130 = vrot.slane %v1129, 4
    %v1131 = vadd.f32 %v1129, %v1130
    %v1132 = vrot.slane %v1131, 2
    %v1133 = vadd.f32 %v1131, %v1132
    %v1134 = vrot.slane %v1133, 1
    %v1135 = vadd.f32 %v1133, %v1134
    %v1136 = vsel %vm817, %v1120, 0.0
    %v1137 = vrot.slane %v1136, 4
    %v1138 = vadd.f32 %v1136, %v1137
    %v1139 = vrot.slane %v1138, 2
    %v1140 = vadd.f32 %v1138, %v1139
    %v1141 = vrot.slane %v1140, 1
    %v1142 = vadd.f32 %v1140, %v1141
    %v1143 = vsel %vm817, %v1121, 0.0
    %v1144 = vrot.slane %v1143, 4
    %v1145 = vadd.f32 %v1143, %v1144
    %v1146 = vrot.slane %v1145, 2
    %v1147 = vadd.f32 %v1145, %v1146
    %v1148 = vrot.slane %v1147, 1
    %v1149 = vadd.f32 %v1147, %v1148
    %v1150 = vmul.f32 %v1128, %v846
    %v1151 = vmul.f32 %v1135, %v846
    %v1152 = vmul.f32 %v1142, %v846
    %v1153 = vmul.f32 %v1149, %v846
    %v1154 = vsub.f32 %v1118, %v1150
    %v1155 = vsub.f32 %v1119, %v1151
    %v1156 = vsub.f32 %v1120, %v1152
    %v1157 = vsub.f32 %v1121, %v1153
    %v1158 = vmul.f32 %v1154, %v1154
    %v1159 = vmul.f32 %v1155, %v1155
    %v1160 = vmul.f32 %v1156, %v1156
    %v1161 = vmul.f32 %v1157, %v1157
    %v1162 = vsel %vm817, %v1158, 0.0
    %v1163 = vrot.slane %v1162, 4
    %v1164 = vadd.f32 %v1162, %v1163
    %v1165 = vrot.slane %v1164, 2
    %v1166 = vadd.f32 %v1164, %v1165
    %v1167 = vrot.slane %v1166, 1
    %v1168 = vadd.f32 %v1166, %v1167
    %v1169 = vsel %vm817, %v1159, 0.0
    %v1170 = vrot.slane %v1169, 4
    %v1171 = vadd.f32 %v1169, %v1170
    %v1172 = vrot.slane %v1171, 2
    %v1173 = vadd.f32 %v1171, %v1172
    %v1174 = vrot.slane %v1173, 1
    %v1175 = vadd.f32 %v1173, %v1174
    %v1176 = vsel %vm817, %v1160, 0.0
    %v1177 = vrot.slane %v1176, 4
    %v1178 = vadd.f32 %v1176, %v1177
    %v1179 = vrot.slane %v1178, 2
    %v1180 = vadd.f32 %v1178, %v1179
    %v1181 = vrot.slane %v1180, 1
    %v1182 = vadd.f32 %v1180, %v1181
    %v1183 = vsel %vm817, %v1161, 0.0
    %v1184 = vrot.slane %v1183, 4
    %v1185 = vadd.f32 %v1183, %v1184
    %v1186 = vrot.slane %v1185, 2
    %v1187 = vadd.f32 %v1185, %v1186
    %v1188 = vrot.slane %v1187, 1
    %v1189 = vadd.f32 %v1187, %v1188
    %v1190 = vmul.f32 %v1168, %v846
    %v1191 = vmul.f32 %v1175, %v846
    %v1192 = vmul.f32 %v1182, %v846
    %v1193 = vmul.f32 %v1189, %v846
    %v1194 = vadd.f32 %v1190, 1e-06
    %v1195 = vadd.f32 %v1191, 1e-06
    %v1196 = vadd.f32 %v1192, 1e-06
    %v1197 = vadd.f32 %v1193, 1e-06
    %v1198 = vrsqrt.pop %v1194
    %v1199 = vrsqrt.pop %v1195
    %v1200 = vrsqrt.pop %v1196
    %v1201 = vrsqrt.pop %v1197
    %v1202 = vmul.f32 %v1154, %v1198
    %v1203 = vmul.f32 %v1155, %v1199
    %v1204 = vmul.f32 %v1156, %v1200
    %v1205 = vmul.f32 %v1157, %v1201
    %v1206 = vmul.f32 %v1202, %v905
    %v1207 = vmul.f32 %v1203, %v905
    %v1208 = vmul.f32 %v1204, %v905
    %v1209 = vmul.f32 %v1205, %v905
    %v1210 = vadd.f32 %v1206, %v913
    %v1211 = vadd.f32 %v1207, %v913
    %v1212 = vadd.f32 %v1208, %v913
    %v1213 = vadd.f32 %v1209, %v913
    %v1214 = vmul.f32 %v1210, 0.5
    %v1215 = vmul.f32 %v1211, 0.5
    %v1216 = vmul.f32 %v1212, 0.5
    %v1217 = vmul.f32 %v1213, 0.5
    %v1218 = vmul.f32 %v1210, 0.70710677
    %v1219 = vmul.f32 %v1211, 0.70710677
    %v1220 = vmul.f32 %v1212, 0.70710677
    %v1221 = vmul.f32 %v1213, 0.70710677
    %v1222 = verf.f32.pop %v1218
    %v1223 = verf.f32.pop %v1219
    %v1224 = verf.f32.pop %v1220
    %v1225 = verf.f32.pop %v1221
    %v1226 = vadd.f32 %v1222, 1.0
    %v1227 = vadd.f32 %v1223, 1.0
    %v1228 = vadd.f32 %v1224, 1.0
    %v1229 = vadd.f32 %v1225, 1.0
    %v1230 = vmul.f32 %v1214, %v1226
    %v1231 = vmul.f32 %v1215, %v1227
    %v1232 = vmul.f32 %v1216, %v1228
    %v1233 = vmul.f32 %v1217, %v1229
    %s1234 = scalar_lea.vmem %s5, 16
    %v1235 = vld [vmem:[%s1234] sm:$0xff]
    %v1236 = vld [vmem:[%s1234 + $0x8] sm:$0xff]
    %vm1237 = vcmask 31744
    %v1239 = vsel %vm1237, %v1235, 0
    %v1242 = vsel %vm1237, %v1236, 0
    %v1245 = vsel %vm817, %v1230, 0
    %v1248 = vsel %vm817, %v1231, 0
    %v1251 = vsel %vm817, %v1232, 0
    %v1254 = vsel %vm817, %v1233, 0
    %1256 = vmatprep.subr.mxu0 %v1248
    %1257 = vmatpush1.msra.mxu0 %v1245
    %1258 = vmatprep.subr.mxu0 0.0
    %1259 = vmatpush1.msra.mxu0 0.0
    %1260 = vmatprep.subr.mxu0 0.0
    %1261 = vmatpush1.msra.mxu0 0.0
    %1262 = vmatprep.subr.mxu0 0.0
    %1263 = vmatpush1.msra.mxu0 0.0
    %1264 = vmatprep.subr.mxu0 0.0
    %1265 = vmatpush1.msra.mxu0 0.0
    %1266 = vmatprep.subr.mxu0 0.0
    %1267 = vmatpush1.msra.mxu0 0.0
    %1268 = vmatprep.subr.mxu0 0.0
    %1269 = vmatpush1.msra.mxu0 0.0
    %1270 = vmatprep.subr.mxu0 0.0
    %1271 = vmatpush1.msra.mxu0 0.0
    %1272 = vmatprep.subr.mxu0 0.0
    %1273 = vmatpush1.msra.mxu0 0.0
    %1274 = vmatprep.subr.mxu0 0.0
    %1275 = vmatpush1.msra.mxu0 0.0
    %1276 = vmatprep.subr.mxu0 0.0
    %1277 = vmatpush1.msra.mxu0 0.0
    %1278 = vmatprep.subr.mxu0 0.0
    %1279 = vmatpush1.msra.mxu0 0.0
    %1280 = vmatprep.subr.mxu0 0.0
    %1281 = vmatpush1.msra.mxu0 0.0
    %1282 = vmatprep.subr.mxu0 0.0
    %1283 = vmatpush1.msra.mxu0 0.0
    %1284 = vmatprep.subr.mxu0 0.0
    %1285 = vmatpush1.msra.mxu0 0.0
    %1286 = vmatprep.subr.mxu0 0.0
    %1287 = vmatpush1.msra.mxu0 0.0
    %1288 = vmatprep.subr.mxu0 0.0
    %1289 = vmatpush1.msra.mxu0 0.0
    %1290 = vmatprep.subr.mxu0 0.0
    %1291 = vmatpush1.msra.mxu0 0.0
    %1292 = vmatprep.subr.mxu0 0.0
    %1293 = vmatpush1.msra.mxu0 0.0
    %1294 = vmatprep.subr.mxu0 0.0
    %1295 = vmatpush1.msra.mxu0 0.0
    %1296 = vmatprep.subr.mxu0 0.0
    %1297 = vmatpush1.msra.mxu0 0.0
    %1298 = vmatprep.subr.mxu0 0.0
    %1299 = vmatpush1.msra.mxu0 0.0
    %1300 = vmatprep.subr.mxu0 0.0
    %1301 = vmatpush1.msra.mxu0 0.0
    %1302 = vmatprep.subr.mxu0 0.0
    %1303 = vmatpush1.msra.mxu0 0.0
    %1304 = vmatprep.subr.mxu0 0.0
    %1305 = vmatpush1.msra.mxu0 0.0
    %1306 = vmatprep.subr.mxu0 0.0
    %1307 = vmatpush1.msra.mxu0 0.0
    %1308 = vmatprep.subr.mxu0 0.0
    %1309 = vmatpush1.msra.mxu0 0.0
    %1310 = vmatprep.subr.mxu0 0.0
    %1311 = vmatpush1.msra.mxu0 0.0
    %1312 = vmatprep.subr.mxu0 0.0
    %1313 = vmatpush1.msra.mxu0 0.0
    %1314 = vmatprep.subr.mxu0 0.0
    %1315 = vmatpush1.msra.mxu0 0.0
    %1316 = vmatprep.subr.mxu0 0.0
    %1317 = vmatpush1.msra.mxu0 0.0
    %1318 = vmatprep.subr.mxu0 0.0
    %1319 = vmatpush1.msra.mxu0 0.0
    %1320 = vmatprep.mubr.f32.mxu0 0.0
    %1321 = vmatmul.mubr.f32.gmra.mrb[0].mxu0 %v1239
    %v1322 = vpop.f32.mrb[0].mxu0
    %v1323 = vadd.f32 0.0, %v1322
    %v1324 = vpop.f32.mrb[0].mxu0
    %v1325 = vadd.f32 0.0, %v1324
    %1326 = vmatprep.mubr.f32.mxu0 0.0
    %1327 = vmatmul.mubr.f32.gmra.mrb[0].mxu0 %v1242
    %v1328 = vpop.f32.mrb[0].mxu0
    %v1329 = vadd.f32 0.0, %v1328
    %v1330 = vpop.f32.mrb[0].mxu0
    %v1331 = vadd.f32 0.0, %v1330
    %1332 = vdwg.mxu0
    %1333 = vmatprep.subr.mxu0 %v1254
    %1334 = vmatpush1.msra.mxu0 %v1251
    %1335 = vmatprep.subr.mxu0 0.0
    %1336 = vmatpush1.msra.mxu0 0.0
    %1337 = vmatprep.subr.mxu0 0.0
    %1338 = vmatpush1.msra.mxu0 0.0
    %1339 = vmatprep.subr.mxu0 0.0
    %1340 = vmatpush1.msra.mxu0 0.0
    %1341 = vmatprep.subr.mxu0 0.0
    %1342 = vmatpush1.msra.mxu0 0.0
    %1343 = vmatprep.subr.mxu0 0.0
    %1344 = vmatpush1.msra.mxu0 0.0
    %1345 = vmatprep.subr.mxu0 0.0
    %1346 = vmatpush1.msra.mxu0 0.0
    %1347 = vmatprep.subr.mxu0 0.0
    %1348 = vmatpush1.msra.mxu0 0.0
    %1349 = vmatprep.subr.mxu0 0.0
    %1350 = vmatpush1.msra.mxu0 0.0
    %1351 = vmatprep.subr.mxu0 0.0
    %1352 = vmatpush1.msra.mxu0 0.0
    %1353 = vmatprep.subr.mxu0 0.0
    %1354 = vmatpush1.msra.mxu0 0.0
    %1355 = vmatprep.subr.mxu0 0.0
    %1356 = vmatpush1.msra.mxu0 0.0
    %1357 = vmatprep.subr.mxu0 0.0
    %1358 = vmatpush1.msra.mxu0 0.0
    %1359 = vmatprep.subr.mxu0 0.0
    %1360 = vmatpush1.msra.mxu0 0.0
    %1361 = vmatprep.subr.mxu0 0.0
    %1362 = vmatpush1.msra.mxu0 0.0
    %1363 = vmatprep.subr.mxu0 0.0
    %1364 = vmatpush1.msra.mxu0 0.0
    %1365 = vmatprep.subr.mxu0 0.0
    %1366 = vmatpush1.msra.mxu0 0.0
    %1367 = vmatprep.subr.mxu0 0.0
    %1368 = vmatpush1.msra.mxu0 0.0
    %1369 = vmatprep.subr.mxu0 0.0
    %1370 = vmatpush1.msra.mxu0 0.0
    %1371 = vmatprep.subr.mxu0 0.0
    %1372 = vmatpush1.msra.mxu0 0.0
    %1373 = vmatprep.subr.mxu0 0.0
    %1374 = vmatpush1.msra.mxu0 0.0
    %1375 = vmatprep.subr.mxu0 0.0
    %1376 = vmatpush1.msra.mxu0 0.0
    %1377 = vmatprep.subr.mxu0 0.0
    %1378 = vmatpush1.msra.mxu0 0.0
    %1379 = vmatprep.subr.mxu0 0.0
    %1380 = vmatpush1.msra.mxu0 0.0
    %1381 = vmatprep.subr.mxu0 0.0
    %1382 = vmatpush1.msra.mxu0 0.0
    %1383 = vmatprep.subr.mxu0 0.0
    %1384 = vmatpush1.msra.mxu0 0.0
    %1385 = vmatprep.subr.mxu0 0.0
    %1386 = vmatpush1.msra.mxu0 0.0
    %1387 = vmatprep.subr.mxu0 0.0
    %1388 = vmatpush1.msra.mxu0 0.0
    %1389 = vmatprep.subr.mxu0 0.0
    %1390 = vmatpush1.msra.mxu0 0.0
    %1391 = vmatprep.subr.mxu0 0.0
    %1392 = vmatpush1.msra.mxu0 0.0
    %1393 = vmatprep.subr.mxu0 0.0
    %1394 = vmatpush1.msra.mxu0 0.0
    %1395 = vmatprep.subr.mxu0 0.0
    %1396 = vmatpush1.msra.mxu0 0.0
    %1397 = vmatprep.mubr.f32.mxu0 0.0
    %1398 = vmatmul.mubr.f32.gmra.mrb[0].mxu0 %v1239
    %v1399 = vpop.f32.mrb[0].mxu0
    %v1400 = vadd.f32 0.0, %v1399
    %v1401 = vpop.f32.mrb[0].mxu0
    %v1402 = vadd.f32 0.0, %v1401
    %1403 = vmatprep.mubr.f32.mxu0 0.0
    %1404 = vmatmul.mubr.f32.gmra.mrb[0].mxu0 %v1242
    %v1405 = vpop.f32.mrb[0].mxu0
    %v1406 = vadd.f32 0.0, %v1405
    %v1407 = vpop.f32.mrb[0].mxu0
    %v1408 = vadd.f32 0.0, %v1407
    %1409 = vdwg.mxu0
    %v1411 = vsel %vm1237, %v939, 0
    %v1414 = vsel %vm1237, %v940, 0
    %v1417 = vsel %vm817, %v935, 0
    %v1420 = vsel %vm817, %v936, 0
    %v1423 = vsel %vm817, %v937, 0
    %v1426 = vsel %vm817, %v938, 0
    %1428 = vmatprep.subr.mxu0 %v1420
    %1429 = vmatpush1.msra.mxu0 %v1417
    %1430 = vmatprep.subr.mxu0 0.0
    %1431 = vmatpush1.msra.mxu0 0.0
    %1432 = vmatprep.subr.mxu0 0.0
    %1433 = vmatpush1.msra.mxu0 0.0
    %1434 = vmatprep.subr.mxu0 0.0
    %1435 = vmatpush1.msra.mxu0 0.0
    %1436 = vmatprep.subr.mxu0 0.0
    %1437 = vmatpush1.msra.mxu0 0.0
    %1438 = vmatprep.subr.mxu0 0.0
    %1439 = vmatpush1.msra.mxu0 0.0
    %1440 = vmatprep.subr.mxu0 0.0
    %1441 = vmatpush1.msra.mxu0 0.0
    %1442 = vmatprep.subr.mxu0 0.0
    %1443 = vmatpush1.msra.mxu0 0.0
    %1444 = vmatprep.subr.mxu0 0.0
    %1445 = vmatpush1.msra.mxu0 0.0
    %1446 = vmatprep.subr.mxu0 0.0
    %1447 = vmatpush1.msra.mxu0 0.0
    %1448 = vmatprep.subr.mxu0 0.0
    %1449 = vmatpush1.msra.mxu0 0.0
    %1450 = vmatprep.subr.mxu0 0.0
    %1451 = vmatpush1.msra.mxu0 0.0
    %1452 = vmatprep.subr.mxu0 0.0
    %1453 = vmatpush1.msra.mxu0 0.0
    %1454 = vmatprep.subr.mxu0 0.0
    %1455 = vmatpush1.msra.mxu0 0.0
    %1456 = vmatprep.subr.mxu0 0.0
    %1457 = vmatpush1.msra.mxu0 0.0
    %1458 = vmatprep.subr.mxu0 0.0
    %1459 = vmatpush1.msra.mxu0 0.0
    %1460 = vmatprep.subr.mxu0 0.0
    %1461 = vmatpush1.msra.mxu0 0.0
    %1462 = vmatprep.subr.mxu0 0.0
    %1463 = vmatpush1.msra.mxu0 0.0
    %1464 = vmatprep.subr.mxu0 0.0
    %1465 = vmatpush1.msra.mxu0 0.0
    %1466 = vmatprep.subr.mxu0 0.0
    %1467 = vmatpush1.msra.mxu0 0.0
    %1468 = vmatprep.subr.mxu0 0.0
    %1469 = vmatpush1.msra.mxu0 0.0
    %1470 = vmatprep.subr.mxu0 0.0
    %1471 = vmatpush1.msra.mxu0 0.0
    %1472 = vmatprep.subr.mxu0 0.0
    %1473 = vmatpush1.msra.mxu0 0.0
    %1474 = vmatprep.subr.mxu0 0.0
    %1475 = vmatpush1.msra.mxu0 0.0
    %1476 = vmatprep.subr.mxu0 0.0
    %1477 = vmatpush1.msra.mxu0 0.0
    %1478 = vmatprep.subr.mxu0 0.0
    %1479 = vmatpush1.msra.mxu0 0.0
    %1480 = vmatprep.subr.mxu0 0.0
    %1481 = vmatpush1.msra.mxu0 0.0
    %1482 = vmatprep.subr.mxu0 0.0
    %1483 = vmatpush1.msra.mxu0 0.0
    %1484 = vmatprep.subr.mxu0 0.0
    %1485 = vmatpush1.msra.mxu0 0.0
    %1486 = vmatprep.subr.mxu0 0.0
    %1487 = vmatpush1.msra.mxu0 0.0
    %1488 = vmatprep.subr.mxu0 0.0
    %1489 = vmatpush1.msra.mxu0 0.0
    %1490 = vmatprep.subr.mxu0 0.0
    %1491 = vmatpush1.msra.mxu0 0.0
    %1492 = vmatprep.mubr.f32.mxu0 0.0
    %1493 = vmatmul.mubr.f32.gmra.mrb[0].mxu0 %v1411
    %v1494 = vpop.f32.mrb[0].mxu0
    %v1495 = vadd.f32 %v1323, %v1494
    %v1496 = vpop.f32.mrb[0].mxu0
    %v1497 = vadd.f32 %v1325, %v1496
    %1498 = vmatprep.mubr.f32.mxu0 0.0
    %1499 = vmatmul.mubr.f32.gmra.mrb[0].mxu0 %v1414
    %v1500 = vpop.f32.mrb[0].mxu0
    %v1501 = vadd.f32 %v1329, %v1500
    %v1502 = vpop.f32.mrb[0].mxu0
    %v1503 = vadd.f32 %v1331, %v1502
    %1504 = vdwg.mxu0
    %1505 = vmatprep.subr.mxu0 %v1426
    %1506 = vmatpush1.msra.mxu0 %v1423
    %1507 = vmatprep.subr.mxu0 0.0
    %1508 = vmatpush1.msra.mxu0 0.0
    %1509 = vmatprep.subr.mxu0 0.0
    %1510 = vmatpush1.msra.mxu0 0.0
    %1511 = vmatprep.subr.mxu0 0.0
    %1512 = vmatpush1.msra.mxu0 0.0
    %1513 = vmatprep.subr.mxu0 0.0
    %1514 = vmatpush1.msra.mxu0 0.0
    %1515 = vmatprep.subr.mxu0 0.0
    %1516 = vmatpush1.msra.mxu0 0.0
    %1517 = vmatprep.subr.mxu0 0.0
    %1518 = vmatpush1.msra.mxu0 0.0
    %1519 = vmatprep.subr.mxu0 0.0
    %1520 = vmatpush1.msra.mxu0 0.0
    %1521 = vmatprep.subr.mxu0 0.0
    %1522 = vmatpush1.msra.mxu0 0.0
    %1523 = vmatprep.subr.mxu0 0.0
    %1524 = vmatpush1.msra.mxu0 0.0
    %1525 = vmatprep.subr.mxu0 0.0
    %1526 = vmatpush1.msra.mxu0 0.0
    %1527 = vmatprep.subr.mxu0 0.0
    %1528 = vmatpush1.msra.mxu0 0.0
    %1529 = vmatprep.subr.mxu0 0.0
    %1530 = vmatpush1.msra.mxu0 0.0
    %1531 = vmatprep.subr.mxu0 0.0
    %1532 = vmatpush1.msra.mxu0 0.0
    %1533 = vmatprep.subr.mxu0 0.0
    %1534 = vmatpush1.msra.mxu0 0.0
    %1535 = vmatprep.subr.mxu0 0.0
    %1536 = vmatpush1.msra.mxu0 0.0
    %1537 = vmatprep.subr.mxu0 0.0
    %1538 = vmatpush1.msra.mxu0 0.0
    %1539 = vmatprep.subr.mxu0 0.0
    %1540 = vmatpush1.msra.mxu0 0.0
    %1541 = vmatprep.subr.mxu0 0.0
    %1542 = vmatpush1.msra.mxu0 0.0
    %1543 = vmatprep.subr.mxu0 0.0
    %1544 = vmatpush1.msra.mxu0 0.0
    %1545 = vmatprep.subr.mxu0 0.0
    %1546 = vmatpush1.msra.mxu0 0.0
    %1547 = vmatprep.subr.mxu0 0.0
    %1548 = vmatpush1.msra.mxu0 0.0
    %1549 = vmatprep.subr.mxu0 0.0
    %1550 = vmatpush1.msra.mxu0 0.0
    %1551 = vmatprep.subr.mxu0 0.0
    %1552 = vmatpush1.msra.mxu0 0.0
    %1553 = vmatprep.subr.mxu0 0.0
    %1554 = vmatpush1.msra.mxu0 0.0
    %1555 = vmatprep.subr.mxu0 0.0
    %1556 = vmatpush1.msra.mxu0 0.0
    %1557 = vmatprep.subr.mxu0 0.0
    %1558 = vmatpush1.msra.mxu0 0.0
    %1559 = vmatprep.subr.mxu0 0.0
    %1560 = vmatpush1.msra.mxu0 0.0
    %1561 = vmatprep.subr.mxu0 0.0
    %1562 = vmatpush1.msra.mxu0 0.0
    %1563 = vmatprep.subr.mxu0 0.0
    %1564 = vmatpush1.msra.mxu0 0.0
    %1565 = vmatprep.subr.mxu0 0.0
    %1566 = vmatpush1.msra.mxu0 0.0
    %1567 = vmatprep.subr.mxu0 0.0
    %1568 = vmatpush1.msra.mxu0 0.0
    %1569 = vmatprep.mubr.f32.mxu0 0.0
    %1570 = vmatmul.mubr.f32.gmra.mrb[0].mxu0 %v1411
    %v1571 = vpop.f32.mrb[0].mxu0
    %v1572 = vadd.f32 %v1400, %v1571
    %v1573 = vpop.f32.mrb[0].mxu0
    %v1574 = vadd.f32 %v1402, %v1573
    %1575 = vmatprep.mubr.f32.mxu0 0.0
    %1576 = vmatmul.mubr.f32.gmra.mrb[0].mxu0 %v1414
    %v1577 = vpop.f32.mrb[0].mxu0
    %v1578 = vadd.f32 %v1406, %v1577
    %v1579 = vpop.f32.mrb[0].mxu0
    %v1580 = vadd.f32 %v1408, %v1579
    %1581 = vdwg.mxu0
    %s1582 = scalar_lea.vmem %s3, 32
    %v1583 = vld [vmem:[%s1582] sm:$0xff]
    %v1584 = vld [vmem:[%s1582 + $0x8] sm:$0xff]
    %v1587 = vlaneseq
    %v1588 = vshrl.u32 %v1587, 7
    %v1589 = vsub.s32 0, %v1588
    %v1590 = vrot.slane %v1583, %v1589
    %v1591 = vlaneseq
    %v1592 = vshrl.u32 %v1591, 7
    %v1593 = vsub.s32 4, %v1592
    %v1594 = vrot.slane %v1583, %v1593
    %v1595 = vlaneseq
    %v1596 = vshrl.u32 %v1595, 7
    %v1597 = vsub.s32 0, %v1596
    %v1598 = vrot.slane %v1584, %v1597
    %v1599 = vlaneseq
    %v1600 = vshrl.u32 %v1599, 7
    %v1601 = vsub.s32 4, %v1600
    %v1602 = vrot.slane %v1584, %v1601
    %v1607 = vlaneseq
    %v1608 = vshrl.u32 %v1607, 7
    %v1609 = vsub.s32 0, %v1608
    %v1610 = vrot.slane %v1590, %v1609
    %v1611 = vlaneseq
    %v1612 = vshrl.u32 %v1611, 7
    %v1613 = vsub.s32 0, %v1612
    %v1614 = vrot.slane %v1594, %v1613
    %v1615 = vlaneseq
    %v1616 = vshrl.u32 %v1615, 7
    %v1617 = vsub.s32 0, %v1616
    %v1618 = vrot.slane %v1598, %v1617
    %v1619 = vlaneseq
    %v1620 = vshrl.u32 %v1619, 7
    %v1621 = vsub.s32 0, %v1620
    %v1622 = vrot.slane %v1602, %v1621
    %v1623 = vmul.f32 %v1610, %v658
    %v1624 = vmul.f32 %v1614, %v658
    %v1625 = vmul.f32 %v1618, %v658
    %v1626 = vmul.f32 %v1622, %v658
    %v1627 = vlaneseq
    %v1628 = vshrl.u32 %v1627, 7
    %v1629 = vsub.s32 1, %v1628
    %v1630 = vrot.slane %v1583, %v1629
    %v1631 = vlaneseq
    %v1632 = vshrl.u32 %v1631, 7
    %v1633 = vsub.s32 5, %v1632
    %v1634 = vrot.slane %v1583, %v1633
    %v1635 = vlaneseq
    %v1636 = vshrl.u32 %v1635, 7
    %v1637 = vsub.s32 1, %v1636
    %v1638 = vrot.slane %v1584, %v1637
    %v1639 = vlaneseq
    %v1640 = vshrl.u32 %v1639, 7
    %v1641 = vsub.s32 5, %v1640
    %v1642 = vrot.slane %v1584, %v1641
    %v1647 = vlaneseq
    %v1648 = vshrl.u32 %v1647, 7
    %v1649 = vsub.s32 1, %v1648
    %v1650 = vrot.slane %v1630, %v1649
    %v1651 = vlaneseq
    %v1652 = vshrl.u32 %v1651, 7
    %v1653 = vsub.s32 1, %v1652
    %v1654 = vrot.slane %v1634, %v1653
    %v1655 = vlaneseq
    %v1656 = vshrl.u32 %v1655, 7
    %v1657 = vsub.s32 1, %v1656
    %v1658 = vrot.slane %v1638, %v1657
    %v1659 = vlaneseq
    %v1660 = vshrl.u32 %v1659, 7
    %v1661 = vsub.s32 1, %v1660
    %v1662 = vrot.slane %v1642, %v1661
    %v1663 = vmul.f32 %v1650, %v702
    %v1664 = vmul.f32 %v1654, %v702
    %v1665 = vmul.f32 %v1658, %v702
    %v1666 = vmul.f32 %v1662, %v702
    %v1667 = vadd.f32 %v1623, %v1663
    %v1668 = vadd.f32 %v1624, %v1664
    %v1669 = vadd.f32 %v1625, %v1665
    %v1670 = vadd.f32 %v1626, %v1666
    %v1671 = vlaneseq
    %v1672 = vshrl.u32 %v1671, 7
    %v1673 = vsub.s32 2, %v1672
    %v1674 = vrot.slane %v1583, %v1673
    %v1675 = vlaneseq
    %v1676 = vshrl.u32 %v1675, 7
    %v1677 = vsub.s32 6, %v1676
    %v1678 = vrot.slane %v1583, %v1677
    %v1679 = vlaneseq
    %v1680 = vshrl.u32 %v1679, 7
    %v1681 = vsub.s32 2, %v1680
    %v1682 = vrot.slane %v1584, %v1681
    %v1683 = vlaneseq
    %v1684 = vshrl.u32 %v1683, 7
    %v1685 = vsub.s32 6, %v1684
    %v1686 = vrot.slane %v1584, %v1685
    %v1691 = vlaneseq
    %v1692 = vshrl.u32 %v1691, 7
    %v1693 = vsub.s32 2, %v1692
    %v1694 = vrot.slane %v1674, %v1693
    %v1695 = vlaneseq
    %v1696 = vshrl.u32 %v1695, 7
    %v1697 = vsub.s32 2, %v1696
    %v1698 = vrot.slane %v1678, %v1697
    %v1699 = vlaneseq
    %v1700 = vshrl.u32 %v1699, 7
    %v1701 = vsub.s32 2, %v1700
    %v1702 = vrot.slane %v1682, %v1701
    %v1703 = vlaneseq
    %v1704 = vshrl.u32 %v1703, 7
    %v1705 = vsub.s32 2, %v1704
    %v1706 = vrot.slane %v1686, %v1705
    %v1707 = vmul.f32 %v1694, %v750
    %v1708 = vmul.f32 %v1698, %v750
    %v1709 = vmul.f32 %v1702, %v750
    %v1710 = vmul.f32 %v1706, %v750
    %v1711 = vadd.f32 %v1667, %v1707
    %v1712 = vadd.f32 %v1668, %v1708
    %v1713 = vadd.f32 %v1669, %v1709
    %v1714 = vadd.f32 %v1670, %v1710
    %v1715 = vlaneseq
    %v1716 = vshrl.u32 %v1715, 7
    %v1717 = vsub.s32 3, %v1716
    %v1718 = vrot.slane %v1583, %v1717
    %v1719 = vlaneseq
    %v1720 = vshrl.u32 %v1719, 7
    %v1721 = vsub.s32 7, %v1720
    %v1722 = vrot.slane %v1583, %v1721
    %v1723 = vlaneseq
    %v1724 = vshrl.u32 %v1723, 7
    %v1725 = vsub.s32 3, %v1724
    %v1726 = vrot.slane %v1584, %v1725
    %v1727 = vlaneseq
    %v1728 = vshrl.u32 %v1727, 7
    %v1729 = vsub.s32 7, %v1728
    %v1730 = vrot.slane %v1584, %v1729
    %v1735 = vlaneseq
    %v1736 = vshrl.u32 %v1735, 7
    %v1737 = vsub.s32 3, %v1736
    %v1738 = vrot.slane %v1718, %v1737
    %v1739 = vlaneseq
    %v1740 = vshrl.u32 %v1739, 7
    %v1741 = vsub.s32 3, %v1740
    %v1742 = vrot.slane %v1722, %v1741
    %v1743 = vlaneseq
    %v1744 = vshrl.u32 %v1743, 7
    %v1745 = vsub.s32 3, %v1744
    %v1746 = vrot.slane %v1726, %v1745
    %v1747 = vlaneseq
    %v1748 = vshrl.u32 %v1747, 7
    %v1749 = vsub.s32 3, %v1748
    %v1750 = vrot.slane %v1730, %v1749
    %v1751 = vmul.f32 %v1738, %v798
    %v1752 = vmul.f32 %v1742, %v798
    %v1753 = vmul.f32 %v1746, %v798
    %v1754 = vmul.f32 %v1750, %v798
    %v1755 = vadd.f32 %v1711, %v1751
    %v1756 = vadd.f32 %v1712, %v1752
    %v1757 = vadd.f32 %v1713, %v1753
    %v1758 = vadd.f32 %v1714, %v1754
    %v1759 = vadd.f32 %v1755, %v811
    %v1760 = vadd.f32 %v1756, %v811
    %v1761 = vadd.f32 %v1757, %v811
    %v1762 = vadd.f32 %v1758, %v811
    %v1763 = vsel %vm817, %v1759, 0.0
    %v1764 = vrot.slane %v1763, 4
    %v1765 = vadd.f32 %v1763, %v1764
    %v1766 = vrot.slane %v1765, 2
    %v1767 = vadd.f32 %v1765, %v1766
    %v1768 = vrot.slane %v1767, 1
    %v1769 = vadd.f32 %v1767, %v1768
    %v1770 = vsel %vm817, %v1760, 0.0
    %v1771 = vrot.slane %v1770, 4
    %v1772 = vadd.f32 %v1770, %v1771
    %v1773 = vrot.slane %v1772, 2
    %v1774 = vadd.f32 %v1772, %v1773
    %v1775 = vrot.slane %v1774, 1
    %v1776 = vadd.f32 %v1774, %v1775
    %v1777 = vsel %vm817, %v1761, 0.0
    %v1778 = vrot.slane %v1777, 4
    %v1779 = vadd.f32 %v1777, %v1778
    %v1780 = vrot.slane %v1779, 2
    %v1781 = vadd.f32 %v1779, %v1780
    %v1782 = vrot.slane %v1781, 1
    %v1783 = vadd.f32 %v1781, %v1782
    %v1784 = vsel %vm817, %v1762, 0.0
    %v1785 = vrot.slane %v1784, 4
    %v1786 = vadd.f32 %v1784, %v1785
    %v1787 = vrot.slane %v1786, 2
    %v1788 = vadd.f32 %v1786, %v1787
    %v1789 = vrot.slane %v1788, 1
    %v1790 = vadd.f32 %v1788, %v1789
    %v1791 = vmul.f32 %v1769, %v846
    %v1792 = vmul.f32 %v1776, %v846
    %v1793 = vmul.f32 %v1783, %v846
    %v1794 = vmul.f32 %v1790, %v846
    %v1795 = vsub.f32 %v1759, %v1791
    %v1796 = vsub.f32 %v1760, %v1792
    %v1797 = vsub.f32 %v1761, %v1793
    %v1798 = vsub.f32 %v1762, %v1794
    %v1799 = vmul.f32 %v1795, %v1795
    %v1800 = vmul.f32 %v1796, %v1796
    %v1801 = vmul.f32 %v1797, %v1797
    %v1802 = vmul.f32 %v1798, %v1798
    %v1803 = vsel %vm817, %v1799, 0.0
    %v1804 = vrot.slane %v1803, 4
    %v1805 = vadd.f32 %v1803, %v1804
    %v1806 = vrot.slane %v1805, 2
    %v1807 = vadd.f32 %v1805, %v1806
    %v1808 = vrot.slane %v1807, 1
    %v1809 = vadd.f32 %v1807, %v1808
    %v1810 = vsel %vm817, %v1800, 0.0
    %v1811 = vrot.slane %v1810, 4
    %v1812 = vadd.f32 %v1810, %v1811
    %v1813 = vrot.slane %v1812, 2
    %v1814 = vadd.f32 %v1812, %v1813
    %v1815 = vrot.slane %v1814, 1
    %v1816 = vadd.f32 %v1814, %v1815
    %v1817 = vsel %vm817, %v1801, 0.0
    %v1818 = vrot.slane %v1817, 4
    %v1819 = vadd.f32 %v1817, %v1818
    %v1820 = vrot.slane %v1819, 2
    %v1821 = vadd.f32 %v1819, %v1820
    %v1822 = vrot.slane %v1821, 1
    %v1823 = vadd.f32 %v1821, %v1822
    %v1824 = vsel %vm817, %v1802, 0.0
    %v1825 = vrot.slane %v1824, 4
    %v1826 = vadd.f32 %v1824, %v1825
    %v1827 = vrot.slane %v1826, 2
    %v1828 = vadd.f32 %v1826, %v1827
    %v1829 = vrot.slane %v1828, 1
    %v1830 = vadd.f32 %v1828, %v1829
    %v1831 = vmul.f32 %v1809, %v846
    %v1832 = vmul.f32 %v1816, %v846
    %v1833 = vmul.f32 %v1823, %v846
    %v1834 = vmul.f32 %v1830, %v846
    %v1835 = vadd.f32 %v1831, 1e-06
    %v1836 = vadd.f32 %v1832, 1e-06
    %v1837 = vadd.f32 %v1833, 1e-06
    %v1838 = vadd.f32 %v1834, 1e-06
    %v1839 = vrsqrt.pop %v1835
    %v1840 = vrsqrt.pop %v1836
    %v1841 = vrsqrt.pop %v1837
    %v1842 = vrsqrt.pop %v1838
    %v1843 = vmul.f32 %v1795, %v1839
    %v1844 = vmul.f32 %v1796, %v1840
    %v1845 = vmul.f32 %v1797, %v1841
    %v1846 = vmul.f32 %v1798, %v1842
    %v1847 = vmul.f32 %v1843, %v905
    %v1848 = vmul.f32 %v1844, %v905
    %v1849 = vmul.f32 %v1845, %v905
    %v1850 = vmul.f32 %v1846, %v905
    %v1851 = vadd.f32 %v1847, %v913
    %v1852 = vadd.f32 %v1848, %v913
    %v1853 = vadd.f32 %v1849, %v913
    %v1854 = vadd.f32 %v1850, %v913
    %v1855 = vmul.f32 %v1851, 0.5
    %v1856 = vmul.f32 %v1852, 0.5
    %v1857 = vmul.f32 %v1853, 0.5
    %v1858 = vmul.f32 %v1854, 0.5
    %v1859 = vmul.f32 %v1851, 0.70710677
    %v1860 = vmul.f32 %v1852, 0.70710677
    %v1861 = vmul.f32 %v1853, 0.70710677
    %v1862 = vmul.f32 %v1854, 0.70710677
    %v1863 = verf.f32.pop %v1859
    %v1864 = verf.f32.pop %v1860
    %v1865 = verf.f32.pop %v1861
    %v1866 = verf.f32.pop %v1862
    %v1867 = vadd.f32 %v1863, 1.0
    %v1868 = vadd.f32 %v1864, 1.0
    %v1869 = vadd.f32 %v1865, 1.0
    %v1870 = vadd.f32 %v1866, 1.0
    %v1871 = vmul.f32 %v1855, %v1867
    %v1872 = vmul.f32 %v1856, %v1868
    %v1873 = vmul.f32 %v1857, %v1869
    %v1874 = vmul.f32 %v1858, %v1870
    %s1875 = scalar_lea.vmem %s5, 32
    %v1876 = vld [vmem:[%s1875] sm:$0xff]
    %v1877 = vld [vmem:[%s1875 + $0x8] sm:$0xff]
    %v1879 = vsel %vm1237, %v1876, 0
    %v1882 = vsel %vm1237, %v1877, 0
    %v1885 = vsel %vm817, %v1871, 0
    %v1888 = vsel %vm817, %v1872, 0
    %v1891 = vsel %vm817, %v1873, 0
    %v1894 = vsel %vm817, %v1874, 0
    %1896 = vmatprep.subr.mxu0 %v1888
    %1897 = vmatpush1.msra.mxu0 %v1885
    %1898 = vmatprep.subr.mxu0 0.0
    %1899 = vmatpush1.msra.mxu0 0.0
    %1900 = vmatprep.subr.mxu0 0.0
    %1901 = vmatpush1.msra.mxu0 0.0
    %1902 = vmatprep.subr.mxu0 0.0
    %1903 = vmatpush1.msra.mxu0 0.0
    %1904 = vmatprep.subr.mxu0 0.0
    %1905 = vmatpush1.msra.mxu0 0.0
    %1906 = vmatprep.subr.mxu0 0.0
    %1907 = vmatpush1.msra.mxu0 0.0
    %1908 = vmatprep.subr.mxu0 0.0
    %1909 = vmatpush1.msra.mxu0 0.0
    %1910 = vmatprep.subr.mxu0 0.0
    %1911 = vmatpush1.msra.mxu0 0.0
    %1912 = vmatprep.subr.mxu0 0.0
    %1913 = vmatpush1.msra.mxu0 0.0
    %1914 = vmatprep.subr.mxu0 0.0
    %1915 = vmatpush1.msra.mxu0 0.0
    %1916 = vmatprep.subr.mxu0 0.0
    %1917 = vmatpush1.msra.mxu0 0.0
    %1918 = vmatprep.subr.mxu0 0.0
    %1919 = vmatpush1.msra.mxu0 0.0
    %1920 = vmatprep.subr.mxu0 0.0
    %1921 = vmatpush1.msra.mxu0 0.0
    %1922 = vmatprep.subr.mxu0 0.0
    %1923 = vmatpush1.msra.mxu0 0.0
    %1924 = vmatprep.subr.mxu0 0.0
    %1925 = vmatpush1.msra.mxu0 0.0
    %1926 = vmatprep.subr.mxu0 0.0
    %1927 = vmatpush1.msra.mxu0 0.0
    %1928 = vmatprep.subr.mxu0 0.0
    %1929 = vmatpush1.msra.mxu0 0.0
    %1930 = vmatprep.subr.mxu0 0.0
    %1931 = vmatpush1.msra.mxu0 0.0
    %1932 = vmatprep.subr.mxu0 0.0
    %1933 = vmatpush1.msra.mxu0 0.0
    %1934 = vmatprep.subr.mxu0 0.0
    %1935 = vmatpush1.msra.mxu0 0.0
    %1936 = vmatprep.subr.mxu0 0.0
    %1937 = vmatpush1.msra.mxu0 0.0
    %1938 = vmatprep.subr.mxu0 0.0
    %1939 = vmatpush1.msra.mxu0 0.0
    %1940 = vmatprep.subr.mxu0 0.0
    %1941 = vmatpush1.msra.mxu0 0.0
    %1942 = vmatprep.subr.mxu0 0.0
    %1943 = vmatpush1.msra.mxu0 0.0
    %1944 = vmatprep.subr.mxu0 0.0
    %1945 = vmatpush1.msra.mxu0 0.0
    %1946 = vmatprep.subr.mxu0 0.0
    %1947 = vmatpush1.msra.mxu0 0.0
    %1948 = vmatprep.subr.mxu0 0.0
    %1949 = vmatpush1.msra.mxu0 0.0
    %1950 = vmatprep.subr.mxu0 0.0
    %1951 = vmatpush1.msra.mxu0 0.0
    %1952 = vmatprep.subr.mxu0 0.0
    %1953 = vmatpush1.msra.mxu0 0.0
    %1954 = vmatprep.subr.mxu0 0.0
    %1955 = vmatpush1.msra.mxu0 0.0
    %1956 = vmatprep.subr.mxu0 0.0
    %1957 = vmatpush1.msra.mxu0 0.0
    %1958 = vmatprep.subr.mxu0 0.0
    %1959 = vmatpush1.msra.mxu0 0.0
    %1960 = vmatprep.mubr.f32.mxu0 0.0
    %1961 = vmatmul.mubr.f32.gmra.mrb[0].mxu0 %v1879
    %v1962 = vpop.f32.mrb[0].mxu0
    %v1963 = vadd.f32 0.0, %v1962
    %v1964 = vpop.f32.mrb[0].mxu0
    %v1965 = vadd.f32 0.0, %v1964
    %1966 = vmatprep.mubr.f32.mxu0 0.0
    %1967 = vmatmul.mubr.f32.gmra.mrb[0].mxu0 %v1882
    %v1968 = vpop.f32.mrb[0].mxu0
    %v1969 = vadd.f32 0.0, %v1968
    %v1970 = vpop.f32.mrb[0].mxu0
    %v1971 = vadd.f32 0.0, %v1970
    %1972 = vdwg.mxu0
    %1973 = vmatprep.subr.mxu0 %v1894
    %1974 = vmatpush1.msra.mxu0 %v1891
    %1975 = vmatprep.subr.mxu0 0.0
    %1976 = vmatpush1.msra.mxu0 0.0
    %1977 = vmatprep.subr.mxu0 0.0
    %1978 = vmatpush1.msra.mxu0 0.0
    %1979 = vmatprep.subr.mxu0 0.0
    %1980 = vmatpush1.msra.mxu0 0.0
    %1981 = vmatprep.subr.mxu0 0.0
    %1982 = vmatpush1.msra.mxu0 0.0
    %1983 = vmatprep.subr.mxu0 0.0
    %1984 = vmatpush1.msra.mxu0 0.0
    %1985 = vmatprep.subr.mxu0 0.0
    %1986 = vmatpush1.msra.mxu0 0.0
    %1987 = vmatprep.subr.mxu0 0.0
    %1988 = vmatpush1.msra.mxu0 0.0
    %1989 = vmatprep.subr.mxu0 0.0
    %1990 = vmatpush1.msra.mxu0 0.0
    %1991 = vmatprep.subr.mxu0 0.0
    %1992 = vmatpush1.msra.mxu0 0.0
    %1993 = vmatprep.subr.mxu0 0.0
    %1994 = vmatpush1.msra.mxu0 0.0
    %1995 = vmatprep.subr.mxu0 0.0
    %1996 = vmatpush1.msra.mxu0 0.0
    %1997 = vmatprep.subr.mxu0 0.0
    %1998 = vmatpush1.msra.mxu0 0.0
    %1999 = vmatprep.subr.mxu0 0.0
    %2000 = vmatpush1.msra.mxu0 0.0
    %2001 = vmatprep.subr.mxu0 0.0
    %2002 = vmatpush1.msra.mxu0 0.0
    %2003 = vmatprep.subr.mxu0 0.0
    %2004 = vmatpush1.msra.mxu0 0.0
    %2005 = vmatprep.subr.mxu0 0.0
    %2006 = vmatpush1.msra.mxu0 0.0
    %2007 = vmatprep.subr.mxu0 0.0
    %2008 = vmatpush1.msra.mxu0 0.0
    %2009 = vmatprep.subr.mxu0 0.0
    %2010 = vmatpush1.msra.mxu0 0.0
    %2011 = vmatprep.subr.mxu0 0.0
    %2012 = vmatpush1.msra.mxu0 0.0
    %2013 = vmatprep.subr.mxu0 0.0
    %2014 = vmatpush1.msra.mxu0 0.0
    %2015 = vmatprep.subr.mxu0 0.0
    %2016 = vmatpush1.msra.mxu0 0.0
    %2017 = vmatprep.subr.mxu0 0.0
    %2018 = vmatpush1.msra.mxu0 0.0
    %2019 = vmatprep.subr.mxu0 0.0
    %2020 = vmatpush1.msra.mxu0 0.0
    %2021 = vmatprep.subr.mxu0 0.0
    %2022 = vmatpush1.msra.mxu0 0.0
    %2023 = vmatprep.subr.mxu0 0.0
    %2024 = vmatpush1.msra.mxu0 0.0
    %2025 = vmatprep.subr.mxu0 0.0
    %2026 = vmatpush1.msra.mxu0 0.0
    %2027 = vmatprep.subr.mxu0 0.0
    %2028 = vmatpush1.msra.mxu0 0.0
    %2029 = vmatprep.subr.mxu0 0.0
    %2030 = vmatpush1.msra.mxu0 0.0
    %2031 = vmatprep.subr.mxu0 0.0
    %2032 = vmatpush1.msra.mxu0 0.0
    %2033 = vmatprep.subr.mxu0 0.0
    %2034 = vmatpush1.msra.mxu0 0.0
    %2035 = vmatprep.subr.mxu0 0.0
    %2036 = vmatpush1.msra.mxu0 0.0
    %2037 = vmatprep.mubr.f32.mxu0 0.0
    %2038 = vmatmul.mubr.f32.gmra.mrb[0].mxu0 %v1879
    %v2039 = vpop.f32.mrb[0].mxu0
    %v2040 = vadd.f32 0.0, %v2039
    %v2041 = vpop.f32.mrb[0].mxu0
    %v2042 = vadd.f32 0.0, %v2041
    %2043 = vmatprep.mubr.f32.mxu0 0.0
    %2044 = vmatmul.mubr.f32.gmra.mrb[0].mxu0 %v1882
    %v2045 = vpop.f32.mrb[0].mxu0
    %v2046 = vadd.f32 0.0, %v2045
    %v2047 = vpop.f32.mrb[0].mxu0
    %v2048 = vadd.f32 0.0, %v2047
    %2049 = vdwg.mxu0
    %v2050 = vadd.f32 %v1495, %v1963
    %v2051 = vadd.f32 %v1497, %v1965
    %v2052 = vadd.f32 %v1572, %v2040
    %v2053 = vadd.f32 %v1574, %v2042
    %v2054 = vadd.f32 %v1501, %v1969
    %v2055 = vadd.f32 %v1503, %v1971
    %v2056 = vadd.f32 %v1578, %v2046
    %v2057 = vadd.f32 %v1580, %v2048
    %s2058 = scalar_lea.vmem %s3, 48
    %v2059 = vld [vmem:[%s2058] sm:$0xff]
    %v2060 = vld [vmem:[%s2058 + $0x8] sm:$0xff]
    %v2063 = vlaneseq
    %v2064 = vshrl.u32 %v2063, 7
    %v2065 = vsub.s32 0, %v2064
    %v2066 = vrot.slane %v2059, %v2065
    %v2067 = vlaneseq
    %v2068 = vshrl.u32 %v2067, 7
    %v2069 = vsub.s32 4, %v2068
    %v2070 = vrot.slane %v2059, %v2069
    %v2071 = vlaneseq
    %v2072 = vshrl.u32 %v2071, 7
    %v2073 = vsub.s32 0, %v2072
    %v2074 = vrot.slane %v2060, %v2073
    %v2075 = vlaneseq
    %v2076 = vshrl.u32 %v2075, 7
    %v2077 = vsub.s32 4, %v2076
    %v2078 = vrot.slane %v2060, %v2077
    %v2083 = vlaneseq
    %v2084 = vshrl.u32 %v2083, 7
    %v2085 = vsub.s32 0, %v2084
    %v2086 = vrot.slane %v2066, %v2085
    %v2087 = vlaneseq
    %v2088 = vshrl.u32 %v2087, 7
    %v2089 = vsub.s32 0, %v2088
    %v2090 = vrot.slane %v2070, %v2089
    %v2091 = vlaneseq
    %v2092 = vshrl.u32 %v2091, 7
    %v2093 = vsub.s32 0, %v2092
    %v2094 = vrot.slane %v2074, %v2093
    %v2095 = vlaneseq
    %v2096 = vshrl.u32 %v2095, 7
    %v2097 = vsub.s32 0, %v2096
    %v2098 = vrot.slane %v2078, %v2097
    %v2099 = vmul.f32 %v2086, %v658
    %v2100 = vmul.f32 %v2090, %v658
    %v2101 = vmul.f32 %v2094, %v658
    %v2102 = vmul.f32 %v2098, %v658
    %v2103 = vlaneseq
    %v2104 = vshrl.u32 %v2103, 7
    %v2105 = vsub.s32 1, %v2104
    %v2106 = vrot.slane %v2059, %v2105
    %v2107 = vlaneseq
    %v2108 = vshrl.u32 %v2107, 7
    %v2109 = vsub.s32 5, %v2108
    %v2110 = vrot.slane %v2059, %v2109
    %v2111 = vlaneseq
    %v2112 = vshrl.u32 %v2111, 7
    %v2113 = vsub.s32 1, %v2112
    %v2114 = vrot.slane %v2060, %v2113
    %v2115 = vlaneseq
    %v2116 = vshrl.u32 %v2115, 7
    %v2117 = vsub.s32 5, %v2116
    %v2118 = vrot.slane %v2060, %v2117
    %v2123 = vlaneseq
    %v2124 = vshrl.u32 %v2123, 7
    %v2125 = vsub.s32 1, %v2124
    %v2126 = vrot.slane %v2106, %v2125
    %v2127 = vlaneseq
    %v2128 = vshrl.u32 %v2127, 7
    %v2129 = vsub.s32 1, %v2128
    %v2130 = vrot.slane %v2110, %v2129
    %v2131 = vlaneseq
    %v2132 = vshrl.u32 %v2131, 7
    %v2133 = vsub.s32 1, %v2132
    %v2134 = vrot.slane %v2114, %v2133
    %v2135 = vlaneseq
    %v2136 = vshrl.u32 %v2135, 7
    %v2137 = vsub.s32 1, %v2136
    %v2138 = vrot.slane %v2118, %v2137
    %v2139 = vmul.f32 %v2126, %v702
    %v2140 = vmul.f32 %v2130, %v702
    %v2141 = vmul.f32 %v2134, %v702
    %v2142 = vmul.f32 %v2138, %v702
    %v2143 = vadd.f32 %v2099, %v2139
    %v2144 = vadd.f32 %v2100, %v2140
    %v2145 = vadd.f32 %v2101, %v2141
    %v2146 = vadd.f32 %v2102, %v2142
    %v2147 = vlaneseq
    %v2148 = vshrl.u32 %v2147, 7
    %v2149 = vsub.s32 2, %v2148
    %v2150 = vrot.slane %v2059, %v2149
    %v2151 = vlaneseq
    %v2152 = vshrl.u32 %v2151, 7
    %v2153 = vsub.s32 6, %v2152
    %v2154 = vrot.slane %v2059, %v2153
    %v2155 = vlaneseq
    %v2156 = vshrl.u32 %v2155, 7
    %v2157 = vsub.s32 2, %v2156
    %v2158 = vrot.slane %v2060, %v2157
    %v2159 = vlaneseq
    %v2160 = vshrl.u32 %v2159, 7
    %v2161 = vsub.s32 6, %v2160
    %v2162 = vrot.slane %v2060, %v2161
    %v2167 = vlaneseq
    %v2168 = vshrl.u32 %v2167, 7
    %v2169 = vsub.s32 2, %v2168
    %v2170 = vrot.slane %v2150, %v2169
    %v2171 = vlaneseq
    %v2172 = vshrl.u32 %v2171, 7
    %v2173 = vsub.s32 2, %v2172
    %v2174 = vrot.slane %v2154, %v2173
    %v2175 = vlaneseq
    %v2176 = vshrl.u32 %v2175, 7
    %v2177 = vsub.s32 2, %v2176
    %v2178 = vrot.slane %v2158, %v2177
    %v2179 = vlaneseq
    %v2180 = vshrl.u32 %v2179, 7
    %v2181 = vsub.s32 2, %v2180
    %v2182 = vrot.slane %v2162, %v2181
    %v2183 = vmul.f32 %v2170, %v750
    %v2184 = vmul.f32 %v2174, %v750
    %v2185 = vmul.f32 %v2178, %v750
    %v2186 = vmul.f32 %v2182, %v750
    %v2187 = vadd.f32 %v2143, %v2183
    %v2188 = vadd.f32 %v2144, %v2184
    %v2189 = vadd.f32 %v2145, %v2185
    %v2190 = vadd.f32 %v2146, %v2186
    %v2191 = vlaneseq
    %v2192 = vshrl.u32 %v2191, 7
    %v2193 = vsub.s32 3, %v2192
    %v2194 = vrot.slane %v2059, %v2193
    %v2195 = vlaneseq
    %v2196 = vshrl.u32 %v2195, 7
    %v2197 = vsub.s32 7, %v2196
    %v2198 = vrot.slane %v2059, %v2197
    %v2199 = vlaneseq
    %v2200 = vshrl.u32 %v2199, 7
    %v2201 = vsub.s32 3, %v2200
    %v2202 = vrot.slane %v2060, %v2201
    %v2203 = vlaneseq
    %v2204 = vshrl.u32 %v2203, 7
    %v2205 = vsub.s32 7, %v2204
    %v2206 = vrot.slane %v2060, %v2205
    %v2211 = vlaneseq
    %v2212 = vshrl.u32 %v2211, 7
    %v2213 = vsub.s32 3, %v2212
    %v2214 = vrot.slane %v2194, %v2213
    %v2215 = vlaneseq
    %v2216 = vshrl.u32 %v2215, 7
    %v2217 = vsub.s32 3, %v2216
    %v2218 = vrot.slane %v2198, %v2217
    %v2219 = vlaneseq
    %v2220 = vshrl.u32 %v2219, 7
    %v2221 = vsub.s32 3, %v2220
    %v2222 = vrot.slane %v2202, %v2221
    %v2223 = vlaneseq
    %v2224 = vshrl.u32 %v2223, 7
    %v2225 = vsub.s32 3, %v2224
    %v2226 = vrot.slane %v2206, %v2225
    %v2227 = vmul.f32 %v2214, %v798
    %v2228 = vmul.f32 %v2218, %v798
    %v2229 = vmul.f32 %v2222, %v798
    %v2230 = vmul.f32 %v2226, %v798
    %v2231 = vadd.f32 %v2187, %v2227
    %v2232 = vadd.f32 %v2188, %v2228
    %v2233 = vadd.f32 %v2189, %v2229
    %v2234 = vadd.f32 %v2190, %v2230
    %v2235 = vadd.f32 %v2231, %v811
    %v2236 = vadd.f32 %v2232, %v811
    %v2237 = vadd.f32 %v2233, %v811
    %v2238 = vadd.f32 %v2234, %v811
    %v2239 = vsel %vm817, %v2235, 0.0
    %v2240 = vrot.slane %v2239, 4
    %v2241 = vadd.f32 %v2239, %v2240
    %v2242 = vrot.slane %v2241, 2
    %v2243 = vadd.f32 %v2241, %v2242
    %v2244 = vrot.slane %v2243, 1
    %v2245 = vadd.f32 %v2243, %v2244
    %v2246 = vsel %vm817, %v2236, 0.0
    %v2247 = vrot.slane %v2246, 4
    %v2248 = vadd.f32 %v2246, %v2247
    %v2249 = vrot.slane %v2248, 2
    %v2250 = vadd.f32 %v2248, %v2249
    %v2251 = vrot.slane %v2250, 1
    %v2252 = vadd.f32 %v2250, %v2251
    %v2253 = vsel %vm817, %v2237, 0.0
    %v2254 = vrot.slane %v2253, 4
    %v2255 = vadd.f32 %v2253, %v2254
    %v2256 = vrot.slane %v2255, 2
    %v2257 = vadd.f32 %v2255, %v2256
    %v2258 = vrot.slane %v2257, 1
    %v2259 = vadd.f32 %v2257, %v2258
    %v2260 = vsel %vm817, %v2238, 0.0
    %v2261 = vrot.slane %v2260, 4
    %v2262 = vadd.f32 %v2260, %v2261
    %v2263 = vrot.slane %v2262, 2
    %v2264 = vadd.f32 %v2262, %v2263
    %v2265 = vrot.slane %v2264, 1
    %v2266 = vadd.f32 %v2264, %v2265
    %v2267 = vmul.f32 %v2245, %v846
    %v2268 = vmul.f32 %v2252, %v846
    %v2269 = vmul.f32 %v2259, %v846
    %v2270 = vmul.f32 %v2266, %v846
    %v2271 = vsub.f32 %v2235, %v2267
    %v2272 = vsub.f32 %v2236, %v2268
    %v2273 = vsub.f32 %v2237, %v2269
    %v2274 = vsub.f32 %v2238, %v2270
    %v2275 = vmul.f32 %v2271, %v2271
    %v2276 = vmul.f32 %v2272, %v2272
    %v2277 = vmul.f32 %v2273, %v2273
    %v2278 = vmul.f32 %v2274, %v2274
    %v2279 = vsel %vm817, %v2275, 0.0
    %v2280 = vrot.slane %v2279, 4
    %v2281 = vadd.f32 %v2279, %v2280
    %v2282 = vrot.slane %v2281, 2
    %v2283 = vadd.f32 %v2281, %v2282
    %v2284 = vrot.slane %v2283, 1
    %v2285 = vadd.f32 %v2283, %v2284
    %v2286 = vsel %vm817, %v2276, 0.0
    %v2287 = vrot.slane %v2286, 4
    %v2288 = vadd.f32 %v2286, %v2287
    %v2289 = vrot.slane %v2288, 2
    %v2290 = vadd.f32 %v2288, %v2289
    %v2291 = vrot.slane %v2290, 1
    %v2292 = vadd.f32 %v2290, %v2291
    %v2293 = vsel %vm817, %v2277, 0.0
    %v2294 = vrot.slane %v2293, 4
    %v2295 = vadd.f32 %v2293, %v2294
    %v2296 = vrot.slane %v2295, 2
    %v2297 = vadd.f32 %v2295, %v2296
    %v2298 = vrot.slane %v2297, 1
    %v2299 = vadd.f32 %v2297, %v2298
    %v2300 = vsel %vm817, %v2278, 0.0
    %v2301 = vrot.slane %v2300, 4
    %v2302 = vadd.f32 %v2300, %v2301
    %v2303 = vrot.slane %v2302, 2
    %v2304 = vadd.f32 %v2302, %v2303
    %v2305 = vrot.slane %v2304, 1
    %v2306 = vadd.f32 %v2304, %v2305
    %v2307 = vmul.f32 %v2285, %v846
    %v2308 = vmul.f32 %v2292, %v846
    %v2309 = vmul.f32 %v2299, %v846
    %v2310 = vmul.f32 %v2306, %v846
    %v2311 = vadd.f32 %v2307, 1e-06
    %v2312 = vadd.f32 %v2308, 1e-06
    %v2313 = vadd.f32 %v2309, 1e-06
    %v2314 = vadd.f32 %v2310, 1e-06
    %v2315 = vrsqrt.pop %v2311
    %v2316 = vrsqrt.pop %v2312
    %v2317 = vrsqrt.pop %v2313
    %v2318 = vrsqrt.pop %v2314
    %v2319 = vmul.f32 %v2271, %v2315
    %v2320 = vmul.f32 %v2272, %v2316
    %v2321 = vmul.f32 %v2273, %v2317
    %v2322 = vmul.f32 %v2274, %v2318
    %v2323 = vmul.f32 %v2319, %v905
    %v2324 = vmul.f32 %v2320, %v905
    %v2325 = vmul.f32 %v2321, %v905
    %v2326 = vmul.f32 %v2322, %v905
    %v2327 = vadd.f32 %v2323, %v913
    %v2328 = vadd.f32 %v2324, %v913
    %v2329 = vadd.f32 %v2325, %v913
    %v2330 = vadd.f32 %v2326, %v913
    %v2331 = vmul.f32 %v2327, 0.5
    %v2332 = vmul.f32 %v2328, 0.5
    %v2333 = vmul.f32 %v2329, 0.5
    %v2334 = vmul.f32 %v2330, 0.5
    %v2335 = vmul.f32 %v2327, 0.70710677
    %v2336 = vmul.f32 %v2328, 0.70710677
    %v2337 = vmul.f32 %v2329, 0.70710677
    %v2338 = vmul.f32 %v2330, 0.70710677
    %v2339 = verf.f32.pop %v2335
    %v2340 = verf.f32.pop %v2336
    %v2341 = verf.f32.pop %v2337
    %v2342 = verf.f32.pop %v2338
    %v2343 = vadd.f32 %v2339, 1.0
    %v2344 = vadd.f32 %v2340, 1.0
    %v2345 = vadd.f32 %v2341, 1.0
    %v2346 = vadd.f32 %v2342, 1.0
    %v2347 = vmul.f32 %v2331, %v2343
    %v2348 = vmul.f32 %v2332, %v2344
    %v2349 = vmul.f32 %v2333, %v2345
    %v2350 = vmul.f32 %v2334, %v2346
    %s2351 = scalar_lea.vmem %s5, 48
    %v2352 = vld [vmem:[%s2351] sm:$0xff]
    %v2353 = vld [vmem:[%s2351 + $0x8] sm:$0xff]
    %v2355 = vsel %vm1237, %v2352, 0
    %v2358 = vsel %vm1237, %v2353, 0
    %v2361 = vsel %vm817, %v2347, 0
    %v2364 = vsel %vm817, %v2348, 0
    %v2367 = vsel %vm817, %v2349, 0
    %v2370 = vsel %vm817, %v2350, 0
    %2372 = vmatprep.subr.mxu0 %v2364
    %2373 = vmatpush1.msra.mxu0 %v2361
    %2374 = vmatprep.subr.mxu0 0.0
    %2375 = vmatpush1.msra.mxu0 0.0
    %2376 = vmatprep.subr.mxu0 0.0
    %2377 = vmatpush1.msra.mxu0 0.0
    %2378 = vmatprep.subr.mxu0 0.0
    %2379 = vmatpush1.msra.mxu0 0.0
    %2380 = vmatprep.subr.mxu0 0.0
    %2381 = vmatpush1.msra.mxu0 0.0
    %2382 = vmatprep.subr.mxu0 0.0
    %2383 = vmatpush1.msra.mxu0 0.0
    %2384 = vmatprep.subr.mxu0 0.0
    %2385 = vmatpush1.msra.mxu0 0.0
    %2386 = vmatprep.subr.mxu0 0.0
    %2387 = vmatpush1.msra.mxu0 0.0
    %2388 = vmatprep.subr.mxu0 0.0
    %2389 = vmatpush1.msra.mxu0 0.0
    %2390 = vmatprep.subr.mxu0 0.0
    %2391 = vmatpush1.msra.mxu0 0.0
    %2392 = vmatprep.subr.mxu0 0.0
    %2393 = vmatpush1.msra.mxu0 0.0
    %2394 = vmatprep.subr.mxu0 0.0
    %2395 = vmatpush1.msra.mxu0 0.0
    %2396 = vmatprep.subr.mxu0 0.0
    %2397 = vmatpush1.msra.mxu0 0.0
    %2398 = vmatprep.subr.mxu0 0.0
    %2399 = vmatpush1.msra.mxu0 0.0
    %2400 = vmatprep.subr.mxu0 0.0
    %2401 = vmatpush1.msra.mxu0 0.0
    %2402 = vmatprep.subr.mxu0 0.0
    %2403 = vmatpush1.msra.mxu0 0.0
    %2404 = vmatprep.subr.mxu0 0.0
    %2405 = vmatpush1.msra.mxu0 0.0
    %2406 = vmatprep.subr.mxu0 0.0
    %2407 = vmatpush1.msra.mxu0 0.0
    %2408 = vmatprep.subr.mxu0 0.0
    %2409 = vmatpush1.msra.mxu0 0.0
    %2410 = vmatprep.subr.mxu0 0.0
    %2411 = vmatpush1.msra.mxu0 0.0
    %2412 = vmatprep.subr.mxu0 0.0
    %2413 = vmatpush1.msra.mxu0 0.0
    %2414 = vmatprep.subr.mxu0 0.0
    %2415 = vmatpush1.msra.mxu0 0.0
    %2416 = vmatprep.subr.mxu0 0.0
    %2417 = vmatpush1.msra.mxu0 0.0
    %2418 = vmatprep.subr.mxu0 0.0
    %2419 = vmatpush1.msra.mxu0 0.0
    %2420 = vmatprep.subr.mxu0 0.0
    %2421 = vmatpush1.msra.mxu0 0.0
    %2422 = vmatprep.subr.mxu0 0.0
    %2423 = vmatpush1.msra.mxu0 0.0
    %2424 = vmatprep.subr.mxu0 0.0
    %2425 = vmatpush1.msra.mxu0 0.0
    %2426 = vmatprep.subr.mxu0 0.0
    %2427 = vmatpush1.msra.mxu0 0.0
    %2428 = vmatprep.subr.mxu0 0.0
    %2429 = vmatpush1.msra.mxu0 0.0
    %2430 = vmatprep.subr.mxu0 0.0
    %2431 = vmatpush1.msra.mxu0 0.0
    %2432 = vmatprep.subr.mxu0 0.0
    %2433 = vmatpush1.msra.mxu0 0.0
    %2434 = vmatprep.subr.mxu0 0.0
    %2435 = vmatpush1.msra.mxu0 0.0
    %2436 = vmatprep.mubr.f32.mxu0 0.0
    %2437 = vmatmul.mubr.f32.gmra.mrb[0].mxu0 %v2355
    %v2438 = vpop.f32.mrb[0].mxu0
    %v2439 = vadd.f32 0.0, %v2438
    %v2440 = vpop.f32.mrb[0].mxu0
    %v2441 = vadd.f32 0.0, %v2440
    %2442 = vmatprep.mubr.f32.mxu0 0.0
    %2443 = vmatmul.mubr.f32.gmra.mrb[0].mxu0 %v2358
    %v2444 = vpop.f32.mrb[0].mxu0
    %v2445 = vadd.f32 0.0, %v2444
    %v2446 = vpop.f32.mrb[0].mxu0
    %v2447 = vadd.f32 0.0, %v2446
    %2448 = vdwg.mxu0
    %2449 = vmatprep.subr.mxu0 %v2370
    %2450 = vmatpush1.msra.mxu0 %v2367
    %2451 = vmatprep.subr.mxu0 0.0
    %2452 = vmatpush1.msra.mxu0 0.0
    %2453 = vmatprep.subr.mxu0 0.0
    %2454 = vmatpush1.msra.mxu0 0.0
    %2455 = vmatprep.subr.mxu0 0.0
    %2456 = vmatpush1.msra.mxu0 0.0
    %2457 = vmatprep.subr.mxu0 0.0
    %2458 = vmatpush1.msra.mxu0 0.0
    %2459 = vmatprep.subr.mxu0 0.0
    %2460 = vmatpush1.msra.mxu0 0.0
    %2461 = vmatprep.subr.mxu0 0.0
    %2462 = vmatpush1.msra.mxu0 0.0
    %2463 = vmatprep.subr.mxu0 0.0
    %2464 = vmatpush1.msra.mxu0 0.0
    %2465 = vmatprep.subr.mxu0 0.0
    %2466 = vmatpush1.msra.mxu0 0.0
    %2467 = vmatprep.subr.mxu0 0.0
    %2468 = vmatpush1.msra.mxu0 0.0
    %2469 = vmatprep.subr.mxu0 0.0
    %2470 = vmatpush1.msra.mxu0 0.0
    %2471 = vmatprep.subr.mxu0 0.0
    %2472 = vmatpush1.msra.mxu0 0.0
    %2473 = vmatprep.subr.mxu0 0.0
    %2474 = vmatpush1.msra.mxu0 0.0
    %2475 = vmatprep.subr.mxu0 0.0
    %2476 = vmatpush1.msra.mxu0 0.0
    %2477 = vmatprep.subr.mxu0 0.0
    %2478 = vmatpush1.msra.mxu0 0.0
    %2479 = vmatprep.subr.mxu0 0.0
    %2480 = vmatpush1.msra.mxu0 0.0
    %2481 = vmatprep.subr.mxu0 0.0
    %2482 = vmatpush1.msra.mxu0 0.0
    %2483 = vmatprep.subr.mxu0 0.0
    %2484 = vmatpush1.msra.mxu0 0.0
    %2485 = vmatprep.subr.mxu0 0.0
    %2486 = vmatpush1.msra.mxu0 0.0
    %2487 = vmatprep.subr.mxu0 0.0
    %2488 = vmatpush1.msra.mxu0 0.0
    %2489 = vmatprep.subr.mxu0 0.0
    %2490 = vmatpush1.msra.mxu0 0.0
    %2491 = vmatprep.subr.mxu0 0.0
    %2492 = vmatpush1.msra.mxu0 0.0
    %2493 = vmatprep.subr.mxu0 0.0
    %2494 = vmatpush1.msra.mxu0 0.0
    %2495 = vmatprep.subr.mxu0 0.0
    %2496 = vmatpush1.msra.mxu0 0.0
    %2497 = vmatprep.subr.mxu0 0.0
    %2498 = vmatpush1.msra.mxu0 0.0
    %2499 = vmatprep.subr.mxu0 0.0
    %2500 = vmatpush1.msra.mxu0 0.0
    %2501 = vmatprep.subr.mxu0 0.0
    %2502 = vmatpush1.msra.mxu0 0.0
    %2503 = vmatprep.subr.mxu0 0.0
    %2504 = vmatpush1.msra.mxu0 0.0
    %2505 = vmatprep.subr.mxu0 0.0
    %2506 = vmatpush1.msra.mxu0 0.0
    %2507 = vmatprep.subr.mxu0 0.0
    %2508 = vmatpush1.msra.mxu0 0.0
    %2509 = vmatprep.subr.mxu0 0.0
    %2510 = vmatpush1.msra.mxu0 0.0
    %2511 = vmatprep.subr.mxu0 0.0
    %2512 = vmatpush1.msra.mxu0 0.0
    %2513 = vmatprep.mubr.f32.mxu0 0.0
    %2514 = vmatmul.mubr.f32.gmra.mrb[0].mxu0 %v2355
    %v2515 = vpop.f32.mrb[0].mxu0
    %v2516 = vadd.f32 0.0, %v2515
    %v2517 = vpop.f32.mrb[0].mxu0
    %v2518 = vadd.f32 0.0, %v2517
    %2519 = vmatprep.mubr.f32.mxu0 0.0
    %2520 = vmatmul.mubr.f32.gmra.mrb[0].mxu0 %v2358
    %v2521 = vpop.f32.mrb[0].mxu0
    %v2522 = vadd.f32 0.0, %v2521
    %v2523 = vpop.f32.mrb[0].mxu0
    %v2524 = vadd.f32 0.0, %v2523
    %2525 = vdwg.mxu0
    %v2526 = vadd.f32 %v2050, %v2439
    %v2527 = vadd.f32 %v2051, %v2441
    %v2528 = vadd.f32 %v2052, %v2516
    %v2529 = vadd.f32 %v2053, %v2518
    %v2530 = vadd.f32 %v2054, %v2445
    %v2531 = vadd.f32 %v2055, %v2447
    %v2532 = vadd.f32 %v2056, %v2522
    %v2533 = vadd.f32 %v2057, %v2524
    %2535 = vset.pattern.permute.xlu0 3
    %2536 = vperm.xlu0 %2535, %v610
    %v2537 = vpop.permute.xlu0 %2536
    %2540 = vset.pattern.permute.xlu0 3
    %2541 = vperm.xlu0 %2540, %v611
    %v2542 = vpop.permute.xlu0 %2541
    %v2544 = vadd.f32 %v2526, %v2537
    %v2545 = vadd.f32 %v2527, %v2537
    %v2546 = vadd.f32 %v2528, %v2537
    %v2547 = vadd.f32 %v2529, %v2537
    %v2548 = vadd.f32 %v2530, %v2542
    %v2549 = vadd.f32 %v2531, %v2542
    %v2550 = vadd.f32 %v2532, %v2542
    %v2551 = vadd.f32 %v2533, %v2542
    %v2552 = vadd.f32 %v2544, %v2548
    %v2553 = vrot.slane %v2552, 4
    %v2554 = vadd.f32 %v2552, %v2553
    %v2555 = vrot.slane %v2554, 2
    %v2556 = vadd.f32 %v2554, %v2555
    %v2557 = vrot.slane %v2556, 1
    %v2558 = vadd.f32 %v2556, %v2557
    %v2559 = vadd.f32 %v2545, %v2549
    %v2560 = vrot.slane %v2559, 4
    %v2561 = vadd.f32 %v2559, %v2560
    %v2562 = vrot.slane %v2561, 2
    %v2563 = vadd.f32 %v2561, %v2562
    %v2564 = vrot.slane %v2563, 1
    %v2565 = vadd.f32 %v2563, %v2564
    %v2566 = vadd.f32 %v2546, %v2550
    %v2567 = vrot.slane %v2566, 4
    %v2568 = vadd.f32 %v2566, %v2567
    %v2569 = vrot.slane %v2568, 2
    %v2570 = vadd.f32 %v2568, %v2569
    %v2571 = vrot.slane %v2570, 1
    %v2572 = vadd.f32 %v2570, %v2571
    %v2573 = vadd.f32 %v2547, %v2551
    %v2574 = vrot.slane %v2573, 4
    %v2575 = vadd.f32 %v2573, %v2574
    %v2576 = vrot.slane %v2575, 2
    %v2577 = vadd.f32 %v2575, %v2576
    %v2578 = vrot.slane %v2577, 1
    %v2579 = vadd.f32 %v2577, %v2578
    %v2580 = vrcp.pop 16.0
    %v2581 = vmul.f32 %v2558, %v2580
    %v2582 = vmul.f32 %v2565, %v2580
    %v2583 = vmul.f32 %v2572, %v2580
    %v2584 = vmul.f32 %v2579, %v2580
    %v2585 = vsub.f32 %v2544, %v2581
    %v2586 = vsub.f32 %v2545, %v2582
    %v2587 = vsub.f32 %v2546, %v2583
    %v2588 = vsub.f32 %v2547, %v2584
    %v2589 = vsub.f32 %v2548, %v2581
    %v2590 = vsub.f32 %v2549, %v2582
    %v2591 = vsub.f32 %v2550, %v2583
    %v2592 = vsub.f32 %v2551, %v2584
    %v2593 = vmul.f32 %v2585, %v2585
    %v2594 = vmul.f32 %v2586, %v2586
    %v2595 = vmul.f32 %v2587, %v2587
    %v2596 = vmul.f32 %v2588, %v2588
    %v2597 = vmul.f32 %v2589, %v2589
    %v2598 = vmul.f32 %v2590, %v2590
    %v2599 = vmul.f32 %v2591, %v2591
    %v2600 = vmul.f32 %v2592, %v2592
    %v2601 = vadd.f32 %v2593, %v2597
    %v2602 = vrot.slane %v2601, 4
    %v2603 = vadd.f32 %v2601, %v2602
    %v2604 = vrot.slane %v2603, 2
    %v2605 = vadd.f32 %v2603, %v2604
    %v2606 = vrot.slane %v2605, 1
    %v2607 = vadd.f32 %v2605, %v2606
    %v2608 = vadd.f32 %v2594, %v2598
    %v2609 = vrot.slane %v2608, 4
    %v2610 = vadd.f32 %v2608, %v2609
    %v2611 = vrot.slane %v2610, 2
    %v2612 = vadd.f32 %v2610, %v2611
    %v2613 = vrot.slane %v2612, 1
    %v2614 = vadd.f32 %v2612, %v2613
    %v2615 = vadd.f32 %v2595, %v2599
    %v2616 = vrot.slane %v2615, 4
    %v2617 = vadd.f32 %v2615, %v2616
    %v2618 = vrot.slane %v2617, 2
    %v2619 = vadd.f32 %v2617, %v2618
    %v2620 = vrot.slane %v2619, 1
    %v2621 = vadd.f32 %v2619, %v2620
    %v2622 = vadd.f32 %v2596, %v2600
    %v2623 = vrot.slane %v2622, 4
    %v2624 = vadd.f32 %v2622, %v2623
    %v2625 = vrot.slane %v2624, 2
    %v2626 = vadd.f32 %v2624, %v2625
    %v2627 = vrot.slane %v2626, 1
    %v2628 = vadd.f32 %v2626, %v2627
    %v2629 = vmul.f32 %v2607, %v2580
    %v2630 = vmul.f32 %v2614, %v2580
    %v2631 = vmul.f32 %v2621, %v2580
    %v2632 = vmul.f32 %v2628, %v2580
    %v2633 = vadd.f32 %v2629, 1e-06
    %v2634 = vadd.f32 %v2630, 1e-06
    %v2635 = vadd.f32 %v2631, 1e-06
    %v2636 = vadd.f32 %v2632, 1e-06
    %v2637 = vrsqrt.pop %v2633
    %v2638 = vrsqrt.pop %v2634
    %v2639 = vrsqrt.pop %v2635
    %v2640 = vrsqrt.pop %v2636
    %v2641 = vmul.f32 %v2585, %v2637
    %v2642 = vmul.f32 %v2586, %v2638
    %v2643 = vmul.f32 %v2587, %v2639
    %v2644 = vmul.f32 %v2588, %v2640
    %v2645 = vmul.f32 %v2589, %v2637
    %v2646 = vmul.f32 %v2590, %v2638
    %v2647 = vmul.f32 %v2591, %v2639
    %v2648 = vmul.f32 %v2592, %v2640
    %2649 = vset.pattern.permute.xlu0 4
    %2650 = vperm.xlu0 %2649, %v610
    %v2651 = vpop.permute.xlu0 %2650
    %2653 = vset.pattern.permute.xlu0 4
    %2654 = vperm.xlu0 %2653, %v611
    %v2655 = vpop.permute.xlu0 %2654
    %v2657 = vmul.f32 %v2641, %v2651
    %v2658 = vmul.f32 %v2642, %v2651
    %v2659 = vmul.f32 %v2643, %v2651
    %v2660 = vmul.f32 %v2644, %v2651
    %v2661 = vmul.f32 %v2645, %v2655
    %v2662 = vmul.f32 %v2646, %v2655
    %v2663 = vmul.f32 %v2647, %v2655
    %v2664 = vmul.f32 %v2648, %v2655
    %2665 = vset.pattern.permute.xlu0 5
    %2666 = vperm.xlu0 %2665, %v610
    %v2667 = vpop.permute.xlu0 %2666
    %2669 = vset.pattern.permute.xlu0 5
    %2670 = vperm.xlu0 %2669, %v611
    %v2671 = vpop.permute.xlu0 %2670
    %v2673 = vadd.f32 %v2657, %v2667
    %v2674 = vadd.f32 %v2658, %v2667
    %v2675 = vadd.f32 %v2659, %v2667
    %v2676 = vadd.f32 %v2660, %v2667
    %v2677 = vadd.f32 %v2661, %v2671
    %v2678 = vadd.f32 %v2662, %v2671
    %v2679 = vadd.f32 %v2663, %v2671
    %v2680 = vadd.f32 %v2664, %v2671
    %v2681 = vmul.f32 %v2673, 0.5
    %v2682 = vmul.f32 %v2674, 0.5
    %v2683 = vmul.f32 %v2675, 0.5
    %v2684 = vmul.f32 %v2676, 0.5
    %v2685 = vmul.f32 %v2677, 0.5
    %v2686 = vmul.f32 %v2678, 0.5
    %v2687 = vmul.f32 %v2679, 0.5
    %v2688 = vmul.f32 %v2680, 0.5
    %v2689 = vmul.f32 %v2673, 0.70710677
    %v2690 = vmul.f32 %v2674, 0.70710677
    %v2691 = vmul.f32 %v2675, 0.70710677
    %v2692 = vmul.f32 %v2676, 0.70710677
    %v2693 = vmul.f32 %v2677, 0.70710677
    %v2694 = vmul.f32 %v2678, 0.70710677
    %v2695 = vmul.f32 %v2679, 0.70710677
    %v2696 = vmul.f32 %v2680, 0.70710677
    %v2697 = verf.f32.pop %v2689
    %v2698 = verf.f32.pop %v2690
    %v2699 = verf.f32.pop %v2691
    %v2700 = verf.f32.pop %v2692
    %v2701 = verf.f32.pop %v2693
    %v2702 = verf.f32.pop %v2694
    %v2703 = verf.f32.pop %v2695
    %v2704 = verf.f32.pop %v2696
    %v2705 = vadd.f32 %v2697, 1.0
    %v2706 = vadd.f32 %v2698, 1.0
    %v2707 = vadd.f32 %v2699, 1.0
    %v2708 = vadd.f32 %v2700, 1.0
    %v2709 = vadd.f32 %v2701, 1.0
    %v2710 = vadd.f32 %v2702, 1.0
    %v2711 = vadd.f32 %v2703, 1.0
    %v2712 = vadd.f32 %v2704, 1.0
    %v2713 = vmul.f32 %v2681, %v2705
    %v2714 = vmul.f32 %v2682, %v2706
    %v2715 = vmul.f32 %v2683, %v2707
    %v2716 = vmul.f32 %v2684, %v2708
    %v2717 = vmul.f32 %v2685, %v2709
    %v2718 = vmul.f32 %v2686, %v2710
    %v2719 = vmul.f32 %v2687, %v2711
    %v2720 = vmul.f32 %v2688, %v2712
    %v2721 = vld [vmem:[%s6] sm:$0xff]
    %v2722 = vld [vmem:[%s6 + $0x8] sm:$0xff]
    %v2723 = vld [vmem:[%s6 + $0x10] sm:$0xff]
    %v2724 = vld [vmem:[%s6 + $0x18] sm:$0xff]
    %2725 = vset.pattern.permute.xlu0 6
    %2726 = vperm.xlu0 %2725, %v610
    %v2727 = vpop.permute.xlu0 %2726
    %2729 = vset.pattern.permute.xlu0 6
    %2730 = vperm.xlu0 %2729, %v611
    %v2731 = vpop.permute.xlu0 %2730
    %2734 = vset.pattern.permute.xlu0 6
    %2735 = vperm.xlu0 %2734, %v612
    %v2736 = vpop.permute.xlu0 %2735
    %2739 = vset.pattern.permute.xlu0 6
    %2740 = vperm.xlu0 %2739, %v613
    %v2741 = vpop.permute.xlu0 %2740
    %v2744 = vsel %vm496, %v2721, 0
    %v2747 = vsel %vm496, %v2722, 0
    %v2750 = vsel %vm496, %v2723, 0
    %v2753 = vsel %vm496, %v2724, 0
    %2755 = vmatprep.subr.mxu0 %v2714
    %2756 = vmatpush1.msra.mxu0 %v2713
    %2757 = vmatprep.subr.mxu0 %v2718
    %2758 = vmatpush1.msra.mxu0 %v2717
    %2759 = vmatprep.subr.mxu0 0.0
    %2760 = vmatpush1.msra.mxu0 0.0
    %2761 = vmatprep.subr.mxu0 0.0
    %2762 = vmatpush1.msra.mxu0 0.0
    %2763 = vmatprep.subr.mxu0 0.0
    %2764 = vmatpush1.msra.mxu0 0.0
    %2765 = vmatprep.subr.mxu0 0.0
    %2766 = vmatpush1.msra.mxu0 0.0
    %2767 = vmatprep.subr.mxu0 0.0
    %2768 = vmatpush1.msra.mxu0 0.0
    %2769 = vmatprep.subr.mxu0 0.0
    %2770 = vmatpush1.msra.mxu0 0.0
    %2771 = vmatprep.subr.mxu0 0.0
    %2772 = vmatpush1.msra.mxu0 0.0
    %2773 = vmatprep.subr.mxu0 0.0
    %2774 = vmatpush1.msra.mxu0 0.0
    %2775 = vmatprep.subr.mxu0 0.0
    %2776 = vmatpush1.msra.mxu0 0.0
    %2777 = vmatprep.subr.mxu0 0.0
    %2778 = vmatpush1.msra.mxu0 0.0
    %2779 = vmatprep.subr.mxu0 0.0
    %2780 = vmatpush1.msra.mxu0 0.0
    %2781 = vmatprep.subr.mxu0 0.0
    %2782 = vmatpush1.msra.mxu0 0.0
    %2783 = vmatprep.subr.mxu0 0.0
    %2784 = vmatpush1.msra.mxu0 0.0
    %2785 = vmatprep.subr.mxu0 0.0
    %2786 = vmatpush1.msra.mxu0 0.0
    %2787 = vmatprep.subr.mxu0 0.0
    %2788 = vmatpush1.msra.mxu0 0.0
    %2789 = vmatprep.subr.mxu0 0.0
    %2790 = vmatpush1.msra.mxu0 0.0
    %2791 = vmatprep.subr.mxu0 0.0
    %2792 = vmatpush1.msra.mxu0 0.0
    %2793 = vmatprep.subr.mxu0 0.0
    %2794 = vmatpush1.msra.mxu0 0.0
    %2795 = vmatprep.subr.mxu0 0.0
    %2796 = vmatpush1.msra.mxu0 0.0
    %2797 = vmatprep.subr.mxu0 0.0
    %2798 = vmatpush1.msra.mxu0 0.0
    %2799 = vmatprep.subr.mxu0 0.0
    %2800 = vmatpush1.msra.mxu0 0.0
    %2801 = vmatprep.subr.mxu0 0.0
    %2802 = vmatpush1.msra.mxu0 0.0
    %2803 = vmatprep.subr.mxu0 0.0
    %2804 = vmatpush1.msra.mxu0 0.0
    %2805 = vmatprep.subr.mxu0 0.0
    %2806 = vmatpush1.msra.mxu0 0.0
    %2807 = vmatprep.subr.mxu0 0.0
    %2808 = vmatpush1.msra.mxu0 0.0
    %2809 = vmatprep.subr.mxu0 0.0
    %2810 = vmatpush1.msra.mxu0 0.0
    %2811 = vmatprep.subr.mxu0 0.0
    %2812 = vmatpush1.msra.mxu0 0.0
    %2813 = vmatprep.subr.mxu0 0.0
    %2814 = vmatpush1.msra.mxu0 0.0
    %2815 = vmatprep.subr.mxu0 0.0
    %2816 = vmatpush1.msra.mxu0 0.0
    %2817 = vmatprep.subr.mxu0 0.0
    %2818 = vmatpush1.msra.mxu0 0.0
    %2819 = vmatprep.mubr.f32.mxu0 0.0
    %2820 = vmatmul.mubr.f32.gmra.mrb[0].mxu0 %v2744
    %v2821 = vpop.f32.mrb[0].mxu0
    %v2822 = vadd.f32 %v2727, %v2821
    %v2823 = vpop.f32.mrb[0].mxu0
    %v2824 = vadd.f32 %v2727, %v2823
    %2825 = vmatprep.mubr.f32.mxu0 0.0
    %2826 = vmatmul.mubr.f32.gmra.mrb[0].mxu0 %v2747
    %v2827 = vpop.f32.mrb[0].mxu0
    %v2828 = vadd.f32 %v2731, %v2827
    %v2829 = vpop.f32.mrb[0].mxu0
    %v2830 = vadd.f32 %v2731, %v2829
    %2831 = vmatprep.mubr.f32.mxu0 0.0
    %2832 = vmatmul.mubr.f32.gmra.mrb[0].mxu0 %v2750
    %v2833 = vpop.f32.mrb[0].mxu0
    %v2834 = vadd.f32 %v2736, %v2833
    %v2835 = vpop.f32.mrb[0].mxu0
    %v2836 = vadd.f32 %v2736, %v2835
    %2837 = vmatprep.mubr.f32.mxu0 0.0
    %2838 = vmatmul.mubr.f32.gmra.mrb[0].mxu0 %v2753
    %v2839 = vpop.f32.mrb[0].mxu0
    %v2840 = vadd.f32 %v2741, %v2839
    %v2841 = vpop.f32.mrb[0].mxu0
    %v2842 = vadd.f32 %v2741, %v2841
    %2843 = vdwg.mxu0
    %2844 = vmatprep.subr.mxu0 %v2716
    %2845 = vmatpush1.msra.mxu0 %v2715
    %2846 = vmatprep.subr.mxu0 %v2720
    %2847 = vmatpush1.msra.mxu0 %v2719
    %2848 = vmatprep.subr.mxu0 0.0
    %2849 = vmatpush1.msra.mxu0 0.0
    %2850 = vmatprep.subr.mxu0 0.0
    %2851 = vmatpush1.msra.mxu0 0.0
    %2852 = vmatprep.subr.mxu0 0.0
    %2853 = vmatpush1.msra.mxu0 0.0
    %2854 = vmatprep.subr.mxu0 0.0
    %2855 = vmatpush1.msra.mxu0 0.0
    %2856 = vmatprep.subr.mxu0 0.0
    %2857 = vmatpush1.msra.mxu0 0.0
    %2858 = vmatprep.subr.mxu0 0.0
    %2859 = vmatpush1.msra.mxu0 0.0
    %2860 = vmatprep.subr.mxu0 0.0
    %2861 = vmatpush1.msra.mxu0 0.0
    %2862 = vmatprep.subr.mxu0 0.0
    %2863 = vmatpush1.msra.mxu0 0.0
    %2864 = vmatprep.subr.mxu0 0.0
    %2865 = vmatpush1.msra.mxu0 0.0
    %2866 = vmatprep.subr.mxu0 0.0
    %2867 = vmatpush1.msra.mxu0 0.0
    %2868 = vmatprep.subr.mxu0 0.0
    %2869 = vmatpush1.msra.mxu0 0.0
    %2870 = vmatprep.subr.mxu0 0.0
    %2871 = vmatpush1.msra.mxu0 0.0
    %2872 = vmatprep.subr.mxu0 0.0
    %2873 = vmatpush1.msra.mxu0 0.0
    %2874 = vmatprep.subr.mxu0 0.0
    %2875 = vmatpush1.msra.mxu0 0.0
    %2876 = vmatprep.subr.mxu0 0.0
    %2877 = vmatpush1.msra.mxu0 0.0
    %2878 = vmatprep.subr.mxu0 0.0
    %2879 = vmatpush1.msra.mxu0 0.0
    %2880 = vmatprep.subr.mxu0 0.0
    %2881 = vmatpush1.msra.mxu0 0.0
    %2882 = vmatprep.subr.mxu0 0.0
    %2883 = vmatpush1.msra.mxu0 0.0
    %2884 = vmatprep.subr.mxu0 0.0
    %2885 = vmatpush1.msra.mxu0 0.0
    %2886 = vmatprep.subr.mxu0 0.0
    %2887 = vmatpush1.msra.mxu0 0.0
    %2888 = vmatprep.subr.mxu0 0.0
    %2889 = vmatpush1.msra.mxu0 0.0
    %2890 = vmatprep.subr.mxu0 0.0
    %2891 = vmatpush1.msra.mxu0 0.0
    %2892 = vmatprep.subr.mxu0 0.0
    %2893 = vmatpush1.msra.mxu0 0.0
    %2894 = vmatprep.subr.mxu0 0.0
    %2895 = vmatpush1.msra.mxu0 0.0
    %2896 = vmatprep.subr.mxu0 0.0
    %2897 = vmatpush1.msra.mxu0 0.0
    %2898 = vmatprep.subr.mxu0 0.0
    %2899 = vmatpush1.msra.mxu0 0.0
    %2900 = vmatprep.subr.mxu0 0.0
    %2901 = vmatpush1.msra.mxu0 0.0
    %2902 = vmatprep.subr.mxu0 0.0
    %2903 = vmatpush1.msra.mxu0 0.0
    %2904 = vmatprep.subr.mxu0 0.0
    %2905 = vmatpush1.msra.mxu0 0.0
    %2906 = vmatprep.subr.mxu0 0.0
    %2907 = vmatpush1.msra.mxu0 0.0
    %2908 = vmatprep.mubr.f32.mxu0 0.0
    %2909 = vmatmul.mubr.f32.gmra.mrb[0].mxu0 %v2744
    %v2910 = vpop.f32.mrb[0].mxu0
    %v2911 = vadd.f32 %v2727, %v2910
    %v2912 = vpop.f32.mrb[0].mxu0
    %v2913 = vadd.f32 %v2727, %v2912
    %2914 = vmatprep.mubr.f32.mxu0 0.0
    %2915 = vmatmul.mubr.f32.gmra.mrb[0].mxu0 %v2747
    %v2916 = vpop.f32.mrb[0].mxu0
    %v2917 = vadd.f32 %v2731, %v2916
    %v2918 = vpop.f32.mrb[0].mxu0
    %v2919 = vadd.f32 %v2731, %v2918
    %2920 = vmatprep.mubr.f32.mxu0 0.0
    %2921 = vmatmul.mubr.f32.gmra.mrb[0].mxu0 %v2750
    %v2922 = vpop.f32.mrb[0].mxu0
    %v2923 = vadd.f32 %v2736, %v2922
    %v2924 = vpop.f32.mrb[0].mxu0
    %v2925 = vadd.f32 %v2736, %v2924
    %2926 = vmatprep.mubr.f32.mxu0 0.0
    %2927 = vmatmul.mubr.f32.gmra.mrb[0].mxu0 %v2753
    %v2928 = vpop.f32.mrb[0].mxu0
    %v2929 = vadd.f32 %v2741, %v2928
    %v2930 = vpop.f32.mrb[0].mxu0
    %v2931 = vadd.f32 %v2741, %v2930
    %2932 = vdwg.mxu0
    %2933 = vst [vmem:[#allocation4] sm:$0xff] %v2822
    %2934 = vst [vmem:[#allocation4 + $0x8] sm:$0xff] %v2824
    %2935 = vst [vmem:[#allocation4 + $0x10] sm:$0xff] %v2828
    %2936 = vst [vmem:[#allocation4 + $0x18] sm:$0xff] %v2830
    %2937 = vst [vmem:[#allocation4 + $0x20] sm:$0xff] %v2834
    %2938 = vst [vmem:[#allocation4 + $0x28] sm:$0xff] %v2836
    %2939 = vst [vmem:[#allocation4 + $0x30] sm:$0xff] %v2840
    %2940 = vst [vmem:[#allocation4 + $0x38] sm:$0xff] %v2842
    %s2941 = scalar_lea.vmem [#allocation4], 64
    %2942 = vst [vmem:[%s2941] sm:$0xff] %v2911
    %2943 = vst [vmem:[%s2941 + $0x8] sm:$0xff] %v2913
    %2944 = vst [vmem:[%s2941 + $0x10] sm:$0xff] %v2917
    %2945 = vst [vmem:[%s2941 + $0x18] sm:$0xff] %v2919
    %2946 = vst [vmem:[%s2941 + $0x20] sm:$0xff] %v2923
    %2947 = vst [vmem:[%s2941 + $0x28] sm:$0xff] %v2925
    %2948 = vst [vmem:[%s2941 + $0x30] sm:$0xff] %v2929
    %2949 = vst [vmem:[%s2941 + $0x38] sm:$0xff] %v2931
    // Predicated region
    $region34: #{tpu_custom_call.1} parent=1 // pred_check
      _
    $region35: #{tpu_custom_call.1} parent=1 // pred_check_branch
      %2951 = sbr.rel (0) target = $region37
    $region36: #{tpu_custom_call.1} parent=1 // pred_region
      %s2953 = ssub.s32 256, 256
      %2954 = vsyncadd [#allocation3], %s2953
      %s2955 = sshll.u32 [#allocation2], 4
      %s2956 = int_to_ptr.vmem [resolvable:$true] %s2955
      %2961 = dma.vmem_to_hbm [thread:$0]  %s2956, 256, %s8, [#allocation3], 128, 128, 8
    $region37: #{tpu_custom_call.1} parent=1 // pred_fallthru
      _
    // Predicated region
    $region38: #{tpu_custom_call.1} parent=1 // pred_check
      _
    $region39: #{tpu_custom_call.1} parent=1 // pred_check_branch
      %2963 = sbr.rel (0) target = $region41
    $region40: #{tpu_custom_call.1} parent=1 // pred_region
      %s2965 = ssub.s32 2048, 2048
      %2966 = vsyncadd [#allocation5], %s2965
      %s2967 = sshll.u32 [#allocation4], 4
      %s2968 = int_to_ptr.vmem [resolvable:$true] %s2967
      %2973 = dma.vmem_to_hbm [thread:$0]  %s2968, 2048, %s9, [#allocation5], 256, 256, 16
    $region41: #{tpu_custom_call.1} parent=1 // pred_fallthru
      _
    // Predicated region
    $region42: #{tpu_custom_call.1} parent=1 // pred_check
      _
    $region43: #{tpu_custom_call.1} parent=1 // pred_check_branch
      %2975 = sbr.rel (0) target = $region45
    $region44: #{tpu_custom_call.1} parent=1 // pred_region
      %2976 = dma.done [#allocation3], 256
    $region45: #{tpu_custom_call.1} parent=1 // pred_fallthru
      _
    // Predicated region
    $region46: #{tpu_custom_call.1} parent=1 // pred_check
      _
    $region47: #{tpu_custom_call.1} parent=1 // pred_check_branch
      %2978 = sbr.rel (0) target = $region49
    $region48: #{tpu_custom_call.1} parent=1 // pred_region
      %2979 = dma.done [#allocation5], 2048
    $region49: #{tpu_custom_call.1} parent=1 // pred_fallthru
      _
    %2980 = vsyncpa [#allocation3], 1
    %2981 = vsyncpa [#allocation5], 1

</llo_original>
